<compile_context>
chip_gen: v5e
topology: v5e:2x2
jax: 0.10.0
libtpu: 0.0.40
codegen_flags: <defaults>
</compile_context>

<pallas_src>
import math

import jax
import jax.numpy as jnp
from jax.experimental import pallas as pl

# ---- model hyper-parameters (small, consistent with the module's __init__) ----
D_MODEL = 32      # d_model
N_HEADS = 4       # n_heads
N_LAYERS = 2      # n_layers
DIM_FF = 64       # dim_feedforward (PyTorch default is 2048; scaled down)
VOCAB = 100       # tokenizer.vocab_size (synthetic)
EPS = 1e-5        # LayerNorm eps (PyTorch default)
NEG_INF = -1e30   # additive key-padding bias (stands in for -inf)


# ----------------------------- shared math helpers ---------------------------
def _layer_norm(x, g, b):
    mu = jnp.mean(x, axis=-1, keepdims=True)
    var = jnp.mean((x - mu) ** 2, axis=-1, keepdims=True)
    return (x - mu) * jax.lax.rsqrt(var + EPS) * g + b


# ------------------------------- kernel-side MHA -----------------------------
def _attention(q2d, k2d, v2d, wo_t, bo, key_bias, B, Tq, Sk):
    """Multi-head attention over the whole batch.

    q2d: (B*Tq, D); k2d, v2d: (B*Sk, D); wo_t: (D, D) pre-transposed out-proj;
    bo: (1, D); key_bias: (B, Sk) additive key-padding bias.
    Equivalent to concat_h(softmax(q_h k_h^T/sqrt(dh) + bias) v_h) @ wo_t + bo,
    with the output projection accumulated per head (no lane-axis concat).
    """
    d = q2d.shape[-1]
    dh = d // N_HEADS
    scale = 1.0 / math.sqrt(dh)
    q3 = q2d.reshape(B, Tq, d)
    k3 = k2d.reshape(B, Sk, d)
    v3 = v2d.reshape(B, Sk, d)
    bias = key_bias[:, None, :]                       # (B, 1, Sk)
    out = jnp.zeros((B * Tq, d), jnp.float32) + bo    # start from the out-proj bias
    for h in range(N_HEADS):                          # static unroll; matmuls batched over B
        sl = slice(h * dh, (h + 1) * dh)
        s = jnp.einsum('bqd,bkd->bqk', q3[:, :, sl], k3[:, :, sl],
                       preferred_element_type=jnp.float32) * scale + bias
        m = jnp.max(s, axis=-1, keepdims=True)
        p = jnp.exp(s - m)
        a = p * pl.reciprocal(jnp.sum(p, axis=-1, keepdims=True), approx=False)
        ctx = jnp.einsum('bqk,bkd->bqd', a, v3[:, :, sl],
                         preferred_element_type=jnp.float32)
        out = out + jnp.dot(ctx.reshape(B * Tq, dh), wo_t[sl, :],
                            preferred_element_type=jnp.float32)
    return out


def decoder_kernel(tgt_ref, mem_ref, tb_ref, mb_ref,
                   sa_wqkv, sa_bqkv, sa_wo, sa_bo,
                   ca_wq, ca_bq, ca_wkv, ca_bkv, ca_wo, ca_bo,
                   ln1g, ln1b, ln2g, ln2b, ln3g, ln3b,
                   w1, b1, w2, b2,
                   out_ref):
    """Single grid step: whole batch, all layers unrolled in-kernel."""
    B, T, D = tgt_ref.shape
    S = mem_ref.shape[1]

    x = tgt_ref[...].astype(jnp.float32).reshape(B * T, D)     # (B*T, D)
    mem = mem_ref[...].astype(jnp.float32).reshape(B * S, D)   # (B*S, D)
    tb = tb_ref[...]                                           # (B, T) additive bias
    mb = mb_ref[...]                                           # (B, S) additive bias

    for l in range(N_LAYERS):                                  # static unroll over layers
        # --- self-attention block (fused QKV, post-norm) ---
        qkv = jnp.dot(x, sa_wqkv[l], preferred_element_type=jnp.float32) + sa_bqkv[l]
        sa = _attention(qkv[:, :D], qkv[:, D:2 * D], qkv[:, 2 * D:],
                        sa_wo[l], sa_bo[l], tb, B, T, T)
        x = _layer_norm(x + sa, ln1g[l], ln1b[l])
        # --- cross-attention block (Q from x, fused KV from memory) ---
        q = jnp.dot(x, ca_wq[l], preferred_element_type=jnp.float32) + ca_bq[l]
        kv = jnp.dot(mem, ca_wkv[l], preferred_element_type=jnp.float32) + ca_bkv[l]
        ca = _attention(q, kv[:, :D], kv[:, D:],
                        ca_wo[l], ca_bo[l], mb, B, T, S)
        x = _layer_norm(x + ca, ln2g[l], ln2b[l])
        # --- feed-forward block (ReLU) ---
        h = jnp.maximum(jnp.dot(x, w1[l], preferred_element_type=jnp.float32) + b1[l], 0.0)
        ff = jnp.dot(h, w2[l], preferred_element_type=jnp.float32) + b2[l]
        x = _layer_norm(x + ff, ln3g[l], ln3b[l])

    out_ref[...] = x.reshape(B, T, D).astype(out_ref.dtype)    # single store at the end


# ------------------------------ host-side glue -------------------------------
_WEIGHT_NAMES = ["sa_wqkv_t", "sa_bqkv", "sa_wo_t", "sa_bo",
                 "ca_wq_t", "ca_bq", "ca_wkv_t", "ca_bkv", "ca_wo_t", "ca_bo",
                 "ln1g", "ln1b", "ln2g", "ln2b", "ln3g", "ln3b",
                 "w1_t", "b1", "w2_t", "b2"]


def _round_up(n, m):
    return ((n + m - 1) // m) * m


def utterance_decoder_forward(ids, tgt_mask, history, history_mask, params):
    """ids: (B, T) int32; tgt_mask: (B, T) bool (True = key masked, as in the
    reference module which feeds the HF attention_mask straight into
    tgt_key_padding_mask); history: (B, S, D); history_mask: (B, S) bool."""
    embs = params["embedding"][ids].astype(jnp.float32)        # gather (host-side glue)
    B, T, D = embs.shape
    S = history.shape[1]

    # Pad sequence lengths to sublane multiples so in-kernel (B,L,D)->(B*L,D)
    # reshapes are tile-aligned; padded keys are neutralized with a -inf bias.
    Tp, Sp = _round_up(T, 8), _round_up(S, 8)
    embs = jnp.pad(embs, ((0, 0), (0, Tp - T), (0, 0)))
    mem = jnp.pad(history.astype(jnp.float32), ((0, 0), (0, Sp - S), (0, 0)))
    tmask = jnp.pad(tgt_mask, ((0, 0), (0, Tp - T)), constant_values=True)
    mmask = jnp.pad(history_mask, ((0, 0), (0, Sp - S)), constant_values=True)
    tbias = jnp.where(tmask, NEG_INF, 0.0).astype(jnp.float32)   # (B, Tp)
    mbias = jnp.where(mmask, NEG_INF, 0.0).astype(jnp.float32)   # (B, Sp)

    p = params["layers"]
    weights = [p[n] for n in _WEIGHT_NAMES]

    # Single kernel invocation: no grid, every operand is a whole-array VMEM block,
    # weights are DMA'd exactly once, layers unrolled in-kernel.
    out = pl.pallas_call(
        decoder_kernel,
        out_shape=jax.ShapeDtypeStruct((B, Tp, D), jnp.float32),
    )(embs, mem, tbias, mbias, *weights)
    return out[:, :T, :]


# --------------------------- deterministic params ----------------------------
def init_params(key):
    """Weights are stored pre-transposed (x @ W layout); PyTorch weights would be
    transposed once on the host when importing."""
    keys = jax.random.split(key, 16)
    nrm = lambda k, shp: (jax.random.normal(k, shp, jnp.float32) * 0.02)
    L, D, F = N_LAYERS, D_MODEL, DIM_FF
    ones = lambda shp: jnp.ones(shp, jnp.float32)
    zeros = lambda shp: jnp.zeros(shp, jnp.float32)
    layers = {
        "sa_wqkv_t": nrm(keys[1], (L, D, 3 * D)), "sa_bqkv": nrm(keys[2], (L, 1, 3 * D)),
        "sa_wo_t":   nrm(keys[3], (L, D, D)),     "sa_bo":   nrm(keys[4], (L, 1, D)),
        "ca_wq_t":   nrm(keys[5], (L, D, D)),     "ca_bq":   nrm(keys[6], (L, 1, D)),
        "ca_wkv_t":  nrm(keys[7], (L, D, 2 * D)), "ca_bkv":  nrm(keys[8], (L, 1, 2 * D)),
        "ca_wo_t":   nrm(keys[9], (L, D, D)),     "ca_bo":   nrm(keys[10], (L, 1, D)),
        "ln1g": ones((L, 1, D)), "ln1b": zeros((L, 1, D)),
        "ln2g": ones((L, 1, D)), "ln2b": zeros((L, 1, D)),
        "ln3g": ones((L, 1, D)), "ln3b": zeros((L, 1, D)),
        "w1_t": nrm(keys[11], (L, D, F)), "b1": nrm(keys[12], (L, 1, F)),
        "w2_t": nrm(keys[13], (L, F, D)), "b2": nrm(keys[14], (L, 1, D)),
    }
    return {"embedding": nrm(keys[0], (VOCAB, D)), "layers": layers}


# ----------------------------- pure-JAX reference ----------------------------
def _ref_mha(q, k, v, wo_t, bo, key_bias):
    B, Tq, D = q.shape
    Sk = k.shape[1]
    dh = D // N_HEADS
    scale = 1.0 / math.sqrt(dh)
    qh = q.reshape(B, Tq, N_HEADS, dh).transpose(0, 2, 1, 3)
    kh = k.reshape(B, Sk, N_HEADS, dh).transpose(0, 2, 1, 3)
    vh = v.reshape(B, Sk, N_HEADS, dh).transpose(0, 2, 1, 3)
    s = jnp.einsum('bhqd,bhkd->bhqk', qh, kh) * scale + key_bias[:, None, None, :]
    a = jax.nn.softmax(s, axis=-1)
    ctx = jnp.einsum('bhqk,bhkd->bhqd', a, vh).transpose(0, 2, 1, 3).reshape(B, Tq, D)
    return ctx @ wo_t + bo


def reference_forward(ids, tgt_mask, history, history_mask, params):
    embs = params["embedding"][ids].astype(jnp.float32)
    D = embs.shape[-1]
    tb = jnp.where(tgt_mask, NEG_INF, 0.0).astype(jnp.float32)
    mb = jnp.where(history_mask, NEG_INF, 0.0).astype(jnp.float32)
    p = params["layers"]
    x = embs
    mem = history.astype(jnp.float32)
    for l in range(N_LAYERS):
        qkv = x @ p["sa_wqkv_t"][l] + p["sa_bqkv"][l]
        sa = _ref_mha(qkv[..., :D], qkv[..., D:2 * D], qkv[..., 2 * D:],
                      p["sa_wo_t"][l], p["sa_bo"][l], tb)
        x = _layer_norm(x + sa, p["ln1g"][l], p["ln1b"][l])
        q = x @ p["ca_wq_t"][l] + p["ca_bq"][l]
        kv = mem @ p["ca_wkv_t"][l] + p["ca_bkv"][l]
        ca = _ref_mha(q, kv[..., :D], kv[..., D:],
                      p["ca_wo_t"][l], p["ca_bo"][l], mb)
        x = _layer_norm(x + ca, p["ln2g"][l], p["ln2b"][l])
        h = jnp.maximum(x @ p["w1_t"][l] + p["b1"][l], 0.0)
        ff = h @ p["w2_t"][l] + p["b2"][l]
        x = _layer_norm(x + ff, p["ln3g"][l], p["ln3b"][l])
    return x


if __name__ == "__main__":
    key = jax.random.PRNGKey(0)
    pkey, ikey, hkey = jax.random.split(key, 3)
    params = init_params(pkey)

    B, T, S = 2, 8, 10   # batch, tgt seq (tokenizer max_length), history seq
    ids = jax.random.randint(ikey, (B, T), 0, VOCAB, dtype=jnp.int32)
    history = jax.random.normal(hkey, (B, S, D_MODEL), jnp.float32)
    # HF attention_mask cast to bool and used directly as key_padding_mask
    # (True = ignore key), reproducing the reference module verbatim.
    tgt_mask = jnp.array([[1, 1, 1, 0, 0, 0, 1, 0],
                          [1, 0, 1, 1, 0, 0, 0, 1]], dtype=bool)
    hist_mask = jnp.array([[0, 1, 1, 0, 0, 1, 0, 0, 1, 0],
                           [1, 0, 0, 1, 0, 1, 0, 0, 0, 1]], dtype=bool)

    fwd = jax.jit(utterance_decoder_forward)
    out = jax.block_until_ready(fwd(ids, tgt_mask, history, hist_mask, params))

    with jax.default_matmul_precision("highest"):
        ref = reference_forward(ids, tgt_mask, history, hist_mask, params)

    err = float(jnp.max(jnp.abs(out - ref)))
    assert out.shape == (B, T, D_MODEL) and out.dtype == jnp.float32
    assert jnp.allclose(out, ref, atol=1e-4, rtol=1e-4), f"max abs err {err}"
    print("KERNEL_OK")
</pallas_src>

<mosaic_0001>
module attributes {stable_mosaic.version = 11 : i64} {
  func.func @decoder_kernel(%arg0: memref<2x8x32xf32, #tpu.memory_space<vmem>>, %arg1: memref<2x16x32xf32, #tpu.memory_space<vmem>>, %arg2: memref<2x8xf32, #tpu.memory_space<vmem>>, %arg3: memref<2x16xf32, #tpu.memory_space<vmem>>, %arg4: memref<2x32x96xf32, #tpu.memory_space<vmem>>, %arg5: memref<2x1x96xf32, #tpu.memory_space<vmem>>, %arg6: memref<2x32x32xf32, #tpu.memory_space<vmem>>, %arg7: memref<2x1x32xf32, #tpu.memory_space<vmem>>, %arg8: memref<2x32x32xf32, #tpu.memory_space<vmem>>, %arg9: memref<2x1x32xf32, #tpu.memory_space<vmem>>, %arg10: memref<2x32x64xf32, #tpu.memory_space<vmem>>, %arg11: memref<2x1x64xf32, #tpu.memory_space<vmem>>, %arg12: memref<2x32x32xf32, #tpu.memory_space<vmem>>, %arg13: memref<2x1x32xf32, #tpu.memory_space<vmem>>, %arg14: memref<2x1x32xf32, #tpu.memory_space<vmem>>, %arg15: memref<2x1x32xf32, #tpu.memory_space<vmem>>, %arg16: memref<2x1x32xf32, #tpu.memory_space<vmem>>, %arg17: memref<2x1x32xf32, #tpu.memory_space<vmem>>, %arg18: memref<2x1x32xf32, #tpu.memory_space<vmem>>, %arg19: memref<2x1x32xf32, #tpu.memory_space<vmem>>, %arg20: memref<2x32x64xf32, #tpu.memory_space<vmem>>, %arg21: memref<2x1x64xf32, #tpu.memory_space<vmem>>, %arg22: memref<2x64x32xf32, #tpu.memory_space<vmem>>, %arg23: memref<2x1x32xf32, #tpu.memory_space<vmem>>, %arg24: memref<2x8x32xf32, #tpu.memory_space<vmem>>) attributes {dimension_semantics = [], scalar_prefetch = 0 : i64, scratch_operands = 0 : i64, tpu.core_type = #tpu.core_type<tc>} {
    %c0 = arith.constant 0 : index
    %c0_0 = arith.constant 0 : index
    %c0_1 = arith.constant 0 : index
    %0 = vector.load %arg0[%c0, %c0_0, %c0_1] : memref<2x8x32xf32, #tpu.memory_space<vmem>>, vector<2x8x32xf32>
    %1 = vector.shape_cast %0 : vector<2x8x32xf32> to vector<16x32xf32>
    %c0_2 = arith.constant 0 : index
    %c0_3 = arith.constant 0 : index
    %c0_4 = arith.constant 0 : index
    %2 = vector.load %arg1[%c0_2, %c0_3, %c0_4] : memref<2x16x32xf32, #tpu.memory_space<vmem>>, vector<2x16x32xf32>
    %3 = vector.shape_cast %2 : vector<2x16x32xf32> to vector<32x32xf32>
    %c0_5 = arith.constant 0 : index
    %c0_6 = arith.constant 0 : index
    %4 = vector.load %arg2[%c0_5, %c0_6] : memref<2x8xf32, #tpu.memory_space<vmem>>, vector<2x8xf32>
    %c0_7 = arith.constant 0 : index
    %c0_8 = arith.constant 0 : index
    %5 = vector.load %arg3[%c0_7, %c0_8] : memref<2x16xf32, #tpu.memory_space<vmem>>, vector<2x16xf32>
    %c0_9 = arith.constant 0 : index
    %c0_10 = arith.constant 0 : index
    %c0_11 = arith.constant 0 : index
    %6 = vector.load %arg4[%c0_9, %c0_10, %c0_11] : memref<2x32x96xf32, #tpu.memory_space<vmem>>, vector<1x32x96xf32>
    %7 = vector.shape_cast %6 : vector<1x32x96xf32> to vector<32x96xf32>
    %cst = arith.constant dense<0.000000e+00> : vector<16x96xf32>
    %8 = tpu.matmul %1, %7, %cst {dimension_numbers = #tpu.dot_dimension_numbers<[1], [0], [0], [1], [0, 0, 1, 1], [], []>} : vector<16x32xf32>, vector<32x96xf32>, vector<16x96xf32> -> vector<16x96xf32>
    %c0_12 = arith.constant 0 : index
    %c0_13 = arith.constant 0 : index
    %c0_14 = arith.constant 0 : index
    %9 = vector.load %arg5[%c0_12, %c0_13, %c0_14] : memref<2x1x96xf32, #tpu.memory_space<vmem>>, vector<1x1x96xf32>
    %10 = vector.shape_cast %9 : vector<1x1x96xf32> to vector<1x96xf32>
    %11 = vector.broadcast %10 : vector<1x96xf32> to vector<16x96xf32>
    %12 = arith.addf %8, %11 : vector<16x96xf32>
    %13 = vector.extract_strided_slice %12 {offsets = [0, 0], sizes = [16, 32], strides = [1, 1]} : vector<16x96xf32> to vector<16x32xf32>
    %14 = vector.extract_strided_slice %12 {offsets = [0, 32], sizes = [16, 32], strides = [1, 1]} : vector<16x96xf32> to vector<16x32xf32>
    %15 = vector.extract_strided_slice %12 {offsets = [0, 64], sizes = [16, 32], strides = [1, 1]} : vector<16x96xf32> to vector<16x32xf32>
    %c0_15 = arith.constant 0 : index
    %c0_16 = arith.constant 0 : index
    %c0_17 = arith.constant 0 : index
    %16 = vector.load %arg6[%c0_15, %c0_16, %c0_17] : memref<2x32x32xf32, #tpu.memory_space<vmem>>, vector<1x32x32xf32>
    %17 = vector.shape_cast %16 : vector<1x32x32xf32> to vector<32x32xf32>
    %c0_18 = arith.constant 0 : index
    %c0_19 = arith.constant 0 : index
    %c0_20 = arith.constant 0 : index
    %18 = vector.load %arg7[%c0_18, %c0_19, %c0_20] : memref<2x1x32xf32, #tpu.memory_space<vmem>>, vector<1x1x32xf32>
    %19 = vector.shape_cast %18 : vector<1x1x32xf32> to vector<1x32xf32>
    %20 = vector.shape_cast %13 : vector<16x32xf32> to vector<2x8x32xf32>
    %21 = vector.shape_cast %14 : vector<16x32xf32> to vector<2x8x32xf32>
    %22 = vector.shape_cast %15 : vector<16x32xf32> to vector<2x8x32xf32>
    %23 = vector.shape_cast %4 : vector<2x8xf32> to vector<2x1x8xf32>
    %cst_21 = arith.constant 0.000000e+00 : f32
    %24 = vector.broadcast %cst_21 : f32 to vector<16x32xf32>
    %25 = vector.broadcast %19 : vector<1x32xf32> to vector<16x32xf32>
    %26 = arith.addf %24, %25 : vector<16x32xf32>
    %27 = vector.extract_strided_slice %20 {offsets = [0, 0, 0], sizes = [2, 8, 8], strides = [1, 1, 1]} : vector<2x8x32xf32> to vector<2x8x8xf32>
    %28 = vector.extract_strided_slice %21 {offsets = [0, 0, 0], sizes = [2, 8, 8], strides = [1, 1, 1]} : vector<2x8x32xf32> to vector<2x8x8xf32>
    "tpu.trace_start"() <{level = 10 : i32, message = "bqd,bkd->bqk"}> : () -> ()
    %cst_22 = arith.constant dense<0.000000e+00> : vector<2x8x8xf32>
    %29 = tpu.matmul %27, %28, %cst_22 {dimension_numbers = #tpu.dot_dimension_numbers<[2], [2], [1], [1], [0, 0, 0, 1, 1, 1], [0], [0]>} : vector<2x8x8xf32>, vector<2x8x8xf32>, vector<2x8x8xf32> -> vector<2x8x8xf32>
    "tpu.trace_stop"() : () -> ()
    %cst_23 = arith.constant 0.353553385 : f32
    %30 = vector.broadcast %cst_23 : f32 to vector<2x8x8xf32>
    %31 = arith.mulf %29, %30 : vector<2x8x8xf32>
    %32 = vector.broadcast %23 : vector<2x1x8xf32> to vector<2x8x8xf32>
    %33 = arith.addf %31, %32 : vector<2x8x8xf32>
    %cst_24 = arith.constant dense<0xFF800000> : vector<2x8xf32>
    %34 = vector.multi_reduction <maximumf>, %33, %cst_24 [2] : vector<2x8x8xf32> to vector<2x8xf32>
    %35 = vector.shape_cast %34 : vector<2x8xf32> to vector<2x8x1xf32>
    %36 = vector.broadcast %35 : vector<2x8x1xf32> to vector<2x8x8xf32>
    %37 = arith.subf %33, %36 : vector<2x8x8xf32>
    %38 = math.exp %37 : vector<2x8x8xf32>
    %cst_25 = arith.constant dense<0.000000e+00> : vector<2x8xf32>
    %39 = vector.multi_reduction <add>, %38, %cst_25 [2] : vector<2x8x8xf32> to vector<2x8xf32>
    %40 = vector.shape_cast %39 : vector<2x8xf32> to vector<2x8x1xf32>
    %41 = tpu.reciprocal %40 : vector<2x8x1xf32> -> vector<2x8x1xf32>
    %42 = vector.broadcast %41 : vector<2x8x1xf32> to vector<2x8x8xf32>
    %43 = arith.mulf %38, %42 : vector<2x8x8xf32>
    %44 = vector.extract_strided_slice %22 {offsets = [0, 0, 0], sizes = [2, 8, 8], strides = [1, 1, 1]} : vector<2x8x32xf32> to vector<2x8x8xf32>
    "tpu.trace_start"() <{level = 10 : i32, message = "bqk,bkd->bqd"}> : () -> ()
    %cst_26 = arith.constant dense<0.000000e+00> : vector<2x8x8xf32>
    %45 = tpu.matmul %43, %44, %cst_26 {dimension_numbers = #tpu.dot_dimension_numbers<[2], [1], [1], [2], [0, 0, 0, 1, 1, 2], [0], [0]>} : vector<2x8x8xf32>, vector<2x8x8xf32>, vector<2x8x8xf32> -> vector<2x8x8xf32>
    "tpu.trace_stop"() : () -> ()
    %46 = vector.shape_cast %45 : vector<2x8x8xf32> to vector<16x8xf32>
    %47 = vector.extract_strided_slice %17 {offsets = [0, 0], sizes = [8, 32], strides = [1, 1]} : vector<32x32xf32> to vector<8x32xf32>
    %cst_27 = arith.constant dense<0.000000e+00> : vector<16x32xf32>
    %48 = tpu.matmul %46, %47, %cst_27 {dimension_numbers = #tpu.dot_dimension_numbers<[1], [0], [0], [1], [0, 0, 1, 1], [], []>} : vector<16x8xf32>, vector<8x32xf32>, vector<16x32xf32> -> vector<16x32xf32>
    %49 = arith.addf %26, %48 : vector<16x32xf32>
    %50 = vector.extract_strided_slice %20 {offsets = [0, 0, 8], sizes = [2, 8, 8], strides = [1, 1, 1]} : vector<2x8x32xf32> to vector<2x8x8xf32>
    %51 = vector.extract_strided_slice %21 {offsets = [0, 0, 8], sizes = [2, 8, 8], strides = [1, 1, 1]} : vector<2x8x32xf32> to vector<2x8x8xf32>
    "tpu.trace_start"() <{level = 10 : i32, message = "bqd,bkd->bqk"}> : () -> ()
    %cst_28 = arith.constant dense<0.000000e+00> : vector<2x8x8xf32>
    %52 = tpu.matmul %50, %51, %cst_28 {dimension_numbers = #tpu.dot_dimension_numbers<[2], [2], [1], [1], [0, 0, 0, 1, 1, 1], [0], [0]>} : vector<2x8x8xf32>, vector<2x8x8xf32>, vector<2x8x8xf32> -> vector<2x8x8xf32>
    "tpu.trace_stop"() : () -> ()
    %cst_29 = arith.constant 0.353553385 : f32
    %53 = vector.broadcast %cst_29 : f32 to vector<2x8x8xf32>
    %54 = arith.mulf %52, %53 : vector<2x8x8xf32>
    %55 = vector.broadcast %23 : vector<2x1x8xf32> to vector<2x8x8xf32>
    %56 = arith.addf %54, %55 : vector<2x8x8xf32>
    %cst_30 = arith.constant dense<0xFF800000> : vector<2x8xf32>
    %57 = vector.multi_reduction <maximumf>, %56, %cst_30 [2] : vector<2x8x8xf32> to vector<2x8xf32>
    %58 = vector.shape_cast %57 : vector<2x8xf32> to vector<2x8x1xf32>
    %59 = vector.broadcast %58 : vector<2x8x1xf32> to vector<2x8x8xf32>
    %60 = arith.subf %56, %59 : vector<2x8x8xf32>
    %61 = math.exp %60 : vector<2x8x8xf32>
    %cst_31 = arith.constant dense<0.000000e+00> : vector<2x8xf32>
    %62 = vector.multi_reduction <add>, %61, %cst_31 [2] : vector<2x8x8xf32> to vector<2x8xf32>
    %63 = vector.shape_cast %62 : vector<2x8xf32> to vector<2x8x1xf32>
    %64 = tpu.reciprocal %63 : vector<2x8x1xf32> -> vector<2x8x1xf32>
    %65 = vector.broadcast %64 : vector<2x8x1xf32> to vector<2x8x8xf32>
    %66 = arith.mulf %61, %65 : vector<2x8x8xf32>
    %67 = vector.extract_strided_slice %22 {offsets = [0, 0, 8], sizes = [2, 8, 8], strides = [1, 1, 1]} : vector<2x8x32xf32> to vector<2x8x8xf32>
    "tpu.trace_start"() <{level = 10 : i32, message = "bqk,bkd->bqd"}> : () -> ()
    %cst_32 = arith.constant dense<0.000000e+00> : vector<2x8x8xf32>
    %68 = tpu.matmul %66, %67, %cst_32 {dimension_numbers = #tpu.dot_dimension_numbers<[2], [1], [1], [2], [0, 0, 0, 1, 1, 2], [0], [0]>} : vector<2x8x8xf32>, vector<2x8x8xf32>, vector<2x8x8xf32> -> vector<2x8x8xf32>
    "tpu.trace_stop"() : () -> ()
    %69 = vector.shape_cast %68 : vector<2x8x8xf32> to vector<16x8xf32>
    %70 = vector.extract_strided_slice %17 {offsets = [8, 0], sizes = [8, 32], strides = [1, 1]} : vector<32x32xf32> to vector<8x32xf32>
    %cst_33 = arith.constant dense<0.000000e+00> : vector<16x32xf32>
    %71 = tpu.matmul %69, %70, %cst_33 {dimension_numbers = #tpu.dot_dimension_numbers<[1], [0], [0], [1], [0, 0, 1, 1], [], []>} : vector<16x8xf32>, vector<8x32xf32>, vector<16x32xf32> -> vector<16x32xf32>
    %72 = arith.addf %49, %71 : vector<16x32xf32>
    %73 = vector.extract_strided_slice %20 {offsets = [0, 0, 16], sizes = [2, 8, 8], strides = [1, 1, 1]} : vector<2x8x32xf32> to vector<2x8x8xf32>
    %74 = vector.extract_strided_slice %21 {offsets = [0, 0, 16], sizes = [2, 8, 8], strides = [1, 1, 1]} : vector<2x8x32xf32> to vector<2x8x8xf32>
    "tpu.trace_start"() <{level = 10 : i32, message = "bqd,bkd->bqk"}> : () -> ()
    %cst_34 = arith.constant dense<0.000000e+00> : vector<2x8x8xf32>
    %75 = tpu.matmul %73, %74, %cst_34 {dimension_numbers = #tpu.dot_dimension_numbers<[2], [2], [1], [1], [0, 0, 0, 1, 1, 1], [0], [0]>} : vector<2x8x8xf32>, vector<2x8x8xf32>, vector<2x8x8xf32> -> vector<2x8x8xf32>
    "tpu.trace_stop"() : () -> ()
    %cst_35 = arith.constant 0.353553385 : f32
    %76 = vector.broadcast %cst_35 : f32 to vector<2x8x8xf32>
    %77 = arith.mulf %75, %76 : vector<2x8x8xf32>
    %78 = vector.broadcast %23 : vector<2x1x8xf32> to vector<2x8x8xf32>
    %79 = arith.addf %77, %78 : vector<2x8x8xf32>
    %cst_36 = arith.constant dense<0xFF800000> : vector<2x8xf32>
    %80 = vector.multi_reduction <maximumf>, %79, %cst_36 [2] : vector<2x8x8xf32> to vector<2x8xf32>
    %81 = vector.shape_cast %80 : vector<2x8xf32> to vector<2x8x1xf32>
    %82 = vector.broadcast %81 : vector<2x8x1xf32> to vector<2x8x8xf32>
    %83 = arith.subf %79, %82 : vector<2x8x8xf32>
    %84 = math.exp %83 : vector<2x8x8xf32>
    %cst_37 = arith.constant dense<0.000000e+00> : vector<2x8xf32>
    %85 = vector.multi_reduction <add>, %84, %cst_37 [2] : vector<2x8x8xf32> to vector<2x8xf32>
    %86 = vector.shape_cast %85 : vector<2x8xf32> to vector<2x8x1xf32>
    %87 = tpu.reciprocal %86 : vector<2x8x1xf32> -> vector<2x8x1xf32>
    %88 = vector.broadcast %87 : vector<2x8x1xf32> to vector<2x8x8xf32>
    %89 = arith.mulf %84, %88 : vector<2x8x8xf32>
    %90 = vector.extract_strided_slice %22 {offsets = [0, 0, 16], sizes = [2, 8, 8], strides = [1, 1, 1]} : vector<2x8x32xf32> to vector<2x8x8xf32>
    "tpu.trace_start"() <{level = 10 : i32, message = "bqk,bkd->bqd"}> : () -> ()
    %cst_38 = arith.constant dense<0.000000e+00> : vector<2x8x8xf32>
    %91 = tpu.matmul %89, %90, %cst_38 {dimension_numbers = #tpu.dot_dimension_numbers<[2], [1], [1], [2], [0, 0, 0, 1, 1, 2], [0], [0]>} : vector<2x8x8xf32>, vector<2x8x8xf32>, vector<2x8x8xf32> -> vector<2x8x8xf32>
    "tpu.trace_stop"() : () -> ()
    %92 = vector.shape_cast %91 : vector<2x8x8xf32> to vector<16x8xf32>
    %93 = vector.extract_strided_slice %17 {offsets = [16, 0], sizes = [8, 32], strides = [1, 1]} : vector<32x32xf32> to vector<8x32xf32>
    %cst_39 = arith.constant dense<0.000000e+00> : vector<16x32xf32>
    %94 = tpu.matmul %92, %93, %cst_39 {dimension_numbers = #tpu.dot_dimension_numbers<[1], [0], [0], [1], [0, 0, 1, 1], [], []>} : vector<16x8xf32>, vector<8x32xf32>, vector<16x32xf32> -> vector<16x32xf32>
    %95 = arith.addf %72, %94 : vector<16x32xf32>
    %96 = vector.extract_strided_slice %20 {offsets = [0, 0, 24], sizes = [2, 8, 8], strides = [1, 1, 1]} : vector<2x8x32xf32> to vector<2x8x8xf32>
    %97 = vector.extract_strided_slice %21 {offsets = [0, 0, 24], sizes = [2, 8, 8], strides = [1, 1, 1]} : vector<2x8x32xf32> to vector<2x8x8xf32>
    "tpu.trace_start"() <{level = 10 : i32, message = "bqd,bkd->bqk"}> : () -> ()
    %cst_40 = arith.constant dense<0.000000e+00> : vector<2x8x8xf32>
    %98 = tpu.matmul %96, %97, %cst_40 {dimension_numbers = #tpu.dot_dimension_numbers<[2], [2], [1], [1], [0, 0, 0, 1, 1, 1], [0], [0]>} : vector<2x8x8xf32>, vector<2x8x8xf32>, vector<2x8x8xf32> -> vector<2x8x8xf32>
    "tpu.trace_stop"() : () -> ()
    %cst_41 = arith.constant 0.353553385 : f32
    %99 = vector.broadcast %cst_41 : f32 to vector<2x8x8xf32>
    %100 = arith.mulf %98, %99 : vector<2x8x8xf32>
    %101 = vector.broadcast %23 : vector<2x1x8xf32> to vector<2x8x8xf32>
    %102 = arith.addf %100, %101 : vector<2x8x8xf32>
    %cst_42 = arith.constant dense<0xFF800000> : vector<2x8xf32>
    %103 = vector.multi_reduction <maximumf>, %102, %cst_42 [2] : vector<2x8x8xf32> to vector<2x8xf32>
    %104 = vector.shape_cast %103 : vector<2x8xf32> to vector<2x8x1xf32>
    %105 = vector.broadcast %104 : vector<2x8x1xf32> to vector<2x8x8xf32>
    %106 = arith.subf %102, %105 : vector<2x8x8xf32>
    %107 = math.exp %106 : vector<2x8x8xf32>
    %cst_43 = arith.constant dense<0.000000e+00> : vector<2x8xf32>
    %108 = vector.multi_reduction <add>, %107, %cst_43 [2] : vector<2x8x8xf32> to vector<2x8xf32>
    %109 = vector.shape_cast %108 : vector<2x8xf32> to vector<2x8x1xf32>
    %110 = tpu.reciprocal %109 : vector<2x8x1xf32> -> vector<2x8x1xf32>
    %111 = vector.broadcast %110 : vector<2x8x1xf32> to vector<2x8x8xf32>
    %112 = arith.mulf %107, %111 : vector<2x8x8xf32>
    %113 = vector.extract_strided_slice %22 {offsets = [0, 0, 24], sizes = [2, 8, 8], strides = [1, 1, 1]} : vector<2x8x32xf32> to vector<2x8x8xf32>
    "tpu.trace_start"() <{level = 10 : i32, message = "bqk,bkd->bqd"}> : () -> ()
    %cst_44 = arith.constant dense<0.000000e+00> : vector<2x8x8xf32>
    %114 = tpu.matmul %112, %113, %cst_44 {dimension_numbers = #tpu.dot_dimension_numbers<[2], [1], [1], [2], [0, 0, 0, 1, 1, 2], [0], [0]>} : vector<2x8x8xf32>, vector<2x8x8xf32>, vector<2x8x8xf32> -> vector<2x8x8xf32>
    "tpu.trace_stop"() : () -> ()
    %115 = vector.shape_cast %114 : vector<2x8x8xf32> to vector<16x8xf32>
    %116 = vector.extract_strided_slice %17 {offsets = [24, 0], sizes = [8, 32], strides = [1, 1]} : vector<32x32xf32> to vector<8x32xf32>
    %cst_45 = arith.constant dense<0.000000e+00> : vector<16x32xf32>
    %117 = tpu.matmul %115, %116, %cst_45 {dimension_numbers = #tpu.dot_dimension_numbers<[1], [0], [0], [1], [0, 0, 1, 1], [], []>} : vector<16x8xf32>, vector<8x32xf32>, vector<16x32xf32> -> vector<16x32xf32>
    %118 = arith.addf %95, %117 : vector<16x32xf32>
    %119 = arith.addf %1, %118 : vector<16x32xf32>
    %c0_46 = arith.constant 0 : index
    %c0_47 = arith.constant 0 : index
    %c0_48 = arith.constant 0 : index
    %120 = vector.load %arg14[%c0_46, %c0_47, %c0_48] : memref<2x1x32xf32, #tpu.memory_space<vmem>>, vector<1x1x32xf32>
    %121 = vector.shape_cast %120 : vector<1x1x32xf32> to vector<1x32xf32>
    %c0_49 = arith.constant 0 : index
    %c0_50 = arith.constant 0 : index
    %c0_51 = arith.constant 0 : index
    %122 = vector.load %arg15[%c0_49, %c0_50, %c0_51] : memref<2x1x32xf32, #tpu.memory_space<vmem>>, vector<1x1x32xf32>
    %123 = vector.shape_cast %122 : vector<1x1x32xf32> to vector<1x32xf32>
    %cst_52 = arith.constant dense<0.000000e+00> : vector<16xf32>
    %124 = vector.multi_reduction <add>, %119, %cst_52 [1] : vector<16x32xf32> to vector<16xf32>
    %125 = vector.shape_cast %124 : vector<16xf32> to vector<16x1xf32>
    %cst_53 = arith.constant 3.200000e+01 : f32
    %126 = vector.broadcast %cst_53 : f32 to vector<16x1xf32>
    %127 = arith.divf %125, %126 : vector<16x1xf32>
    %128 = vector.broadcast %127 : vector<16x1xf32> to vector<16x32xf32>
    %129 = arith.subf %119, %128 : vector<16x32xf32>
    %130 = arith.mulf %129, %129 : vector<16x32xf32>
    %cst_54 = arith.constant dense<0.000000e+00> : vector<16xf32>
    %131 = vector.multi_reduction <add>, %130, %cst_54 [1] : vector<16x32xf32> to vector<16xf32>
    %132 = vector.shape_cast %131 : vector<16xf32> to vector<16x1xf32>
    %cst_55 = arith.constant 3.200000e+01 : f32
    %133 = vector.broadcast %cst_55 : f32 to vector<16x1xf32>
    %134 = arith.divf %132, %133 : vector<16x1xf32>
    %135 = vector.broadcast %127 : vector<16x1xf32> to vector<16x32xf32>
    %136 = arith.subf %119, %135 : vector<16x32xf32>
    %cst_56 = arith.constant 9.99999974E-6 : f32
    %137 = vector.broadcast %cst_56 : f32 to vector<16x1xf32>
    %138 = arith.addf %134, %137 : vector<16x1xf32>
    %139 = math.rsqrt %138 : vector<16x1xf32>
    %140 = vector.broadcast %139 : vector<16x1xf32> to vector<16x32xf32>
    %141 = arith.mulf %136, %140 : vector<16x32xf32>
    %142 = vector.broadcast %121 : vector<1x32xf32> to vector<16x32xf32>
    %143 = arith.mulf %141, %142 : vector<16x32xf32>
    %144 = vector.broadcast %123 : vector<1x32xf32> to vector<16x32xf32>
    %145 = arith.addf %143, %144 : vector<16x32xf32>
    %c0_57 = arith.constant 0 : index
    %c0_58 = arith.constant 0 : index
    %c0_59 = arith.constant 0 : index
    %146 = vector.load %arg8[%c0_57, %c0_58, %c0_59] : memref<2x32x32xf32, #tpu.memory_space<vmem>>, vector<1x32x32xf32>
    %147 = vector.shape_cast %146 : vector<1x32x32xf32> to vector<32x32xf32>
    %cst_60 = arith.constant dense<0.000000e+00> : vector<16x32xf32>
    %148 = tpu.matmul %145, %147, %cst_60 {dimension_numbers = #tpu.dot_dimension_numbers<[1], [0], [0], [1], [0, 0, 1, 1], [], []>} : vector<16x32xf32>, vector<32x32xf32>, vector<16x32xf32> -> vector<16x32xf32>
    %c0_61 = arith.constant 0 : index
    %c0_62 = arith.constant 0 : index
    %c0_63 = arith.constant 0 : index
    %149 = vector.load %arg9[%c0_61, %c0_62, %c0_63] : memref<2x1x32xf32, #tpu.memory_space<vmem>>, vector<1x1x32xf32>
    %150 = vector.shape_cast %149 : vector<1x1x32xf32> to vector<1x32xf32>
    %151 = vector.broadcast %150 : vector<1x32xf32> to vector<16x32xf32>
    %152 = arith.addf %148, %151 : vector<16x32xf32>
    %c0_64 = arith.constant 0 : index
    %c0_65 = arith.constant 0 : index
    %c0_66 = arith.constant 0 : index
    %153 = vector.load %arg10[%c0_64, %c0_65, %c0_66] : memref<2x32x64xf32, #tpu.memory_space<vmem>>, vector<1x32x64xf32>
    %154 = vector.shape_cast %153 : vector<1x32x64xf32> to vector<32x64xf32>
    %cst_67 = arith.constant dense<0.000000e+00> : vector<32x64xf32>
    %155 = tpu.matmul %3, %154, %cst_67 {dimension_numbers = #tpu.dot_dimension_numbers<[1], [0], [0], [1], [0, 0, 1, 1], [], []>} : vector<32x32xf32>, vector<32x64xf32>, vector<32x64xf32> -> vector<32x64xf32>
    %c0_68 = arith.constant 0 : index
    %c0_69 = arith.constant 0 : index
    %c0_70 = arith.constant 0 : index
    %156 = vector.load %arg11[%c0_68, %c0_69, %c0_70] : memref<2x1x64xf32, #tpu.memory_space<vmem>>, vector<1x1x64xf32>
    %157 = vector.shape_cast %156 : vector<1x1x64xf32> to vector<1x64xf32>
    %158 = vector.broadcast %157 : vector<1x64xf32> to vector<32x64xf32>
    %159 = arith.addf %155, %158 : vector<32x64xf32>
    %160 = vector.extract_strided_slice %159 {offsets = [0, 0], sizes = [32, 32], strides = [1, 1]} : vector<32x64xf32> to vector<32x32xf32>
    %161 = vector.extract_strided_slice %159 {offsets = [0, 32], sizes = [32, 32], strides = [1, 1]} : vector<32x64xf32> to vector<32x32xf32>
    %c0_71 = arith.constant 0 : index
    %c0_72 = arith.constant 0 : index
    %c0_73 = arith.constant 0 : index
    %162 = vector.load %arg12[%c0_71, %c0_72, %c0_73] : memref<2x32x32xf32, #tpu.memory_space<vmem>>, vector<1x32x32xf32>
    %163 = vector.shape_cast %162 : vector<1x32x32xf32> to vector<32x32xf32>
    %c0_74 = arith.constant 0 : index
    %c0_75 = arith.constant 0 : index
    %c0_76 = arith.constant 0 : index
    %164 = vector.load %arg13[%c0_74, %c0_75, %c0_76] : memref<2x1x32xf32, #tpu.memory_space<vmem>>, vector<1x1x32xf32>
    %165 = vector.shape_cast %164 : vector<1x1x32xf32> to vector<1x32xf32>
    %166 = vector.shape_cast %152 : vector<16x32xf32> to vector<2x8x32xf32>
    %167 = vector.shape_cast %160 : vector<32x32xf32> to vector<2x16x32xf32>
    %168 = vector.shape_cast %161 : vector<32x32xf32> to vector<2x16x32xf32>
    %169 = vector.shape_cast %5 : vector<2x16xf32> to vector<2x1x16xf32>
    %cst_77 = arith.constant 0.000000e+00 : f32
    %170 = vector.broadcast %cst_77 : f32 to vector<16x32xf32>
    %171 = vector.broadcast %165 : vector<1x32xf32> to vector<16x32xf32>
    %172 = arith.addf %170, %171 : vector<16x32xf32>
    %173 = vector.extract_strided_slice %166 {offsets = [0, 0, 0], sizes = [2, 8, 8], strides = [1, 1, 1]} : vector<2x8x32xf32> to vector<2x8x8xf32>
    %174 = vector.extract_strided_slice %167 {offsets = [0, 0, 0], sizes = [2, 16, 8], strides = [1, 1, 1]} : vector<2x16x32xf32> to vector<2x16x8xf32>
    "tpu.trace_start"() <{level = 10 : i32, message = "bqd,bkd->bqk"}> : () -> ()
    %cst_78 = arith.constant dense<0.000000e+00> : vector<2x8x16xf32>
    %175 = tpu.matmul %173, %174, %cst_78 {dimension_numbers = #tpu.dot_dimension_numbers<[2], [2], [1], [1], [0, 0, 0, 1, 1, 1], [0], [0]>} : vector<2x8x8xf32>, vector<2x16x8xf32>, vector<2x8x16xf32> -> vector<2x8x16xf32>
    "tpu.trace_stop"() : () -> ()
    %cst_79 = arith.constant 0.353553385 : f32
    %176 = vector.broadcast %cst_79 : f32 to vector<2x8x16xf32>
    %177 = arith.mulf %175, %176 : vector<2x8x16xf32>
    %178 = vector.broadcast %169 : vector<2x1x16xf32> to vector<2x8x16xf32>
    %179 = arith.addf %177, %178 : vector<2x8x16xf32>
    %cst_80 = arith.constant dense<0xFF800000> : vector<2x8xf32>
    %180 = vector.multi_reduction <maximumf>, %179, %cst_80 [2] : vector<2x8x16xf32> to vector<2x8xf32>
    %181 = vector.shape_cast %180 : vector<2x8xf32> to vector<2x8x1xf32>
    %182 = vector.broadcast %181 : vector<2x8x1xf32> to vector<2x8x16xf32>
    %183 = arith.subf %179, %182 : vector<2x8x16xf32>
    %184 = math.exp %183 : vector<2x8x16xf32>
    %cst_81 = arith.constant dense<0.000000e+00> : vector<2x8xf32>
    %185 = vector.multi_reduction <add>, %184, %cst_81 [2] : vector<2x8x16xf32> to vector<2x8xf32>
    %186 = vector.shape_cast %185 : vector<2x8xf32> to vector<2x8x1xf32>
    %187 = tpu.reciprocal %186 : vector<2x8x1xf32> -> vector<2x8x1xf32>
    %188 = vector.broadcast %187 : vector<2x8x1xf32> to vector<2x8x16xf32>
    %189 = arith.mulf %184, %188 : vector<2x8x16xf32>
    %190 = vector.extract_strided_slice %168 {offsets = [0, 0, 0], sizes = [2, 16, 8], strides = [1, 1, 1]} : vector<2x16x32xf32> to vector<2x16x8xf32>
    "tpu.trace_start"() <{level = 10 : i32, message = "bqk,bkd->bqd"}> : () -> ()
    %cst_82 = arith.constant dense<0.000000e+00> : vector<2x8x8xf32>
    %191 = tpu.matmul %189, %190, %cst_82 {dimension_numbers = #tpu.dot_dimension_numbers<[2], [1], [1], [2], [0, 0, 0, 1, 1, 2], [0], [0]>} : vector<2x8x16xf32>, vector<2x16x8xf32>, vector<2x8x8xf32> -> vector<2x8x8xf32>
    "tpu.trace_stop"() : () -> ()
    %192 = vector.shape_cast %191 : vector<2x8x8xf32> to vector<16x8xf32>
    %193 = vector.extract_strided_slice %163 {offsets = [0, 0], sizes = [8, 32], strides = [1, 1]} : vector<32x32xf32> to vector<8x32xf32>
    %cst_83 = arith.constant dense<0.000000e+00> : vector<16x32xf32>
    %194 = tpu.matmul %192, %193, %cst_83 {dimension_numbers = #tpu.dot_dimension_numbers<[1], [0], [0], [1], [0, 0, 1, 1], [], []>} : vector<16x8xf32>, vector<8x32xf32>, vector<16x32xf32> -> vector<16x32xf32>
    %195 = arith.addf %172, %194 : vector<16x32xf32>
    %196 = vector.extract_strided_slice %166 {offsets = [0, 0, 8], sizes = [2, 8, 8], strides = [1, 1, 1]} : vector<2x8x32xf32> to vector<2x8x8xf32>
    %197 = vector.extract_strided_slice %167 {offsets = [0, 0, 8], sizes = [2, 16, 8], strides = [1, 1, 1]} : vector<2x16x32xf32> to vector<2x16x8xf32>
    "tpu.trace_start"() <{level = 10 : i32, message = "bqd,bkd->bqk"}> : () -> ()
    %cst_84 = arith.constant dense<0.000000e+00> : vector<2x8x16xf32>
    %198 = tpu.matmul %196, %197, %cst_84 {dimension_numbers = #tpu.dot_dimension_numbers<[2], [2], [1], [1], [0, 0, 0, 1, 1, 1], [0], [0]>} : vector<2x8x8xf32>, vector<2x16x8xf32>, vector<2x8x16xf32> -> vector<2x8x16xf32>
    "tpu.trace_stop"() : () -> ()
    %cst_85 = arith.constant 0.353553385 : f32
    %199 = vector.broadcast %cst_85 : f32 to vector<2x8x16xf32>
    %200 = arith.mulf %198, %199 : vector<2x8x16xf32>
    %201 = vector.broadcast %169 : vector<2x1x16xf32> to vector<2x8x16xf32>
    %202 = arith.addf %200, %201 : vector<2x8x16xf32>
    %cst_86 = arith.constant dense<0xFF800000> : vector<2x8xf32>
    %203 = vector.multi_reduction <maximumf>, %202, %cst_86 [2] : vector<2x8x16xf32> to vector<2x8xf32>
    %204 = vector.shape_cast %203 : vector<2x8xf32> to vector<2x8x1xf32>
    %205 = vector.broadcast %204 : vector<2x8x1xf32> to vector<2x8x16xf32>
    %206 = arith.subf %202, %205 : vector<2x8x16xf32>
    %207 = math.exp %206 : vector<2x8x16xf32>
    %cst_87 = arith.constant dense<0.000000e+00> : vector<2x8xf32>
    %208 = vector.multi_reduction <add>, %207, %cst_87 [2] : vector<2x8x16xf32> to vector<2x8xf32>
    %209 = vector.shape_cast %208 : vector<2x8xf32> to vector<2x8x1xf32>
    %210 = tpu.reciprocal %209 : vector<2x8x1xf32> -> vector<2x8x1xf32>
    %211 = vector.broadcast %210 : vector<2x8x1xf32> to vector<2x8x16xf32>
    %212 = arith.mulf %207, %211 : vector<2x8x16xf32>
    %213 = vector.extract_strided_slice %168 {offsets = [0, 0, 8], sizes = [2, 16, 8], strides = [1, 1, 1]} : vector<2x16x32xf32> to vector<2x16x8xf32>
    "tpu.trace_start"() <{level = 10 : i32, message = "bqk,bkd->bqd"}> : () -> ()
    %cst_88 = arith.constant dense<0.000000e+00> : vector<2x8x8xf32>
    %214 = tpu.matmul %212, %213, %cst_88 {dimension_numbers = #tpu.dot_dimension_numbers<[2], [1], [1], [2], [0, 0, 0, 1, 1, 2], [0], [0]>} : vector<2x8x16xf32>, vector<2x16x8xf32>, vector<2x8x8xf32> -> vector<2x8x8xf32>
    "tpu.trace_stop"() : () -> ()
    %215 = vector.shape_cast %214 : vector<2x8x8xf32> to vector<16x8xf32>
    %216 = vector.extract_strided_slice %163 {offsets = [8, 0], sizes = [8, 32], strides = [1, 1]} : vector<32x32xf32> to vector<8x32xf32>
    %cst_89 = arith.constant dense<0.000000e+00> : vector<16x32xf32>
    %217 = tpu.matmul %215, %216, %cst_89 {dimension_numbers = #tpu.dot_dimension_numbers<[1], [0], [0], [1], [0, 0, 1, 1], [], []>} : vector<16x8xf32>, vector<8x32xf32>, vector<16x32xf32> -> vector<16x32xf32>
    %218 = arith.addf %195, %217 : vector<16x32xf32>
    %219 = vector.extract_strided_slice %166 {offsets = [0, 0, 16], sizes = [2, 8, 8], strides = [1, 1, 1]} : vector<2x8x32xf32> to vector<2x8x8xf32>
    %220 = vector.extract_strided_slice %167 {offsets = [0, 0, 16], sizes = [2, 16, 8], strides = [1, 1, 1]} : vector<2x16x32xf32> to vector<2x16x8xf32>
    "tpu.trace_start"() <{level = 10 : i32, message = "bqd,bkd->bqk"}> : () -> ()
    %cst_90 = arith.constant dense<0.000000e+00> : vector<2x8x16xf32>
    %221 = tpu.matmul %219, %220, %cst_90 {dimension_numbers = #tpu.dot_dimension_numbers<[2], [2], [1], [1], [0, 0, 0, 1, 1, 1], [0], [0]>} : vector<2x8x8xf32>, vector<2x16x8xf32>, vector<2x8x16xf32> -> vector<2x8x16xf32>
    "tpu.trace_stop"() : () -> ()
    %cst_91 = arith.constant 0.353553385 : f32
    %222 = vector.broadcast %cst_91 : f32 to vector<2x8x16xf32>
    %223 = arith.mulf %221, %222 : vector<2x8x16xf32>
    %224 = vector.broadcast %169 : vector<2x1x16xf32> to vector<2x8x16xf32>
    %225 = arith.addf %223, %224 : vector<2x8x16xf32>
    %cst_92 = arith.constant dense<0xFF800000> : vector<2x8xf32>
    %226 = vector.multi_reduction <maximumf>, %225, %cst_92 [2] : vector<2x8x16xf32> to vector<2x8xf32>
    %227 = vector.shape_cast %226 : vector<2x8xf32> to vector<2x8x1xf32>
    %228 = vector.broadcast %227 : vector<2x8x1xf32> to vector<2x8x16xf32>
    %229 = arith.subf %225, %228 : vector<2x8x16xf32>
    %230 = math.exp %229 : vector<2x8x16xf32>
    %cst_93 = arith.constant dense<0.000000e+00> : vector<2x8xf32>
    %231 = vector.multi_reduction <add>, %230, %cst_93 [2] : vector<2x8x16xf32> to vector<2x8xf32>
    %232 = vector.shape_cast %231 : vector<2x8xf32> to vector<2x8x1xf32>
    %233 = tpu.reciprocal %232 : vector<2x8x1xf32> -> vector<2x8x1xf32>
    %234 = vector.broadcast %233 : vector<2x8x1xf32> to vector<2x8x16xf32>
    %235 = arith.mulf %230, %234 : vector<2x8x16xf32>
    %236 = vector.extract_strided_slice %168 {offsets = [0, 0, 16], sizes = [2, 16, 8], strides = [1, 1, 1]} : vector<2x16x32xf32> to vector<2x16x8xf32>
    "tpu.trace_start"() <{level = 10 : i32, message = "bqk,bkd->bqd"}> : () -> ()
    %cst_94 = arith.constant dense<0.000000e+00> : vector<2x8x8xf32>
    %237 = tpu.matmul %235, %236, %cst_94 {dimension_numbers = #tpu.dot_dimension_numbers<[2], [1], [1], [2], [0, 0, 0, 1, 1, 2], [0], [0]>} : vector<2x8x16xf32>, vector<2x16x8xf32>, vector<2x8x8xf32> -> vector<2x8x8xf32>
    "tpu.trace_stop"() : () -> ()
    %238 = vector.shape_cast %237 : vector<2x8x8xf32> to vector<16x8xf32>
    %239 = vector.extract_strided_slice %163 {offsets = [16, 0], sizes = [8, 32], strides = [1, 1]} : vector<32x32xf32> to vector<8x32xf32>
    %cst_95 = arith.constant dense<0.000000e+00> : vector<16x32xf32>
    %240 = tpu.matmul %238, %239, %cst_95 {dimension_numbers = #tpu.dot_dimension_numbers<[1], [0], [0], [1], [0, 0, 1, 1], [], []>} : vector<16x8xf32>, vector<8x32xf32>, vector<16x32xf32> -> vector<16x32xf32>
    %241 = arith.addf %218, %240 : vector<16x32xf32>
    %242 = vector.extract_strided_slice %166 {offsets = [0, 0, 24], sizes = [2, 8, 8], strides = [1, 1, 1]} : vector<2x8x32xf32> to vector<2x8x8xf32>
    %243 = vector.extract_strided_slice %167 {offsets = [0, 0, 24], sizes = [2, 16, 8], strides = [1, 1, 1]} : vector<2x16x32xf32> to vector<2x16x8xf32>
    "tpu.trace_start"() <{level = 10 : i32, message = "bqd,bkd->bqk"}> : () -> ()
    %cst_96 = arith.constant dense<0.000000e+00> : vector<2x8x16xf32>
    %244 = tpu.matmul %242, %243, %cst_96 {dimension_numbers = #tpu.dot_dimension_numbers<[2], [2], [1], [1], [0, 0, 0, 1, 1, 1], [0], [0]>} : vector<2x8x8xf32>, vector<2x16x8xf32>, vector<2x8x16xf32> -> vector<2x8x16xf32>
    "tpu.trace_stop"() : () -> ()
    %cst_97 = arith.constant 0.353553385 : f32
    %245 = vector.broadcast %cst_97 : f32 to vector<2x8x16xf32>
    %246 = arith.mulf %244, %245 : vector<2x8x16xf32>
    %247 = vector.broadcast %169 : vector<2x1x16xf32> to vector<2x8x16xf32>
    %248 = arith.addf %246, %247 : vector<2x8x16xf32>
    %cst_98 = arith.constant dense<0xFF800000> : vector<2x8xf32>
    %249 = vector.multi_reduction <maximumf>, %248, %cst_98 [2] : vector<2x8x16xf32> to vector<2x8xf32>
    %250 = vector.shape_cast %249 : vector<2x8xf32> to vector<2x8x1xf32>
    %251 = vector.broadcast %250 : vector<2x8x1xf32> to vector<2x8x16xf32>
    %252 = arith.subf %248, %251 : vector<2x8x16xf32>
    %253 = math.exp %252 : vector<2x8x16xf32>
    %cst_99 = arith.constant dense<0.000000e+00> : vector<2x8xf32>
    %254 = vector.multi_reduction <add>, %253, %cst_99 [2] : vector<2x8x16xf32> to vector<2x8xf32>
    %255 = vector.shape_cast %254 : vector<2x8xf32> to vector<2x8x1xf32>
    %256 = tpu.reciprocal %255 : vector<2x8x1xf32> -> vector<2x8x1xf32>
    %257 = vector.broadcast %256 : vector<2x8x1xf32> to vector<2x8x16xf32>
    %258 = arith.mulf %253, %257 : vector<2x8x16xf32>
    %259 = vector.extract_strided_slice %168 {offsets = [0, 0, 24], sizes = [2, 16, 8], strides = [1, 1, 1]} : vector<2x16x32xf32> to vector<2x16x8xf32>
    "tpu.trace_start"() <{level = 10 : i32, message = "bqk,bkd->bqd"}> : () -> ()
    %cst_100 = arith.constant dense<0.000000e+00> : vector<2x8x8xf32>
    %260 = tpu.matmul %258, %259, %cst_100 {dimension_numbers = #tpu.dot_dimension_numbers<[2], [1], [1], [2], [0, 0, 0, 1, 1, 2], [0], [0]>} : vector<2x8x16xf32>, vector<2x16x8xf32>, vector<2x8x8xf32> -> vector<2x8x8xf32>
    "tpu.trace_stop"() : () -> ()
    %261 = vector.shape_cast %260 : vector<2x8x8xf32> to vector<16x8xf32>
    %262 = vector.extract_strided_slice %163 {offsets = [24, 0], sizes = [8, 32], strides = [1, 1]} : vector<32x32xf32> to vector<8x32xf32>
    %cst_101 = arith.constant dense<0.000000e+00> : vector<16x32xf32>
    %263 = tpu.matmul %261, %262, %cst_101 {dimension_numbers = #tpu.dot_dimension_numbers<[1], [0], [0], [1], [0, 0, 1, 1], [], []>} : vector<16x8xf32>, vector<8x32xf32>, vector<16x32xf32> -> vector<16x32xf32>
    %264 = arith.addf %241, %263 : vector<16x32xf32>
    %265 = arith.addf %145, %264 : vector<16x32xf32>
    %c0_102 = arith.constant 0 : index
    %c0_103 = arith.constant 0 : index
    %c0_104 = arith.constant 0 : index
    %266 = vector.load %arg16[%c0_102, %c0_103, %c0_104] : memref<2x1x32xf32, #tpu.memory_space<vmem>>, vector<1x1x32xf32>
    %267 = vector.shape_cast %266 : vector<1x1x32xf32> to vector<1x32xf32>
    %c0_105 = arith.constant 0 : index
    %c0_106 = arith.constant 0 : index
    %c0_107 = arith.constant 0 : index
    %268 = vector.load %arg17[%c0_105, %c0_106, %c0_107] : memref<2x1x32xf32, #tpu.memory_space<vmem>>, vector<1x1x32xf32>
    %269 = vector.shape_cast %268 : vector<1x1x32xf32> to vector<1x32xf32>
    %cst_108 = arith.constant dense<0.000000e+00> : vector<16xf32>
    %270 = vector.multi_reduction <add>, %265, %cst_108 [1] : vector<16x32xf32> to vector<16xf32>
    %271 = vector.shape_cast %270 : vector<16xf32> to vector<16x1xf32>
    %cst_109 = arith.constant 3.200000e+01 : f32
    %272 = vector.broadcast %cst_109 : f32 to vector<16x1xf32>
    %273 = arith.divf %271, %272 : vector<16x1xf32>
    %274 = vector.broadcast %273 : vector<16x1xf32> to vector<16x32xf32>
    %275 = arith.subf %265, %274 : vector<16x32xf32>
    %276 = arith.mulf %275, %275 : vector<16x32xf32>
    %cst_110 = arith.constant dense<0.000000e+00> : vector<16xf32>
    %277 = vector.multi_reduction <add>, %276, %cst_110 [1] : vector<16x32xf32> to vector<16xf32>
    %278 = vector.shape_cast %277 : vector<16xf32> to vector<16x1xf32>
    %cst_111 = arith.constant 3.200000e+01 : f32
    %279 = vector.broadcast %cst_111 : f32 to vector<16x1xf32>
    %280 = arith.divf %278, %279 : vector<16x1xf32>
    %281 = vector.broadcast %273 : vector<16x1xf32> to vector<16x32xf32>
    %282 = arith.subf %265, %281 : vector<16x32xf32>
    %cst_112 = arith.constant 9.99999974E-6 : f32
    %283 = vector.broadcast %cst_112 : f32 to vector<16x1xf32>
    %284 = arith.addf %280, %283 : vector<16x1xf32>
    %285 = math.rsqrt %284 : vector<16x1xf32>
    %286 = vector.broadcast %285 : vector<16x1xf32> to vector<16x32xf32>
    %287 = arith.mulf %282, %286 : vector<16x32xf32>
    %288 = vector.broadcast %267 : vector<1x32xf32> to vector<16x32xf32>
    %289 = arith.mulf %287, %288 : vector<16x32xf32>
    %290 = vector.broadcast %269 : vector<1x32xf32> to vector<16x32xf32>
    %291 = arith.addf %289, %290 : vector<16x32xf32>
    %c0_113 = arith.constant 0 : index
    %c0_114 = arith.constant 0 : index
    %c0_115 = arith.constant 0 : index
    %292 = vector.load %arg20[%c0_113, %c0_114, %c0_115] : memref<2x32x64xf32, #tpu.memory_space<vmem>>, vector<1x32x64xf32>
    %293 = vector.shape_cast %292 : vector<1x32x64xf32> to vector<32x64xf32>
    %cst_116 = arith.constant dense<0.000000e+00> : vector<16x64xf32>
    %294 = tpu.matmul %291, %293, %cst_116 {dimension_numbers = #tpu.dot_dimension_numbers<[1], [0], [0], [1], [0, 0, 1, 1], [], []>} : vector<16x32xf32>, vector<32x64xf32>, vector<16x64xf32> -> vector<16x64xf32>
    %c0_117 = arith.constant 0 : index
    %c0_118 = arith.constant 0 : index
    %c0_119 = arith.constant 0 : index
    %295 = vector.load %arg21[%c0_117, %c0_118, %c0_119] : memref<2x1x64xf32, #tpu.memory_space<vmem>>, vector<1x1x64xf32>
    %296 = vector.shape_cast %295 : vector<1x1x64xf32> to vector<1x64xf32>
    %297 = vector.broadcast %296 : vector<1x64xf32> to vector<16x64xf32>
    %298 = arith.addf %294, %297 : vector<16x64xf32>
    %cst_120 = arith.constant 0.000000e+00 : f32
    %299 = vector.broadcast %cst_120 : f32 to vector<16x64xf32>
    %300 = arith.maximumf %298, %299 : vector<16x64xf32>
    %c0_121 = arith.constant 0 : index
    %c0_122 = arith.constant 0 : index
    %c0_123 = arith.constant 0 : index
    %301 = vector.load %arg22[%c0_121, %c0_122, %c0_123] : memref<2x64x32xf32, #tpu.memory_space<vmem>>, vector<1x64x32xf32>
    %302 = vector.shape_cast %301 : vector<1x64x32xf32> to vector<64x32xf32>
    %cst_124 = arith.constant dense<0.000000e+00> : vector<16x32xf32>
    %303 = tpu.matmul %300, %302, %cst_124 {dimension_numbers = #tpu.dot_dimension_numbers<[1], [0], [0], [1], [0, 0, 1, 1], [], []>} : vector<16x64xf32>, vector<64x32xf32>, vector<16x32xf32> -> vector<16x32xf32>
    %c0_125 = arith.constant 0 : index
    %c0_126 = arith.constant 0 : index
    %c0_127 = arith.constant 0 : index
    %304 = vector.load %arg23[%c0_125, %c0_126, %c0_127] : memref<2x1x32xf32, #tpu.memory_space<vmem>>, vector<1x1x32xf32>
    %305 = vector.shape_cast %304 : vector<1x1x32xf32> to vector<1x32xf32>
    %306 = vector.broadcast %305 : vector<1x32xf32> to vector<16x32xf32>
    %307 = arith.addf %303, %306 : vector<16x32xf32>
    %308 = arith.addf %291, %307 : vector<16x32xf32>
    %c0_128 = arith.constant 0 : index
    %c0_129 = arith.constant 0 : index
    %c0_130 = arith.constant 0 : index
    %309 = vector.load %arg18[%c0_128, %c0_129, %c0_130] : memref<2x1x32xf32, #tpu.memory_space<vmem>>, vector<1x1x32xf32>
    %310 = vector.shape_cast %309 : vector<1x1x32xf32> to vector<1x32xf32>
    %c0_131 = arith.constant 0 : index
    %c0_132 = arith.constant 0 : index
    %c0_133 = arith.constant 0 : index
    %311 = vector.load %arg19[%c0_131, %c0_132, %c0_133] : memref<2x1x32xf32, #tpu.memory_space<vmem>>, vector<1x1x32xf32>
    %312 = vector.shape_cast %311 : vector<1x1x32xf32> to vector<1x32xf32>
    %cst_134 = arith.constant dense<0.000000e+00> : vector<16xf32>
    %313 = vector.multi_reduction <add>, %308, %cst_134 [1] : vector<16x32xf32> to vector<16xf32>
    %314 = vector.shape_cast %313 : vector<16xf32> to vector<16x1xf32>
    %cst_135 = arith.constant 3.200000e+01 : f32
    %315 = vector.broadcast %cst_135 : f32 to vector<16x1xf32>
    %316 = arith.divf %314, %315 : vector<16x1xf32>
    %317 = vector.broadcast %316 : vector<16x1xf32> to vector<16x32xf32>
    %318 = arith.subf %308, %317 : vector<16x32xf32>
    %319 = arith.mulf %318, %318 : vector<16x32xf32>
    %cst_136 = arith.constant dense<0.000000e+00> : vector<16xf32>
    %320 = vector.multi_reduction <add>, %319, %cst_136 [1] : vector<16x32xf32> to vector<16xf32>
    %321 = vector.shape_cast %320 : vector<16xf32> to vector<16x1xf32>
    %cst_137 = arith.constant 3.200000e+01 : f32
    %322 = vector.broadcast %cst_137 : f32 to vector<16x1xf32>
    %323 = arith.divf %321, %322 : vector<16x1xf32>
    %324 = vector.broadcast %316 : vector<16x1xf32> to vector<16x32xf32>
    %325 = arith.subf %308, %324 : vector<16x32xf32>
    %cst_138 = arith.constant 9.99999974E-6 : f32
    %326 = vector.broadcast %cst_138 : f32 to vector<16x1xf32>
    %327 = arith.addf %323, %326 : vector<16x1xf32>
    %328 = math.rsqrt %327 : vector<16x1xf32>
    %329 = vector.broadcast %328 : vector<16x1xf32> to vector<16x32xf32>
    %330 = arith.mulf %325, %329 : vector<16x32xf32>
    %331 = vector.broadcast %310 : vector<1x32xf32> to vector<16x32xf32>
    %332 = arith.mulf %330, %331 : vector<16x32xf32>
    %333 = vector.broadcast %312 : vector<1x32xf32> to vector<16x32xf32>
    %334 = arith.addf %332, %333 : vector<16x32xf32>
    %c1 = arith.constant 1 : index
    %c0_139 = arith.constant 0 : index
    %c0_140 = arith.constant 0 : index
    %335 = vector.load %arg4[%c1, %c0_139, %c0_140] : memref<2x32x96xf32, #tpu.memory_space<vmem>>, vector<1x32x96xf32>
    %336 = vector.shape_cast %335 : vector<1x32x96xf32> to vector<32x96xf32>
    %cst_141 = arith.constant dense<0.000000e+00> : vector<16x96xf32>
    %337 = tpu.matmul %334, %336, %cst_141 {dimension_numbers = #tpu.dot_dimension_numbers<[1], [0], [0], [1], [0, 0, 1, 1], [], []>} : vector<16x32xf32>, vector<32x96xf32>, vector<16x96xf32> -> vector<16x96xf32>
    %c1_142 = arith.constant 1 : index
    %c0_143 = arith.constant 0 : index
    %c0_144 = arith.constant 0 : index
    %338 = vector.load %arg5[%c1_142, %c0_143, %c0_144] : memref<2x1x96xf32, #tpu.memory_space<vmem>>, vector<1x1x96xf32>
    %339 = vector.shape_cast %338 : vector<1x1x96xf32> to vector<1x96xf32>
    %340 = vector.broadcast %339 : vector<1x96xf32> to vector<16x96xf32>
    %341 = arith.addf %337, %340 : vector<16x96xf32>
    %342 = vector.extract_strided_slice %341 {offsets = [0, 0], sizes = [16, 32], strides = [1, 1]} : vector<16x96xf32> to vector<16x32xf32>
    %343 = vector.extract_strided_slice %341 {offsets = [0, 32], sizes = [16, 32], strides = [1, 1]} : vector<16x96xf32> to vector<16x32xf32>
    %344 = vector.extract_strided_slice %341 {offsets = [0, 64], sizes = [16, 32], strides = [1, 1]} : vector<16x96xf32> to vector<16x32xf32>
    %c1_145 = arith.constant 1 : index
    %c0_146 = arith.constant 0 : index
    %c0_147 = arith.constant 0 : index
    %345 = vector.load %arg6[%c1_145, %c0_146, %c0_147] : memref<2x32x32xf32, #tpu.memory_space<vmem>>, vector<1x32x32xf32>
    %346 = vector.shape_cast %345 : vector<1x32x32xf32> to vector<32x32xf32>
    %c1_148 = arith.constant 1 : index
    %c0_149 = arith.constant 0 : index
    %c0_150 = arith.constant 0 : index
    %347 = vector.load %arg7[%c1_148, %c0_149, %c0_150] : memref<2x1x32xf32, #tpu.memory_space<vmem>>, vector<1x1x32xf32>
    %348 = vector.shape_cast %347 : vector<1x1x32xf32> to vector<1x32xf32>
    %349 = vector.shape_cast %342 : vector<16x32xf32> to vector<2x8x32xf32>
    %350 = vector.shape_cast %343 : vector<16x32xf32> to vector<2x8x32xf32>
    %351 = vector.shape_cast %344 : vector<16x32xf32> to vector<2x8x32xf32>
    %352 = vector.shape_cast %4 : vector<2x8xf32> to vector<2x1x8xf32>
    %cst_151 = arith.constant 0.000000e+00 : f32
    %353 = vector.broadcast %cst_151 : f32 to vector<16x32xf32>
    %354 = vector.broadcast %348 : vector<1x32xf32> to vector<16x32xf32>
    %355 = arith.addf %353, %354 : vector<16x32xf32>
    %356 = vector.extract_strided_slice %349 {offsets = [0, 0, 0], sizes = [2, 8, 8], strides = [1, 1, 1]} : vector<2x8x32xf32> to vector<2x8x8xf32>
    %357 = vector.extract_strided_slice %350 {offsets = [0, 0, 0], sizes = [2, 8, 8], strides = [1, 1, 1]} : vector<2x8x32xf32> to vector<2x8x8xf32>
    "tpu.trace_start"() <{level = 10 : i32, message = "bqd,bkd->bqk"}> : () -> ()
    %cst_152 = arith.constant dense<0.000000e+00> : vector<2x8x8xf32>
    %358 = tpu.matmul %356, %357, %cst_152 {dimension_numbers = #tpu.dot_dimension_numbers<[2], [2], [1], [1], [0, 0, 0, 1, 1, 1], [0], [0]>} : vector<2x8x8xf32>, vector<2x8x8xf32>, vector<2x8x8xf32> -> vector<2x8x8xf32>
    "tpu.trace_stop"() : () -> ()
    %cst_153 = arith.constant 0.353553385 : f32
    %359 = vector.broadcast %cst_153 : f32 to vector<2x8x8xf32>
    %360 = arith.mulf %358, %359 : vector<2x8x8xf32>
    %361 = vector.broadcast %352 : vector<2x1x8xf32> to vector<2x8x8xf32>
    %362 = arith.addf %360, %361 : vector<2x8x8xf32>
    %cst_154 = arith.constant dense<0xFF800000> : vector<2x8xf32>
    %363 = vector.multi_reduction <maximumf>, %362, %cst_154 [2] : vector<2x8x8xf32> to vector<2x8xf32>
    %364 = vector.shape_cast %363 : vector<2x8xf32> to vector<2x8x1xf32>
    %365 = vector.broadcast %364 : vector<2x8x1xf32> to vector<2x8x8xf32>
    %366 = arith.subf %362, %365 : vector<2x8x8xf32>
    %367 = math.exp %366 : vector<2x8x8xf32>
    %cst_155 = arith.constant dense<0.000000e+00> : vector<2x8xf32>
    %368 = vector.multi_reduction <add>, %367, %cst_155 [2] : vector<2x8x8xf32> to vector<2x8xf32>
    %369 = vector.shape_cast %368 : vector<2x8xf32> to vector<2x8x1xf32>
    %370 = tpu.reciprocal %369 : vector<2x8x1xf32> -> vector<2x8x1xf32>
    %371 = vector.broadcast %370 : vector<2x8x1xf32> to vector<2x8x8xf32>
    %372 = arith.mulf %367, %371 : vector<2x8x8xf32>
    %373 = vector.extract_strided_slice %351 {offsets = [0, 0, 0], sizes = [2, 8, 8], strides = [1, 1, 1]} : vector<2x8x32xf32> to vector<2x8x8xf32>
    "tpu.trace_start"() <{level = 10 : i32, message = "bqk,bkd->bqd"}> : () -> ()
    %cst_156 = arith.constant dense<0.000000e+00> : vector<2x8x8xf32>
    %374 = tpu.matmul %372, %373, %cst_156 {dimension_numbers = #tpu.dot_dimension_numbers<[2], [1], [1], [2], [0, 0, 0, 1, 1, 2], [0], [0]>} : vector<2x8x8xf32>, vector<2x8x8xf32>, vector<2x8x8xf32> -> vector<2x8x8xf32>
    "tpu.trace_stop"() : () -> ()
    %375 = vector.shape_cast %374 : vector<2x8x8xf32> to vector<16x8xf32>
    %376 = vector.extract_strided_slice %346 {offsets = [0, 0], sizes = [8, 32], strides = [1, 1]} : vector<32x32xf32> to vector<8x32xf32>
    %cst_157 = arith.constant dense<0.000000e+00> : vector<16x32xf32>
    %377 = tpu.matmul %375, %376, %cst_157 {dimension_numbers = #tpu.dot_dimension_numbers<[1], [0], [0], [1], [0, 0, 1, 1], [], []>} : vector<16x8xf32>, vector<8x32xf32>, vector<16x32xf32> -> vector<16x32xf32>
    %378 = arith.addf %355, %377 : vector<16x32xf32>
    %379 = vector.extract_strided_slice %349 {offsets = [0, 0, 8], sizes = [2, 8, 8], strides = [1, 1, 1]} : vector<2x8x32xf32> to vector<2x8x8xf32>
    %380 = vector.extract_strided_slice %350 {offsets = [0, 0, 8], sizes = [2, 8, 8], strides = [1, 1, 1]} : vector<2x8x32xf32> to vector<2x8x8xf32>
    "tpu.trace_start"() <{level = 10 : i32, message = "bqd,bkd->bqk"}> : () -> ()
    %cst_158 = arith.constant dense<0.000000e+00> : vector<2x8x8xf32>
    %381 = tpu.matmul %379, %380, %cst_158 {dimension_numbers = #tpu.dot_dimension_numbers<[2], [2], [1], [1], [0, 0, 0, 1, 1, 1], [0], [0]>} : vector<2x8x8xf32>, vector<2x8x8xf32>, vector<2x8x8xf32> -> vector<2x8x8xf32>
    "tpu.trace_stop"() : () -> ()
    %cst_159 = arith.constant 0.353553385 : f32
    %382 = vector.broadcast %cst_159 : f32 to vector<2x8x8xf32>
    %383 = arith.mulf %381, %382 : vector<2x8x8xf32>
    %384 = vector.broadcast %352 : vector<2x1x8xf32> to vector<2x8x8xf32>
    %385 = arith.addf %383, %384 : vector<2x8x8xf32>
    %cst_160 = arith.constant dense<0xFF800000> : vector<2x8xf32>
    %386 = vector.multi_reduction <maximumf>, %385, %cst_160 [2] : vector<2x8x8xf32> to vector<2x8xf32>
    %387 = vector.shape_cast %386 : vector<2x8xf32> to vector<2x8x1xf32>
    %388 = vector.broadcast %387 : vector<2x8x1xf32> to vector<2x8x8xf32>
    %389 = arith.subf %385, %388 : vector<2x8x8xf32>
    %390 = math.exp %389 : vector<2x8x8xf32>
    %cst_161 = arith.constant dense<0.000000e+00> : vector<2x8xf32>
    %391 = vector.multi_reduction <add>, %390, %cst_161 [2] : vector<2x8x8xf32> to vector<2x8xf32>
    %392 = vector.shape_cast %391 : vector<2x8xf32> to vector<2x8x1xf32>
    %393 = tpu.reciprocal %392 : vector<2x8x1xf32> -> vector<2x8x1xf32>
    %394 = vector.broadcast %393 : vector<2x8x1xf32> to vector<2x8x8xf32>
    %395 = arith.mulf %390, %394 : vector<2x8x8xf32>
    %396 = vector.extract_strided_slice %351 {offsets = [0, 0, 8], sizes = [2, 8, 8], strides = [1, 1, 1]} : vector<2x8x32xf32> to vector<2x8x8xf32>
    "tpu.trace_start"() <{level = 10 : i32, message = "bqk,bkd->bqd"}> : () -> ()
    %cst_162 = arith.constant dense<0.000000e+00> : vector<2x8x8xf32>
    %397 = tpu.matmul %395, %396, %cst_162 {dimension_numbers = #tpu.dot_dimension_numbers<[2], [1], [1], [2], [0, 0, 0, 1, 1, 2], [0], [0]>} : vector<2x8x8xf32>, vector<2x8x8xf32>, vector<2x8x8xf32> -> vector<2x8x8xf32>
    "tpu.trace_stop"() : () -> ()
    %398 = vector.shape_cast %397 : vector<2x8x8xf32> to vector<16x8xf32>
    %399 = vector.extract_strided_slice %346 {offsets = [8, 0], sizes = [8, 32], strides = [1, 1]} : vector<32x32xf32> to vector<8x32xf32>
    %cst_163 = arith.constant dense<0.000000e+00> : vector<16x32xf32>
    %400 = tpu.matmul %398, %399, %cst_163 {dimension_numbers = #tpu.dot_dimension_numbers<[1], [0], [0], [1], [0, 0, 1, 1], [], []>} : vector<16x8xf32>, vector<8x32xf32>, vector<16x32xf32> -> vector<16x32xf32>
    %401 = arith.addf %378, %400 : vector<16x32xf32>
    %402 = vector.extract_strided_slice %349 {offsets = [0, 0, 16], sizes = [2, 8, 8], strides = [1, 1, 1]} : vector<2x8x32xf32> to vector<2x8x8xf32>
    %403 = vector.extract_strided_slice %350 {offsets = [0, 0, 16], sizes = [2, 8, 8], strides = [1, 1, 1]} : vector<2x8x32xf32> to vector<2x8x8xf32>
    "tpu.trace_start"() <{level = 10 : i32, message = "bqd,bkd->bqk"}> : () -> ()
    %cst_164 = arith.constant dense<0.000000e+00> : vector<2x8x8xf32>
    %404 = tpu.matmul %402, %403, %cst_164 {dimension_numbers = #tpu.dot_dimension_numbers<[2], [2], [1], [1], [0, 0, 0, 1, 1, 1], [0], [0]>} : vector<2x8x8xf32>, vector<2x8x8xf32>, vector<2x8x8xf32> -> vector<2x8x8xf32>
    "tpu.trace_stop"() : () -> ()
    %cst_165 = arith.constant 0.353553385 : f32
    %405 = vector.broadcast %cst_165 : f32 to vector<2x8x8xf32>
    %406 = arith.mulf %404, %405 : vector<2x8x8xf32>
    %407 = vector.broadcast %352 : vector<2x1x8xf32> to vector<2x8x8xf32>
    %408 = arith.addf %406, %407 : vector<2x8x8xf32>
    %cst_166 = arith.constant dense<0xFF800000> : vector<2x8xf32>
    %409 = vector.multi_reduction <maximumf>, %408, %cst_166 [2] : vector<2x8x8xf32> to vector<2x8xf32>
    %410 = vector.shape_cast %409 : vector<2x8xf32> to vector<2x8x1xf32>
    %411 = vector.broadcast %410 : vector<2x8x1xf32> to vector<2x8x8xf32>
    %412 = arith.subf %408, %411 : vector<2x8x8xf32>
    %413 = math.exp %412 : vector<2x8x8xf32>
    %cst_167 = arith.constant dense<0.000000e+00> : vector<2x8xf32>
    %414 = vector.multi_reduction <add>, %413, %cst_167 [2] : vector<2x8x8xf32> to vector<2x8xf32>
    %415 = vector.shape_cast %414 : vector<2x8xf32> to vector<2x8x1xf32>
    %416 = tpu.reciprocal %415 : vector<2x8x1xf32> -> vector<2x8x1xf32>
    %417 = vector.broadcast %416 : vector<2x8x1xf32> to vector<2x8x8xf32>
    %418 = arith.mulf %413, %417 : vector<2x8x8xf32>
    %419 = vector.extract_strided_slice %351 {offsets = [0, 0, 16], sizes = [2, 8, 8], strides = [1, 1, 1]} : vector<2x8x32xf32> to vector<2x8x8xf32>
    "tpu.trace_start"() <{level = 10 : i32, message = "bqk,bkd->bqd"}> : () -> ()
    %cst_168 = arith.constant dense<0.000000e+00> : vector<2x8x8xf32>
    %420 = tpu.matmul %418, %419, %cst_168 {dimension_numbers = #tpu.dot_dimension_numbers<[2], [1], [1], [2], [0, 0, 0, 1, 1, 2], [0], [0]>} : vector<2x8x8xf32>, vector<2x8x8xf32>, vector<2x8x8xf32> -> vector<2x8x8xf32>
    "tpu.trace_stop"() : () -> ()
    %421 = vector.shape_cast %420 : vector<2x8x8xf32> to vector<16x8xf32>
    %422 = vector.extract_strided_slice %346 {offsets = [16, 0], sizes = [8, 32], strides = [1, 1]} : vector<32x32xf32> to vector<8x32xf32>
    %cst_169 = arith.constant dense<0.000000e+00> : vector<16x32xf32>
    %423 = tpu.matmul %421, %422, %cst_169 {dimension_numbers = #tpu.dot_dimension_numbers<[1], [0], [0], [1], [0, 0, 1, 1], [], []>} : vector<16x8xf32>, vector<8x32xf32>, vector<16x32xf32> -> vector<16x32xf32>
    %424 = arith.addf %401, %423 : vector<16x32xf32>
    %425 = vector.extract_strided_slice %349 {offsets = [0, 0, 24], sizes = [2, 8, 8], strides = [1, 1, 1]} : vector<2x8x32xf32> to vector<2x8x8xf32>
    %426 = vector.extract_strided_slice %350 {offsets = [0, 0, 24], sizes = [2, 8, 8], strides = [1, 1, 1]} : vector<2x8x32xf32> to vector<2x8x8xf32>
    "tpu.trace_start"() <{level = 10 : i32, message = "bqd,bkd->bqk"}> : () -> ()
    %cst_170 = arith.constant dense<0.000000e+00> : vector<2x8x8xf32>
    %427 = tpu.matmul %425, %426, %cst_170 {dimension_numbers = #tpu.dot_dimension_numbers<[2], [2], [1], [1], [0, 0, 0, 1, 1, 1], [0], [0]>} : vector<2x8x8xf32>, vector<2x8x8xf32>, vector<2x8x8xf32> -> vector<2x8x8xf32>
    "tpu.trace_stop"() : () -> ()
    %cst_171 = arith.constant 0.353553385 : f32
    %428 = vector.broadcast %cst_171 : f32 to vector<2x8x8xf32>
    %429 = arith.mulf %427, %428 : vector<2x8x8xf32>
    %430 = vector.broadcast %352 : vector<2x1x8xf32> to vector<2x8x8xf32>
    %431 = arith.addf %429, %430 : vector<2x8x8xf32>
    %cst_172 = arith.constant dense<0xFF800000> : vector<2x8xf32>
    %432 = vector.multi_reduction <maximumf>, %431, %cst_172 [2] : vector<2x8x8xf32> to vector<2x8xf32>
    %433 = vector.shape_cast %432 : vector<2x8xf32> to vector<2x8x1xf32>
    %434 = vector.broadcast %433 : vector<2x8x1xf32> to vector<2x8x8xf32>
    %435 = arith.subf %431, %434 : vector<2x8x8xf32>
    %436 = math.exp %435 : vector<2x8x8xf32>
    %cst_173 = arith.constant dense<0.000000e+00> : vector<2x8xf32>
    %437 = vector.multi_reduction <add>, %436, %cst_173 [2] : vector<2x8x8xf32> to vector<2x8xf32>
    %438 = vector.shape_cast %437 : vector<2x8xf32> to vector<2x8x1xf32>
    %439 = tpu.reciprocal %438 : vector<2x8x1xf32> -> vector<2x8x1xf32>
    %440 = vector.broadcast %439 : vector<2x8x1xf32> to vector<2x8x8xf32>
    %441 = arith.mulf %436, %440 : vector<2x8x8xf32>
    %442 = vector.extract_strided_slice %351 {offsets = [0, 0, 24], sizes = [2, 8, 8], strides = [1, 1, 1]} : vector<2x8x32xf32> to vector<2x8x8xf32>
    "tpu.trace_start"() <{level = 10 : i32, message = "bqk,bkd->bqd"}> : () -> ()
    %cst_174 = arith.constant dense<0.000000e+00> : vector<2x8x8xf32>
    %443 = tpu.matmul %441, %442, %cst_174 {dimension_numbers = #tpu.dot_dimension_numbers<[2], [1], [1], [2], [0, 0, 0, 1, 1, 2], [0], [0]>} : vector<2x8x8xf32>, vector<2x8x8xf32>, vector<2x8x8xf32> -> vector<2x8x8xf32>
    "tpu.trace_stop"() : () -> ()
    %444 = vector.shape_cast %443 : vector<2x8x8xf32> to vector<16x8xf32>
    %445 = vector.extract_strided_slice %346 {offsets = [24, 0], sizes = [8, 32], strides = [1, 1]} : vector<32x32xf32> to vector<8x32xf32>
    %cst_175 = arith.constant dense<0.000000e+00> : vector<16x32xf32>
    %446 = tpu.matmul %444, %445, %cst_175 {dimension_numbers = #tpu.dot_dimension_numbers<[1], [0], [0], [1], [0, 0, 1, 1], [], []>} : vector<16x8xf32>, vector<8x32xf32>, vector<16x32xf32> -> vector<16x32xf32>
    %447 = arith.addf %424, %446 : vector<16x32xf32>
    %448 = arith.addf %334, %447 : vector<16x32xf32>
    %c1_176 = arith.constant 1 : index
    %c0_177 = arith.constant 0 : index
    %c0_178 = arith.constant 0 : index
    %449 = vector.load %arg14[%c1_176, %c0_177, %c0_178] : memref<2x1x32xf32, #tpu.memory_space<vmem>>, vector<1x1x32xf32>
    %450 = vector.shape_cast %449 : vector<1x1x32xf32> to vector<1x32xf32>
    %c1_179 = arith.constant 1 : index
    %c0_180 = arith.constant 0 : index
    %c0_181 = arith.constant 0 : index
    %451 = vector.load %arg15[%c1_179, %c0_180, %c0_181] : memref<2x1x32xf32, #tpu.memory_space<vmem>>, vector<1x1x32xf32>
    %452 = vector.shape_cast %451 : vector<1x1x32xf32> to vector<1x32xf32>
    %cst_182 = arith.constant dense<0.000000e+00> : vector<16xf32>
    %453 = vector.multi_reduction <add>, %448, %cst_182 [1] : vector<16x32xf32> to vector<16xf32>
    %454 = vector.shape_cast %453 : vector<16xf32> to vector<16x1xf32>
    %cst_183 = arith.constant 3.200000e+01 : f32
    %455 = vector.broadcast %cst_183 : f32 to vector<16x1xf32>
    %456 = arith.divf %454, %455 : vector<16x1xf32>
    %457 = vector.broadcast %456 : vector<16x1xf32> to vector<16x32xf32>
    %458 = arith.subf %448, %457 : vector<16x32xf32>
    %459 = arith.mulf %458, %458 : vector<16x32xf32>
    %cst_184 = arith.constant dense<0.000000e+00> : vector<16xf32>
    %460 = vector.multi_reduction <add>, %459, %cst_184 [1] : vector<16x32xf32> to vector<16xf32>
    %461 = vector.shape_cast %460 : vector<16xf32> to vector<16x1xf32>
    %cst_185 = arith.constant 3.200000e+01 : f32
    %462 = vector.broadcast %cst_185 : f32 to vector<16x1xf32>
    %463 = arith.divf %461, %462 : vector<16x1xf32>
    %464 = vector.broadcast %456 : vector<16x1xf32> to vector<16x32xf32>
    %465 = arith.subf %448, %464 : vector<16x32xf32>
    %cst_186 = arith.constant 9.99999974E-6 : f32
    %466 = vector.broadcast %cst_186 : f32 to vector<16x1xf32>
    %467 = arith.addf %463, %466 : vector<16x1xf32>
    %468 = math.rsqrt %467 : vector<16x1xf32>
    %469 = vector.broadcast %468 : vector<16x1xf32> to vector<16x32xf32>
    %470 = arith.mulf %465, %469 : vector<16x32xf32>
    %471 = vector.broadcast %450 : vector<1x32xf32> to vector<16x32xf32>
    %472 = arith.mulf %470, %471 : vector<16x32xf32>
    %473 = vector.broadcast %452 : vector<1x32xf32> to vector<16x32xf32>
    %474 = arith.addf %472, %473 : vector<16x32xf32>
    %c1_187 = arith.constant 1 : index
    %c0_188 = arith.constant 0 : index
    %c0_189 = arith.constant 0 : index
    %475 = vector.load %arg8[%c1_187, %c0_188, %c0_189] : memref<2x32x32xf32, #tpu.memory_space<vmem>>, vector<1x32x32xf32>
    %476 = vector.shape_cast %475 : vector<1x32x32xf32> to vector<32x32xf32>
    %cst_190 = arith.constant dense<0.000000e+00> : vector<16x32xf32>
    %477 = tpu.matmul %474, %476, %cst_190 {dimension_numbers = #tpu.dot_dimension_numbers<[1], [0], [0], [1], [0, 0, 1, 1], [], []>} : vector<16x32xf32>, vector<32x32xf32>, vector<16x32xf32> -> vector<16x32xf32>
    %c1_191 = arith.constant 1 : index
    %c0_192 = arith.constant 0 : index
    %c0_193 = arith.constant 0 : index
    %478 = vector.load %arg9[%c1_191, %c0_192, %c0_193] : memref<2x1x32xf32, #tpu.memory_space<vmem>>, vector<1x1x32xf32>
    %479 = vector.shape_cast %478 : vector<1x1x32xf32> to vector<1x32xf32>
    %480 = vector.broadcast %479 : vector<1x32xf32> to vector<16x32xf32>
    %481 = arith.addf %477, %480 : vector<16x32xf32>
    %c1_194 = arith.constant 1 : index
    %c0_195 = arith.constant 0 : index
    %c0_196 = arith.constant 0 : index
    %482 = vector.load %arg10[%c1_194, %c0_195, %c0_196] : memref<2x32x64xf32, #tpu.memory_space<vmem>>, vector<1x32x64xf32>
    %483 = vector.shape_cast %482 : vector<1x32x64xf32> to vector<32x64xf32>
    %cst_197 = arith.constant dense<0.000000e+00> : vector<32x64xf32>
    %484 = tpu.matmul %3, %483, %cst_197 {dimension_numbers = #tpu.dot_dimension_numbers<[1], [0], [0], [1], [0, 0, 1, 1], [], []>} : vector<32x32xf32>, vector<32x64xf32>, vector<32x64xf32> -> vector<32x64xf32>
    %c1_198 = arith.constant 1 : index
    %c0_199 = arith.constant 0 : index
    %c0_200 = arith.constant 0 : index
    %485 = vector.load %arg11[%c1_198, %c0_199, %c0_200] : memref<2x1x64xf32, #tpu.memory_space<vmem>>, vector<1x1x64xf32>
    %486 = vector.shape_cast %485 : vector<1x1x64xf32> to vector<1x64xf32>
    %487 = vector.broadcast %486 : vector<1x64xf32> to vector<32x64xf32>
    %488 = arith.addf %484, %487 : vector<32x64xf32>
    %489 = vector.extract_strided_slice %488 {offsets = [0, 0], sizes = [32, 32], strides = [1, 1]} : vector<32x64xf32> to vector<32x32xf32>
    %490 = vector.extract_strided_slice %488 {offsets = [0, 32], sizes = [32, 32], strides = [1, 1]} : vector<32x64xf32> to vector<32x32xf32>
    %c1_201 = arith.constant 1 : index
    %c0_202 = arith.constant 0 : index
    %c0_203 = arith.constant 0 : index
    %491 = vector.load %arg12[%c1_201, %c0_202, %c0_203] : memref<2x32x32xf32, #tpu.memory_space<vmem>>, vector<1x32x32xf32>
    %492 = vector.shape_cast %491 : vector<1x32x32xf32> to vector<32x32xf32>
    %c1_204 = arith.constant 1 : index
    %c0_205 = arith.constant 0 : index
    %c0_206 = arith.constant 0 : index
    %493 = vector.load %arg13[%c1_204, %c0_205, %c0_206] : memref<2x1x32xf32, #tpu.memory_space<vmem>>, vector<1x1x32xf32>
    %494 = vector.shape_cast %493 : vector<1x1x32xf32> to vector<1x32xf32>
    %495 = vector.shape_cast %481 : vector<16x32xf32> to vector<2x8x32xf32>
    %496 = vector.shape_cast %489 : vector<32x32xf32> to vector<2x16x32xf32>
    %497 = vector.shape_cast %490 : vector<32x32xf32> to vector<2x16x32xf32>
    %498 = vector.shape_cast %5 : vector<2x16xf32> to vector<2x1x16xf32>
    %cst_207 = arith.constant 0.000000e+00 : f32
    %499 = vector.broadcast %cst_207 : f32 to vector<16x32xf32>
    %500 = vector.broadcast %494 : vector<1x32xf32> to vector<16x32xf32>
    %501 = arith.addf %499, %500 : vector<16x32xf32>
    %502 = vector.extract_strided_slice %495 {offsets = [0, 0, 0], sizes = [2, 8, 8], strides = [1, 1, 1]} : vector<2x8x32xf32> to vector<2x8x8xf32>
    %503 = vector.extract_strided_slice %496 {offsets = [0, 0, 0], sizes = [2, 16, 8], strides = [1, 1, 1]} : vector<2x16x32xf32> to vector<2x16x8xf32>
    "tpu.trace_start"() <{level = 10 : i32, message = "bqd,bkd->bqk"}> : () -> ()
    %cst_208 = arith.constant dense<0.000000e+00> : vector<2x8x16xf32>
    %504 = tpu.matmul %502, %503, %cst_208 {dimension_numbers = #tpu.dot_dimension_numbers<[2], [2], [1], [1], [0, 0, 0, 1, 1, 1], [0], [0]>} : vector<2x8x8xf32>, vector<2x16x8xf32>, vector<2x8x16xf32> -> vector<2x8x16xf32>
    "tpu.trace_stop"() : () -> ()
    %cst_209 = arith.constant 0.353553385 : f32
    %505 = vector.broadcast %cst_209 : f32 to vector<2x8x16xf32>
    %506 = arith.mulf %504, %505 : vector<2x8x16xf32>
    %507 = vector.broadcast %498 : vector<2x1x16xf32> to vector<2x8x16xf32>
    %508 = arith.addf %506, %507 : vector<2x8x16xf32>
    %cst_210 = arith.constant dense<0xFF800000> : vector<2x8xf32>
    %509 = vector.multi_reduction <maximumf>, %508, %cst_210 [2] : vector<2x8x16xf32> to vector<2x8xf32>
    %510 = vector.shape_cast %509 : vector<2x8xf32> to vector<2x8x1xf32>
    %511 = vector.broadcast %510 : vector<2x8x1xf32> to vector<2x8x16xf32>
    %512 = arith.subf %508, %511 : vector<2x8x16xf32>
    %513 = math.exp %512 : vector<2x8x16xf32>
    %cst_211 = arith.constant dense<0.000000e+00> : vector<2x8xf32>
    %514 = vector.multi_reduction <add>, %513, %cst_211 [2] : vector<2x8x16xf32> to vector<2x8xf32>
    %515 = vector.shape_cast %514 : vector<2x8xf32> to vector<2x8x1xf32>
    %516 = tpu.reciprocal %515 : vector<2x8x1xf32> -> vector<2x8x1xf32>
    %517 = vector.broadcast %516 : vector<2x8x1xf32> to vector<2x8x16xf32>
    %518 = arith.mulf %513, %517 : vector<2x8x16xf32>
    %519 = vector.extract_strided_slice %497 {offsets = [0, 0, 0], sizes = [2, 16, 8], strides = [1, 1, 1]} : vector<2x16x32xf32> to vector<2x16x8xf32>
    "tpu.trace_start"() <{level = 10 : i32, message = "bqk,bkd->bqd"}> : () -> ()
    %cst_212 = arith.constant dense<0.000000e+00> : vector<2x8x8xf32>
    %520 = tpu.matmul %518, %519, %cst_212 {dimension_numbers = #tpu.dot_dimension_numbers<[2], [1], [1], [2], [0, 0, 0, 1, 1, 2], [0], [0]>} : vector<2x8x16xf32>, vector<2x16x8xf32>, vector<2x8x8xf32> -> vector<2x8x8xf32>
    "tpu.trace_stop"() : () -> ()
    %521 = vector.shape_cast %520 : vector<2x8x8xf32> to vector<16x8xf32>
    %522 = vector.extract_strided_slice %492 {offsets = [0, 0], sizes = [8, 32], strides = [1, 1]} : vector<32x32xf32> to vector<8x32xf32>
    %cst_213 = arith.constant dense<0.000000e+00> : vector<16x32xf32>
    %523 = tpu.matmul %521, %522, %cst_213 {dimension_numbers = #tpu.dot_dimension_numbers<[1], [0], [0], [1], [0, 0, 1, 1], [], []>} : vector<16x8xf32>, vector<8x32xf32>, vector<16x32xf32> -> vector<16x32xf32>
    %524 = arith.addf %501, %523 : vector<16x32xf32>
    %525 = vector.extract_strided_slice %495 {offsets = [0, 0, 8], sizes = [2, 8, 8], strides = [1, 1, 1]} : vector<2x8x32xf32> to vector<2x8x8xf32>
    %526 = vector.extract_strided_slice %496 {offsets = [0, 0, 8], sizes = [2, 16, 8], strides = [1, 1, 1]} : vector<2x16x32xf32> to vector<2x16x8xf32>
    "tpu.trace_start"() <{level = 10 : i32, message = "bqd,bkd->bqk"}> : () -> ()
    %cst_214 = arith.constant dense<0.000000e+00> : vector<2x8x16xf32>
    %527 = tpu.matmul %525, %526, %cst_214 {dimension_numbers = #tpu.dot_dimension_numbers<[2], [2], [1], [1], [0, 0, 0, 1, 1, 1], [0], [0]>} : vector<2x8x8xf32>, vector<2x16x8xf32>, vector<2x8x16xf32> -> vector<2x8x16xf32>
    "tpu.trace_stop"() : () -> ()
    %cst_215 = arith.constant 0.353553385 : f32
    %528 = vector.broadcast %cst_215 : f32 to vector<2x8x16xf32>
    %529 = arith.mulf %527, %528 : vector<2x8x16xf32>
    %530 = vector.broadcast %498 : vector<2x1x16xf32> to vector<2x8x16xf32>
    %531 = arith.addf %529, %530 : vector<2x8x16xf32>
    %cst_216 = arith.constant dense<0xFF800000> : vector<2x8xf32>
    %532 = vector.multi_reduction <maximumf>, %531, %cst_216 [2] : vector<2x8x16xf32> to vector<2x8xf32>
    %533 = vector.shape_cast %532 : vector<2x8xf32> to vector<2x8x1xf32>
    %534 = vector.broadcast %533 : vector<2x8x1xf32> to vector<2x8x16xf32>
    %535 = arith.subf %531, %534 : vector<2x8x16xf32>
    %536 = math.exp %535 : vector<2x8x16xf32>
    %cst_217 = arith.constant dense<0.000000e+00> : vector<2x8xf32>
    %537 = vector.multi_reduction <add>, %536, %cst_217 [2] : vector<2x8x16xf32> to vector<2x8xf32>
    %538 = vector.shape_cast %537 : vector<2x8xf32> to vector<2x8x1xf32>
    %539 = tpu.reciprocal %538 : vector<2x8x1xf32> -> vector<2x8x1xf32>
    %540 = vector.broadcast %539 : vector<2x8x1xf32> to vector<2x8x16xf32>
    %541 = arith.mulf %536, %540 : vector<2x8x16xf32>
    %542 = vector.extract_strided_slice %497 {offsets = [0, 0, 8], sizes = [2, 16, 8], strides = [1, 1, 1]} : vector<2x16x32xf32> to vector<2x16x8xf32>
    "tpu.trace_start"() <{level = 10 : i32, message = "bqk,bkd->bqd"}> : () -> ()
    %cst_218 = arith.constant dense<0.000000e+00> : vector<2x8x8xf32>
    %543 = tpu.matmul %541, %542, %cst_218 {dimension_numbers = #tpu.dot_dimension_numbers<[2], [1], [1], [2], [0, 0, 0, 1, 1, 2], [0], [0]>} : vector<2x8x16xf32>, vector<2x16x8xf32>, vector<2x8x8xf32> -> vector<2x8x8xf32>
    "tpu.trace_stop"() : () -> ()
    %544 = vector.shape_cast %543 : vector<2x8x8xf32> to vector<16x8xf32>
    %545 = vector.extract_strided_slice %492 {offsets = [8, 0], sizes = [8, 32], strides = [1, 1]} : vector<32x32xf32> to vector<8x32xf32>
    %cst_219 = arith.constant dense<0.000000e+00> : vector<16x32xf32>
    %546 = tpu.matmul %544, %545, %cst_219 {dimension_numbers = #tpu.dot_dimension_numbers<[1], [0], [0], [1], [0, 0, 1, 1], [], []>} : vector<16x8xf32>, vector<8x32xf32>, vector<16x32xf32> -> vector<16x32xf32>
    %547 = arith.addf %524, %546 : vector<16x32xf32>
    %548 = vector.extract_strided_slice %495 {offsets = [0, 0, 16], sizes = [2, 8, 8], strides = [1, 1, 1]} : vector<2x8x32xf32> to vector<2x8x8xf32>
    %549 = vector.extract_strided_slice %496 {offsets = [0, 0, 16], sizes = [2, 16, 8], strides = [1, 1, 1]} : vector<2x16x32xf32> to vector<2x16x8xf32>
    "tpu.trace_start"() <{level = 10 : i32, message = "bqd,bkd->bqk"}> : () -> ()
    %cst_220 = arith.constant dense<0.000000e+00> : vector<2x8x16xf32>
    %550 = tpu.matmul %548, %549, %cst_220 {dimension_numbers = #tpu.dot_dimension_numbers<[2], [2], [1], [1], [0, 0, 0, 1, 1, 1], [0], [0]>} : vector<2x8x8xf32>, vector<2x16x8xf32>, vector<2x8x16xf32> -> vector<2x8x16xf32>
    "tpu.trace_stop"() : () -> ()
    %cst_221 = arith.constant 0.353553385 : f32
    %551 = vector.broadcast %cst_221 : f32 to vector<2x8x16xf32>
    %552 = arith.mulf %550, %551 : vector<2x8x16xf32>
    %553 = vector.broadcast %498 : vector<2x1x16xf32> to vector<2x8x16xf32>
    %554 = arith.addf %552, %553 : vector<2x8x16xf32>
    %cst_222 = arith.constant dense<0xFF800000> : vector<2x8xf32>
    %555 = vector.multi_reduction <maximumf>, %554, %cst_222 [2] : vector<2x8x16xf32> to vector<2x8xf32>
    %556 = vector.shape_cast %555 : vector<2x8xf32> to vector<2x8x1xf32>
    %557 = vector.broadcast %556 : vector<2x8x1xf32> to vector<2x8x16xf32>
    %558 = arith.subf %554, %557 : vector<2x8x16xf32>
    %559 = math.exp %558 : vector<2x8x16xf32>
    %cst_223 = arith.constant dense<0.000000e+00> : vector<2x8xf32>
    %560 = vector.multi_reduction <add>, %559, %cst_223 [2] : vector<2x8x16xf32> to vector<2x8xf32>
    %561 = vector.shape_cast %560 : vector<2x8xf32> to vector<2x8x1xf32>
    %562 = tpu.reciprocal %561 : vector<2x8x1xf32> -> vector<2x8x1xf32>
    %563 = vector.broadcast %562 : vector<2x8x1xf32> to vector<2x8x16xf32>
    %564 = arith.mulf %559, %563 : vector<2x8x16xf32>
    %565 = vector.extract_strided_slice %497 {offsets = [0, 0, 16], sizes = [2, 16, 8], strides = [1, 1, 1]} : vector<2x16x32xf32> to vector<2x16x8xf32>
    "tpu.trace_start"() <{level = 10 : i32, message = "bqk,bkd->bqd"}> : () -> ()
    %cst_224 = arith.constant dense<0.000000e+00> : vector<2x8x8xf32>
    %566 = tpu.matmul %564, %565, %cst_224 {dimension_numbers = #tpu.dot_dimension_numbers<[2], [1], [1], [2], [0, 0, 0, 1, 1, 2], [0], [0]>} : vector<2x8x16xf32>, vector<2x16x8xf32>, vector<2x8x8xf32> -> vector<2x8x8xf32>
    "tpu.trace_stop"() : () -> ()
    %567 = vector.shape_cast %566 : vector<2x8x8xf32> to vector<16x8xf32>
    %568 = vector.extract_strided_slice %492 {offsets = [16, 0], sizes = [8, 32], strides = [1, 1]} : vector<32x32xf32> to vector<8x32xf32>
    %cst_225 = arith.constant dense<0.000000e+00> : vector<16x32xf32>
    %569 = tpu.matmul %567, %568, %cst_225 {dimension_numbers = #tpu.dot_dimension_numbers<[1], [0], [0], [1], [0, 0, 1, 1], [], []>} : vector<16x8xf32>, vector<8x32xf32>, vector<16x32xf32> -> vector<16x32xf32>
    %570 = arith.addf %547, %569 : vector<16x32xf32>
    %571 = vector.extract_strided_slice %495 {offsets = [0, 0, 24], sizes = [2, 8, 8], strides = [1, 1, 1]} : vector<2x8x32xf32> to vector<2x8x8xf32>
    %572 = vector.extract_strided_slice %496 {offsets = [0, 0, 24], sizes = [2, 16, 8], strides = [1, 1, 1]} : vector<2x16x32xf32> to vector<2x16x8xf32>
    "tpu.trace_start"() <{level = 10 : i32, message = "bqd,bkd->bqk"}> : () -> ()
    %cst_226 = arith.constant dense<0.000000e+00> : vector<2x8x16xf32>
    %573 = tpu.matmul %571, %572, %cst_226 {dimension_numbers = #tpu.dot_dimension_numbers<[2], [2], [1], [1], [0, 0, 0, 1, 1, 1], [0], [0]>} : vector<2x8x8xf32>, vector<2x16x8xf32>, vector<2x8x16xf32> -> vector<2x8x16xf32>
    "tpu.trace_stop"() : () -> ()
    %cst_227 = arith.constant 0.353553385 : f32
    %574 = vector.broadcast %cst_227 : f32 to vector<2x8x16xf32>
    %575 = arith.mulf %573, %574 : vector<2x8x16xf32>
    %576 = vector.broadcast %498 : vector<2x1x16xf32> to vector<2x8x16xf32>
    %577 = arith.addf %575, %576 : vector<2x8x16xf32>
    %cst_228 = arith.constant dense<0xFF800000> : vector<2x8xf32>
    %578 = vector.multi_reduction <maximumf>, %577, %cst_228 [2] : vector<2x8x16xf32> to vector<2x8xf32>
    %579 = vector.shape_cast %578 : vector<2x8xf32> to vector<2x8x1xf32>
    %580 = vector.broadcast %579 : vector<2x8x1xf32> to vector<2x8x16xf32>
    %581 = arith.subf %577, %580 : vector<2x8x16xf32>
    %582 = math.exp %581 : vector<2x8x16xf32>
    %cst_229 = arith.constant dense<0.000000e+00> : vector<2x8xf32>
    %583 = vector.multi_reduction <add>, %582, %cst_229 [2] : vector<2x8x16xf32> to vector<2x8xf32>
    %584 = vector.shape_cast %583 : vector<2x8xf32> to vector<2x8x1xf32>
    %585 = tpu.reciprocal %584 : vector<2x8x1xf32> -> vector<2x8x1xf32>
    %586 = vector.broadcast %585 : vector<2x8x1xf32> to vector<2x8x16xf32>
    %587 = arith.mulf %582, %586 : vector<2x8x16xf32>
    %588 = vector.extract_strided_slice %497 {offsets = [0, 0, 24], sizes = [2, 16, 8], strides = [1, 1, 1]} : vector<2x16x32xf32> to vector<2x16x8xf32>
    "tpu.trace_start"() <{level = 10 : i32, message = "bqk,bkd->bqd"}> : () -> ()
    %cst_230 = arith.constant dense<0.000000e+00> : vector<2x8x8xf32>
    %589 = tpu.matmul %587, %588, %cst_230 {dimension_numbers = #tpu.dot_dimension_numbers<[2], [1], [1], [2], [0, 0, 0, 1, 1, 2], [0], [0]>} : vector<2x8x16xf32>, vector<2x16x8xf32>, vector<2x8x8xf32> -> vector<2x8x8xf32>
    "tpu.trace_stop"() : () -> ()
    %590 = vector.shape_cast %589 : vector<2x8x8xf32> to vector<16x8xf32>
    %591 = vector.extract_strided_slice %492 {offsets = [24, 0], sizes = [8, 32], strides = [1, 1]} : vector<32x32xf32> to vector<8x32xf32>
    %cst_231 = arith.constant dense<0.000000e+00> : vector<16x32xf32>
    %592 = tpu.matmul %590, %591, %cst_231 {dimension_numbers = #tpu.dot_dimension_numbers<[1], [0], [0], [1], [0, 0, 1, 1], [], []>} : vector<16x8xf32>, vector<8x32xf32>, vector<16x32xf32> -> vector<16x32xf32>
    %593 = arith.addf %570, %592 : vector<16x32xf32>
    %594 = arith.addf %474, %593 : vector<16x32xf32>
    %c1_232 = arith.constant 1 : index
    %c0_233 = arith.constant 0 : index
    %c0_234 = arith.constant 0 : index
    %595 = vector.load %arg16[%c1_232, %c0_233, %c0_234] : memref<2x1x32xf32, #tpu.memory_space<vmem>>, vector<1x1x32xf32>
    %596 = vector.shape_cast %595 : vector<1x1x32xf32> to vector<1x32xf32>
    %c1_235 = arith.constant 1 : index
    %c0_236 = arith.constant 0 : index
    %c0_237 = arith.constant 0 : index
    %597 = vector.load %arg17[%c1_235, %c0_236, %c0_237] : memref<2x1x32xf32, #tpu.memory_space<vmem>>, vector<1x1x32xf32>
    %598 = vector.shape_cast %597 : vector<1x1x32xf32> to vector<1x32xf32>
    %cst_238 = arith.constant dense<0.000000e+00> : vector<16xf32>
    %599 = vector.multi_reduction <add>, %594, %cst_238 [1] : vector<16x32xf32> to vector<16xf32>
    %600 = vector.shape_cast %599 : vector<16xf32> to vector<16x1xf32>
    %cst_239 = arith.constant 3.200000e+01 : f32
    %601 = vector.broadcast %cst_239 : f32 to vector<16x1xf32>
    %602 = arith.divf %600, %601 : vector<16x1xf32>
    %603 = vector.broadcast %602 : vector<16x1xf32> to vector<16x32xf32>
    %604 = arith.subf %594, %603 : vector<16x32xf32>
    %605 = arith.mulf %604, %604 : vector<16x32xf32>
    %cst_240 = arith.constant dense<0.000000e+00> : vector<16xf32>
    %606 = vector.multi_reduction <add>, %605, %cst_240 [1] : vector<16x32xf32> to vector<16xf32>
    %607 = vector.shape_cast %606 : vector<16xf32> to vector<16x1xf32>
    %cst_241 = arith.constant 3.200000e+01 : f32
    %608 = vector.broadcast %cst_241 : f32 to vector<16x1xf32>
    %609 = arith.divf %607, %608 : vector<16x1xf32>
    %610 = vector.broadcast %602 : vector<16x1xf32> to vector<16x32xf32>
    %611 = arith.subf %594, %610 : vector<16x32xf32>
    %cst_242 = arith.constant 9.99999974E-6 : f32
    %612 = vector.broadcast %cst_242 : f32 to vector<16x1xf32>
    %613 = arith.addf %609, %612 : vector<16x1xf32>
    %614 = math.rsqrt %613 : vector<16x1xf32>
    %615 = vector.broadcast %614 : vector<16x1xf32> to vector<16x32xf32>
    %616 = arith.mulf %611, %615 : vector<16x32xf32>
    %617 = vector.broadcast %596 : vector<1x32xf32> to vector<16x32xf32>
    %618 = arith.mulf %616, %617 : vector<16x32xf32>
    %619 = vector.broadcast %598 : vector<1x32xf32> to vector<16x32xf32>
    %620 = arith.addf %618, %619 : vector<16x32xf32>
    %c1_243 = arith.constant 1 : index
    %c0_244 = arith.constant 0 : index
    %c0_245 = arith.constant 0 : index
    %621 = vector.load %arg20[%c1_243, %c0_244, %c0_245] : memref<2x32x64xf32, #tpu.memory_space<vmem>>, vector<1x32x64xf32>
    %622 = vector.shape_cast %621 : vector<1x32x64xf32> to vector<32x64xf32>
    %cst_246 = arith.constant dense<0.000000e+00> : vector<16x64xf32>
    %623 = tpu.matmul %620, %622, %cst_246 {dimension_numbers = #tpu.dot_dimension_numbers<[1], [0], [0], [1], [0, 0, 1, 1], [], []>} : vector<16x32xf32>, vector<32x64xf32>, vector<16x64xf32> -> vector<16x64xf32>
    %c1_247 = arith.constant 1 : index
    %c0_248 = arith.constant 0 : index
    %c0_249 = arith.constant 0 : index
    %624 = vector.load %arg21[%c1_247, %c0_248, %c0_249] : memref<2x1x64xf32, #tpu.memory_space<vmem>>, vector<1x1x64xf32>
    %625 = vector.shape_cast %624 : vector<1x1x64xf32> to vector<1x64xf32>
    %626 = vector.broadcast %625 : vector<1x64xf32> to vector<16x64xf32>
    %627 = arith.addf %623, %626 : vector<16x64xf32>
    %cst_250 = arith.constant 0.000000e+00 : f32
    %628 = vector.broadcast %cst_250 : f32 to vector<16x64xf32>
    %629 = arith.maximumf %627, %628 : vector<16x64xf32>
    %c1_251 = arith.constant 1 : index
    %c0_252 = arith.constant 0 : index
    %c0_253 = arith.constant 0 : index
    %630 = vector.load %arg22[%c1_251, %c0_252, %c0_253] : memref<2x64x32xf32, #tpu.memory_space<vmem>>, vector<1x64x32xf32>
    %631 = vector.shape_cast %630 : vector<1x64x32xf32> to vector<64x32xf32>
    %cst_254 = arith.constant dense<0.000000e+00> : vector<16x32xf32>
    %632 = tpu.matmul %629, %631, %cst_254 {dimension_numbers = #tpu.dot_dimension_numbers<[1], [0], [0], [1], [0, 0, 1, 1], [], []>} : vector<16x64xf32>, vector<64x32xf32>, vector<16x32xf32> -> vector<16x32xf32>
    %c1_255 = arith.constant 1 : index
    %c0_256 = arith.constant 0 : index
    %c0_257 = arith.constant 0 : index
    %633 = vector.load %arg23[%c1_255, %c0_256, %c0_257] : memref<2x1x32xf32, #tpu.memory_space<vmem>>, vector<1x1x32xf32>
    %634 = vector.shape_cast %633 : vector<1x1x32xf32> to vector<1x32xf32>
    %635 = vector.broadcast %634 : vector<1x32xf32> to vector<16x32xf32>
    %636 = arith.addf %632, %635 : vector<16x32xf32>
    %637 = arith.addf %620, %636 : vector<16x32xf32>
    %c1_258 = arith.constant 1 : index
    %c0_259 = arith.constant 0 : index
    %c0_260 = arith.constant 0 : index
    %638 = vector.load %arg18[%c1_258, %c0_259, %c0_260] : memref<2x1x32xf32, #tpu.memory_space<vmem>>, vector<1x1x32xf32>
    %639 = vector.shape_cast %638 : vector<1x1x32xf32> to vector<1x32xf32>
    %c1_261 = arith.constant 1 : index
    %c0_262 = arith.constant 0 : index
    %c0_263 = arith.constant 0 : index
    %640 = vector.load %arg19[%c1_261, %c0_262, %c0_263] : memref<2x1x32xf32, #tpu.memory_space<vmem>>, vector<1x1x32xf32>
    %641 = vector.shape_cast %640 : vector<1x1x32xf32> to vector<1x32xf32>
    %cst_264 = arith.constant dense<0.000000e+00> : vector<16xf32>
    %642 = vector.multi_reduction <add>, %637, %cst_264 [1] : vector<16x32xf32> to vector<16xf32>
    %643 = vector.shape_cast %642 : vector<16xf32> to vector<16x1xf32>
    %cst_265 = arith.constant 3.200000e+01 : f32
    %644 = vector.broadcast %cst_265 : f32 to vector<16x1xf32>
    %645 = arith.divf %643, %644 : vector<16x1xf32>
    %646 = vector.broadcast %645 : vector<16x1xf32> to vector<16x32xf32>
    %647 = arith.subf %637, %646 : vector<16x32xf32>
    %648 = arith.mulf %647, %647 : vector<16x32xf32>
    %cst_266 = arith.constant dense<0.000000e+00> : vector<16xf32>
    %649 = vector.multi_reduction <add>, %648, %cst_266 [1] : vector<16x32xf32> to vector<16xf32>
    %650 = vector.shape_cast %649 : vector<16xf32> to vector<16x1xf32>
    %cst_267 = arith.constant 3.200000e+01 : f32
    %651 = vector.broadcast %cst_267 : f32 to vector<16x1xf32>
    %652 = arith.divf %650, %651 : vector<16x1xf32>
    %653 = vector.broadcast %645 : vector<16x1xf32> to vector<16x32xf32>
    %654 = arith.subf %637, %653 : vector<16x32xf32>
    %cst_268 = arith.constant 9.99999974E-6 : f32
    %655 = vector.broadcast %cst_268 : f32 to vector<16x1xf32>
    %656 = arith.addf %652, %655 : vector<16x1xf32>
    %657 = math.rsqrt %656 : vector<16x1xf32>
    %658 = vector.broadcast %657 : vector<16x1xf32> to vector<16x32xf32>
    %659 = arith.mulf %654, %658 : vector<16x32xf32>
    %660 = vector.broadcast %639 : vector<1x32xf32> to vector<16x32xf32>
    %661 = arith.mulf %659, %660 : vector<16x32xf32>
    %662 = vector.broadcast %641 : vector<1x32xf32> to vector<16x32xf32>
    %663 = arith.addf %661, %662 : vector<16x32xf32>
    %664 = vector.shape_cast %663 : vector<16x32xf32> to vector<2x8x32xf32>
    %c0_269 = arith.constant 0 : index
    %c0_270 = arith.constant 0 : index
    %c0_271 = arith.constant 0 : index
    %665 = vector.load %arg24[%c0_269, %c0_270, %c0_271] : memref<2x8x32xf32, #tpu.memory_space<vmem>>, vector<2x8x32xf32>
    tpu.vector_store %arg24[%c0_269, %c0_270, %c0_271], %664 {strides = array<i32>} : memref<2x8x32xf32, #tpu.memory_space<vmem>>, vector<2x8x32xf32>,
    return
  }
}

</mosaic_0001>

<llo_original>
// kernel: utterance_decoder_forward.1
$region0: #{utterance_decoder_forward.1}
  #allocation0 [shape = 'u32[]', space=smem, size = 0x4, offset = 0x4, fixed_abs, tag = 'smem constant byte address 0x4 - core index']
  #allocation1 [shape = 'u32[72,128]{1,0:T(1,128)}', space=vmem, size = 0x9000, scoped, tag = 'internal scratch']
  %s0 = inlined_call_operand.vmem [shape: f32[2,8,32], index: 0, kind: input, shape index: {}]
  %s1 = inlined_call_operand.vmem [shape: f32[2,16,32], index: 1, kind: input, shape index: {}]
  %s2 = inlined_call_operand.vmem [shape: f32[2,8], index: 2, kind: input, shape index: {}]
  %s3 = inlined_call_operand.vmem [shape: f32[2,16], index: 3, kind: input, shape index: {}]
  %s4 = inlined_call_operand.vmem [shape: f32[2,32,96], index: 4, kind: input, shape index: {}]
  %s5 = inlined_call_operand.vmem [shape: f32[2,1,96], index: 5, kind: input, shape index: {}]
  %s6 = inlined_call_operand.vmem [shape: f32[2,32,32], index: 6, kind: input, shape index: {}]
  %s7 = inlined_call_operand.vmem [shape: f32[2,1,32], index: 7, kind: input, shape index: {}]
  %s8 = inlined_call_operand.vmem [shape: f32[2,32,32], index: 8, kind: input, shape index: {}]
  %s9 = inlined_call_operand.vmem [shape: f32[2,1,32], index: 9, kind: input, shape index: {}]
  %s10 = inlined_call_operand.vmem [shape: f32[2,32,64], index: 10, kind: input, shape index: {}]
  %s11 = inlined_call_operand.vmem [shape: f32[2,1,64], index: 11, kind: input, shape index: {}]
  %s12 = inlined_call_operand.vmem [shape: f32[2,32,32], index: 12, kind: input, shape index: {}]
  %s13 = inlined_call_operand.vmem [shape: f32[2,1,32], index: 13, kind: input, shape index: {}]
  %s14 = inlined_call_operand.vmem [shape: f32[2,1,32], index: 14, kind: input, shape index: {}]
  %s15 = inlined_call_operand.vmem [shape: f32[2,1,32], index: 15, kind: input, shape index: {}]
  %s16 = inlined_call_operand.vmem [shape: f32[2,1,32], index: 16, kind: input, shape index: {}]
  %s17 = inlined_call_operand.vmem [shape: f32[2,1,32], index: 17, kind: input, shape index: {}]
  %s18 = inlined_call_operand.vmem [shape: f32[2,1,32], index: 18, kind: input, shape index: {}]
  %s19 = inlined_call_operand.vmem [shape: f32[2,1,32], index: 19, kind: input, shape index: {}]
  %s20 = inlined_call_operand.vmem [shape: f32[2,32,64], index: 20, kind: input, shape index: {}]
  %s21 = inlined_call_operand.vmem [shape: f32[2,1,64], index: 21, kind: input, shape index: {}]
  %s22 = inlined_call_operand.vmem [shape: f32[2,64,32], index: 22, kind: input, shape index: {}]
  %s23 = inlined_call_operand.vmem [shape: f32[2,1,32], index: 23, kind: input, shape index: {}]
  %s24 = inlined_call_operand.hbm [shape: f32[2,8,32], index: 24, kind: output, shape index: {}]
  %s25 = sld [smem:[#allocation0]]
  $region106: #{utterance_decoder_forward.1} parent=0
    _
  %s27 = ssub.s32 1, %s25
  %s28 = scalar_select 0, %s27, %s25
  $region1: #{utterance_decoder_forward.1} parent=0
    #allocation2 [shape = 'u8[8192]{0}', space=vmem, size = 0x2000, scoped, tag = 'output window, operand 0, single buffered']
    #allocation3 [shape = 's32[1]{0}', space=sflag, size = 0x4, scoped, tag = 'scoped memory for utterance_decoder_forward.1']
    %29 = vsyncpa [#allocation3], 0
    // Predicated region
    $region2: #{utterance_decoder_forward.1} parent=1 // pred_check
      _
    $region3: #{utterance_decoder_forward.1} parent=1 // pred_check_branch
      %31 = sbr.rel (0) target = $region5
    $region4: #{utterance_decoder_forward.1} parent=1 // pred_region
      _
    $region5: #{utterance_decoder_forward.1} parent=1 // pred_fallthru
      _
    // Predicated region
    $region6: #{utterance_decoder_forward.1} parent=1 // pred_check
      _
    $region7: #{utterance_decoder_forward.1} parent=1 // pred_check_branch
      %33 = sbr.rel (0) target = $region9
    $region8: #{utterance_decoder_forward.1} parent=1 // pred_region
      _
    $region9: #{utterance_decoder_forward.1} parent=1 // pred_fallthru
      _
    // Predicated region
    $region10: #{utterance_decoder_forward.1} parent=1 // pred_check
      _
    $region11: #{utterance_decoder_forward.1} parent=1 // pred_check_branch
      %35 = sbr.rel (0) target = $region13
    $region12: #{utterance_decoder_forward.1} parent=1 // pred_region
      _
    $region13: #{utterance_decoder_forward.1} parent=1 // pred_fallthru
      _
    // Predicated region
    $region14: #{utterance_decoder_forward.1} parent=1 // pred_check
      _
    $region15: #{utterance_decoder_forward.1} parent=1 // pred_check_branch
      %37 = sbr.rel (0) target = $region17
    $region16: #{utterance_decoder_forward.1} parent=1 // pred_region
      _
    $region17: #{utterance_decoder_forward.1} parent=1 // pred_fallthru
      _
    // Predicated region
    $region18: #{utterance_decoder_forward.1} parent=1 // pred_check
      _
    $region19: #{utterance_decoder_forward.1} parent=1 // pred_check_branch
      %39 = sbr.rel (0) target = $region21
    $region20: #{utterance_decoder_forward.1} parent=1 // pred_region
      _
    $region21: #{utterance_decoder_forward.1} parent=1 // pred_fallthru
      _
    // Predicated region
    $region22: #{utterance_decoder_forward.1} parent=1 // pred_check
      _
    $region23: #{utterance_decoder_forward.1} parent=1 // pred_check_branch
      %41 = sbr.rel (0) target = $region25
    $region24: #{utterance_decoder_forward.1} parent=1 // pred_region
      _
    $region25: #{utterance_decoder_forward.1} parent=1 // pred_fallthru
      _
    // Predicated region
    $region26: #{utterance_decoder_forward.1} parent=1 // pred_check
      _
    $region27: #{utterance_decoder_forward.1} parent=1 // pred_check_branch
      %43 = sbr.rel (0) target = $region29
    $region28: #{utterance_decoder_forward.1} parent=1 // pred_region
      _
    $region29: #{utterance_decoder_forward.1} parent=1 // pred_fallthru
      _
    // Predicated region
    $region30: #{utterance_decoder_forward.1} parent=1 // pred_check
      _
    $region31: #{utterance_decoder_forward.1} parent=1 // pred_check_branch
      %45 = sbr.rel (0) target = $region33
    $region32: #{utterance_decoder_forward.1} parent=1 // pred_region
      _
    $region33: #{utterance_decoder_forward.1} parent=1 // pred_fallthru
      _
    // Predicated region
    $region34: #{utterance_decoder_forward.1} parent=1 // pred_check
      _
    $region35: #{utterance_decoder_forward.1} parent=1 // pred_check_branch
      %47 = sbr.rel (0) target = $region37
    $region36: #{utterance_decoder_forward.1} parent=1 // pred_region
      _
    $region37: #{utterance_decoder_forward.1} parent=1 // pred_fallthru
      _
    // Predicated region
    $region38: #{utterance_decoder_forward.1} parent=1 // pred_check
      _
    $region39: #{utterance_decoder_forward.1} parent=1 // pred_check_branch
      %49 = sbr.rel (0) target = $region41
    $region40: #{utterance_decoder_forward.1} parent=1 // pred_region
      _
    $region41: #{utterance_decoder_forward.1} parent=1 // pred_fallthru
      _
    // Predicated region
    $region42: #{utterance_decoder_forward.1} parent=1 // pred_check
      _
    $region43: #{utterance_decoder_forward.1} parent=1 // pred_check_branch
      %51 = sbr.rel (0) target = $region45
    $region44: #{utterance_decoder_forward.1} parent=1 // pred_region
      _
    $region45: #{utterance_decoder_forward.1} parent=1 // pred_fallthru
      _
    // Predicated region
    $region46: #{utterance_decoder_forward.1} parent=1 // pred_check
      _
    $region47: #{utterance_decoder_forward.1} parent=1 // pred_check_branch
      %53 = sbr.rel (0) target = $region49
    $region48: #{utterance_decoder_forward.1} parent=1 // pred_region
      _
    $region49: #{utterance_decoder_forward.1} parent=1 // pred_fallthru
      _
    // Predicated region
    $region50: #{utterance_decoder_forward.1} parent=1 // pred_check
      _
    $region51: #{utterance_decoder_forward.1} parent=1 // pred_check_branch
      %55 = sbr.rel (0) target = $region53
    $region52: #{utterance_decoder_forward.1} parent=1 // pred_region
      _
    $region53: #{utterance_decoder_forward.1} parent=1 // pred_fallthru
      _
    // Predicated region
    $region54: #{utterance_decoder_forward.1} parent=1 // pred_check
      _
    $region55: #{utterance_decoder_forward.1} parent=1 // pred_check_branch
      %57 = sbr.rel (0) target = $region57
    $region56: #{utterance_decoder_forward.1} parent=1 // pred_region
      _
    $region57: #{utterance_decoder_forward.1} parent=1 // pred_fallthru
      _
    // Predicated region
    $region58: #{utterance_decoder_forward.1} parent=1 // pred_check
      _
    $region59: #{utterance_decoder_forward.1} parent=1 // pred_check_branch
      %59 = sbr.rel (0) target = $region61
    $region60: #{utterance_decoder_forward.1} parent=1 // pred_region
      _
    $region61: #{utterance_decoder_forward.1} parent=1 // pred_fallthru
      _
    // Predicated region
    $region62: #{utterance_decoder_forward.1} parent=1 // pred_check
      _
    $region63: #{utterance_decoder_forward.1} parent=1 // pred_check_branch
      %61 = sbr.rel (0) target = $region65
    $region64: #{utterance_decoder_forward.1} parent=1 // pred_region
      _
    $region65: #{utterance_decoder_forward.1} parent=1 // pred_fallthru
      _
    // Predicated region
    $region66: #{utterance_decoder_forward.1} parent=1 // pred_check
      _
    $region67: #{utterance_decoder_forward.1} parent=1 // pred_check_branch
      %63 = sbr.rel (0) target = $region69
    $region68: #{utterance_decoder_forward.1} parent=1 // pred_region
      _
    $region69: #{utterance_decoder_forward.1} parent=1 // pred_fallthru
      _
    // Predicated region
    $region70: #{utterance_decoder_forward.1} parent=1 // pred_check
      _
    $region71: #{utterance_decoder_forward.1} parent=1 // pred_check_branch
      %65 = sbr.rel (0) target = $region73
    $region72: #{utterance_decoder_forward.1} parent=1 // pred_region
      _
    $region73: #{utterance_decoder_forward.1} parent=1 // pred_fallthru
      _
    // Predicated region
    $region74: #{utterance_decoder_forward.1} parent=1 // pred_check
      _
    $region75: #{utterance_decoder_forward.1} parent=1 // pred_check_branch
      %67 = sbr.rel (0) target = $region77
    $region76: #{utterance_decoder_forward.1} parent=1 // pred_region
      _
    $region77: #{utterance_decoder_forward.1} parent=1 // pred_fallthru
      _
    // Predicated region
    $region78: #{utterance_decoder_forward.1} parent=1 // pred_check
      _
    $region79: #{utterance_decoder_forward.1} parent=1 // pred_check_branch
      %69 = sbr.rel (0) target = $region81
    $region80: #{utterance_decoder_forward.1} parent=1 // pred_region
      _
    $region81: #{utterance_decoder_forward.1} parent=1 // pred_fallthru
      _
    // Predicated region
    $region82: #{utterance_decoder_forward.1} parent=1 // pred_check
      _
    $region83: #{utterance_decoder_forward.1} parent=1 // pred_check_branch
      %71 = sbr.rel (0) target = $region85
    $region84: #{utterance_decoder_forward.1} parent=1 // pred_region
      _
    $region85: #{utterance_decoder_forward.1} parent=1 // pred_fallthru
      _
    // Predicated region
    $region86: #{utterance_decoder_forward.1} parent=1 // pred_check
      _
    $region87: #{utterance_decoder_forward.1} parent=1 // pred_check_branch
      %73 = sbr.rel (0) target = $region89
    $region88: #{utterance_decoder_forward.1} parent=1 // pred_region
      _
    $region89: #{utterance_decoder_forward.1} parent=1 // pred_fallthru
      _
    // Predicated region
    $region90: #{utterance_decoder_forward.1} parent=1 // pred_check
      _
    $region91: #{utterance_decoder_forward.1} parent=1 // pred_check_branch
      %75 = sbr.rel (0) target = $region93
    $region92: #{utterance_decoder_forward.1} parent=1 // pred_region
      _
    $region93: #{utterance_decoder_forward.1} parent=1 // pred_fallthru
      _
    // Predicated region
    $region94: #{utterance_decoder_forward.1} parent=1 // pred_check
      _
    $region95: #{utterance_decoder_forward.1} parent=1 // pred_check_branch
      %77 = sbr.rel (0) target = $region97
    $region96: #{utterance_decoder_forward.1} parent=1 // pred_region
      _
    $region97: #{utterance_decoder_forward.1} parent=1 // pred_fallthru
      _
    %v78 = vld [vmem:[%s0] sm:$0xff]
    %v79 = vld [vmem:[%s0 + $0x8] sm:$0xff]
    %v80 = vld [vmem:[%s1] sm:$0xff]
    %v81 = vld [vmem:[%s1 + $0x8] sm:$0xff]
    %v82 = vld [vmem:[%s1 + $0x10] sm:$0xff]
    %v83 = vld [vmem:[%s1 + $0x18] sm:$0xff]
    %v84 = vld [vmem:[%s2] sm:$0x3]
    %v85 = vld [vmem:[%s3] sm:$0x3]
    %v86 = vld [vmem:[%s4] sm:$0xff]
    %v87 = vld [vmem:[%s4 + $0x8] sm:$0xff]
    %v88 = vld [vmem:[%s4 + $0x10] sm:$0xff]
    %v89 = vld [vmem:[%s4 + $0x18] sm:$0xff]
    %v90 = vld [vmem:[%s5] sm:$0x1]
    %v92 = vperm.slane %v90, 0
    %vm94 = vcmask 261120
    %v96 = vsel %vm94, %v78, 0
    %v99 = vsel %vm94, %v79, 0
    %101 = vmatpush.msra.mxu0 0.0
    %102 = vmatpush.msra.mxu0 0.0
    %103 = vmatpush.msra.mxu0 0.0
    %104 = vmatpush.msra.mxu0 0.0
    %105 = vmatpush.msra.mxu0 0.0
    %106 = vmatpush.msra.mxu0 0.0
    %107 = vmatpush.msra.mxu0 0.0
    %108 = vmatpush.msra.mxu0 0.0
    %109 = vmatpush.msra.mxu0 0.0
    %110 = vmatpush.msra.mxu0 0.0
    %111 = vmatpush.msra.mxu0 0.0
    %112 = vmatpush.msra.mxu0 0.0
    %113 = vmatpush.msra.mxu0 %v89
    %114 = vmatpush.msra.mxu0 %v88
    %115 = vmatpush.msra.mxu0 %v87
    %116 = vmatpush.msra.mxu0 %v86
    %117 = vmatmul.f32.gmra.mxu0 %v96
    %v118 = vpop.f32.mrf.mxu0
    %v119 = vadd.f32 %v92, %v118
    %120 = vmatmul.f32.gmra.mxu0 %v99
    %v121 = vpop.f32.mrf.mxu0
    %v122 = vadd.f32 %v92, %v121
    %123 = vdwg.mxu0
    %v124 = vld [vmem:[%s6] sm:$0xff]
    %v125 = vld [vmem:[%s6 + $0x8] sm:$0xff]
    %v126 = vld [vmem:[%s6 + $0x10] sm:$0xff]
    %v127 = vld [vmem:[%s6 + $0x18] sm:$0xff]
    %v128 = vld [vmem:[%s7] sm:$0x1]
    %v130 = vrot.slane %v84, 1
    %v132 = vperm.slane %v128, 0
    %v134 = vadd.f32 %v132, 0.0
    %136 = vrot.lane.b32.xlu0 %v119, 96
    %v137 = vpop.permute.xlu0 %136
    %vm138 = vcmask 64512
    %v139 = vsel %vm138, %v119, 0
    %v141 = vsel %vm138, %v137, 0
    %143 = vmatpush.xpose.msra.mxu0 0.0
    %144 = vmatpush.xpose.msra.mxu0 0.0
    %145 = vmatpush.xpose.msra.mxu0 0.0
    %146 = vmatpush.xpose.msra.mxu0 0.0
    %147 = vmatpush.xpose.msra.mxu0 0.0
    %148 = vmatpush.xpose.msra.mxu0 0.0
    %149 = vmatpush.xpose.msra.mxu0 0.0
    %150 = vmatpush.xpose.msra.mxu0 0.0
    %151 = vmatpush.xpose.msra.mxu0 0.0
    %152 = vmatpush.xpose.msra.mxu0 0.0
    %153 = vmatpush.xpose.msra.mxu0 0.0
    %154 = vmatpush.xpose.msra.mxu0 0.0
    %155 = vmatpush.xpose.msra.mxu0 0.0
    %156 = vmatpush.xpose.msra.mxu0 0.0
    %157 = vmatpush.xpose.msra.mxu0 0.0
    %158 = vmatpush.xpose.msra.mxu0 %v141
    %159 = vmatmul.f32.gmra.mxu0 %v139
    %v160 = vpop.f32.mrf.mxu0
    %v161 = vadd.f32 0.0, %v160
    %162 = vdwg.mxu0
    %164 = vrot.lane.b32.xlu0 %v122, 96
    %v165 = vpop.permute.xlu0 %164
    %v166 = vsel %vm138, %v122, 0
    %v168 = vsel %vm138, %v165, 0
    %170 = vmatpush.xpose.msra.mxu0 0.0
    %171 = vmatpush.xpose.msra.mxu0 0.0
    %172 = vmatpush.xpose.msra.mxu0 0.0
    %173 = vmatpush.xpose.msra.mxu0 0.0
    %174 = vmatpush.xpose.msra.mxu0 0.0
    %175 = vmatpush.xpose.msra.mxu0 0.0
    %176 = vmatpush.xpose.msra.mxu0 0.0
    %177 = vmatpush.xpose.msra.mxu0 0.0
    %178 = vmatpush.xpose.msra.mxu0 0.0
    %179 = vmatpush.xpose.msra.mxu0 0.0
    %180 = vmatpush.xpose.msra.mxu0 0.0
    %181 = vmatpush.xpose.msra.mxu0 0.0
    %182 = vmatpush.xpose.msra.mxu0 0.0
    %183 = vmatpush.xpose.msra.mxu0 0.0
    %184 = vmatpush.xpose.msra.mxu0 0.0
    %185 = vmatpush.xpose.msra.mxu0 %v168
    %186 = vmatmul.f32.gmra.mxu0 %v166
    %v187 = vpop.f32.mrf.mxu0
    %v188 = vadd.f32 0.0, %v187
    %189 = vdwg.mxu0
    %v190 = vmul.f32 %v161, 0.35355338
    %v191 = vmul.f32 %v188, 0.35355338
    %v192 = vperm.slane %v84, 0
    %v193 = vperm.slane %v130, 0
    %v196 = vadd.f32 %v190, %v192
    %v197 = vadd.f32 %v191, %v193
    %v198 = vsel %vm138, %v196, -inf
    %199 = vmax.xlane.f32.xlu0 %v198
    %v200 = vpop.xlane.xlu0 %199
    %v201 = vsel %vm138, %v197, -inf
    %202 = vmax.xlane.f32.xlu0 %v201
    %v203 = vpop.xlane.xlu0 %202
    %v204 = vsub.f32 %v196, %v200
    %v205 = vsub.f32 %v197, %v203
    %v206 = vmul.f32 %v204, 1.442695
    %v207 = vpow.pop %v206
    %v208 = vmul.f32 %v205, 1.442695
    %v209 = vpow.pop %v208
    %v210 = vsel %vm138, %v207, 0.0
    %211 = vadd.xlane.f32.xlu0 %v210
    %v212 = vpop.xlane.xlu0 %211
    %v213 = vsel %vm138, %v209, 0.0
    %214 = vadd.xlane.f32.xlu0 %v213
    %v215 = vpop.xlane.xlu0 %214
    %v216 = vrcp.pop %v212
    %v217 = vmul.f32 %v212, %v216
    %v218 = vsub.f32 1.0, %v217
    %v219 = vmul.f32 %v216, %v218
    %v220 = vadd.f32 %v216, %v219
    %vm221 = vweird.f32 %v212
    %vm222 = vweird.f32 %v216
    %vm223 = vmor %vm221, %vm222
    %v224 = vsel %vm223, %v216, %v220
    %v225 = vand.u32 2147483647, %v212
    %vm226 = vcmp.eq.f32.partialorder %v225, 8.507059e+37
    %v227 = vand.u32 %v212, 2147483648
    %v228 = vor.u32 1.1754944e-38, %v227
    %v229 = vsel %vm226, %v228, %v224
    %v230 = vrcp.pop %v215
    %v231 = vmul.f32 %v215, %v230
    %v232 = vsub.f32 1.0, %v231
    %v233 = vmul.f32 %v230, %v232
    %v234 = vadd.f32 %v230, %v233
    %vm235 = vweird.f32 %v215
    %vm236 = vweird.f32 %v230
    %vm237 = vmor %vm235, %vm236
    %v238 = vsel %vm237, %v230, %v234
    %v239 = vand.u32 2147483647, %v215
    %vm240 = vcmp.eq.f32.partialorder %v239, 8.507059e+37
    %v241 = vand.u32 %v215, 2147483648
    %v242 = vor.u32 1.1754944e-38, %v241
    %v243 = vsel %vm240, %v242, %v238
    %v244 = vmul.f32 %v207, %v229
    %v245 = vmul.f32 %v209, %v243
    %246 = vrot.lane.b32.xlu0 %v119, 64
    %v247 = vpop.permute.xlu0 %246
    %v250 = vsel %vm138, %v244, 0
    %252 = vmatpush.msra.mxu0 0.0
    %253 = vmatpush.msra.mxu0 0.0
    %254 = vmatpush.msra.mxu0 0.0
    %255 = vmatpush.msra.mxu0 0.0
    %256 = vmatpush.msra.mxu0 0.0
    %257 = vmatpush.msra.mxu0 0.0
    %258 = vmatpush.msra.mxu0 0.0
    %259 = vmatpush.msra.mxu0 0.0
    %260 = vmatpush.msra.mxu0 0.0
    %261 = vmatpush.msra.mxu0 0.0
    %262 = vmatpush.msra.mxu0 0.0
    %263 = vmatpush.msra.mxu0 0.0
    %264 = vmatpush.msra.mxu0 0.0
    %265 = vmatpush.msra.mxu0 0.0
    %266 = vmatpush.msra.mxu0 0.0
    %267 = vmatpush.msra.mxu0 %v247
    %268 = vmatmul.f32.gmra.mxu0 %v250
    %v269 = vpop.f32.mrf.mxu0
    %v270 = vadd.f32 0.0, %v269
    %271 = vdwg.mxu0
    %272 = vrot.lane.b32.xlu0 %v122, 64
    %v273 = vpop.permute.xlu0 %272
    %v276 = vsel %vm138, %v245, 0
    %278 = vmatpush.msra.mxu0 0.0
    %279 = vmatpush.msra.mxu0 0.0
    %280 = vmatpush.msra.mxu0 0.0
    %281 = vmatpush.msra.mxu0 0.0
    %282 = vmatpush.msra.mxu0 0.0
    %283 = vmatpush.msra.mxu0 0.0
    %284 = vmatpush.msra.mxu0 0.0
    %285 = vmatpush.msra.mxu0 0.0
    %286 = vmatpush.msra.mxu0 0.0
    %287 = vmatpush.msra.mxu0 0.0
    %288 = vmatpush.msra.mxu0 0.0
    %289 = vmatpush.msra.mxu0 0.0
    %290 = vmatpush.msra.mxu0 0.0
    %291 = vmatpush.msra.mxu0 0.0
    %292 = vmatpush.msra.mxu0 0.0
    %293 = vmatpush.msra.mxu0 %v273
    %294 = vmatmul.f32.gmra.mxu0 %v276
    %v295 = vpop.f32.mrf.mxu0
    %v296 = vadd.f32 0.0, %v295
    %297 = vdwg.mxu0
    %v299 = vsel %vm138, %v270, 0
    %v302 = vsel %vm138, %v296, 0
    %304 = vmatpush.msra.mxu0 0.0
    %305 = vmatpush.msra.mxu0 0.0
    %306 = vmatpush.msra.mxu0 0.0
    %307 = vmatpush.msra.mxu0 0.0
    %308 = vmatpush.msra.mxu0 0.0
    %309 = vmatpush.msra.mxu0 0.0
    %310 = vmatpush.msra.mxu0 0.0
    %311 = vmatpush.msra.mxu0 0.0
    %312 = vmatpush.msra.mxu0 0.0
    %313 = vmatpush.msra.mxu0 0.0
    %314 = vmatpush.msra.mxu0 0.0
    %315 = vmatpush.msra.mxu0 0.0
    %316 = vmatpush.msra.mxu0 0.0
    %317 = vmatpush.msra.mxu0 0.0
    %318 = vmatpush.msra.mxu0 0.0
    %319 = vmatpush.msra.mxu0 %v124
    %320 = vmatmul.f32.gmra.mxu0 %v299
    %v321 = vpop.f32.mrf.mxu0
    %v322 = vadd.f32 0.0, %v321
    %323 = vmatmul.f32.gmra.mxu0 %v302
    %v324 = vpop.f32.mrf.mxu0
    %v325 = vadd.f32 0.0, %v324
    %326 = vdwg.mxu0
    %v327 = vadd.f32 %v134, %v322
    %v328 = vadd.f32 %v134, %v325
    %329 = vrot.lane.b32.xlu0 %v119, 120
    %v330 = vpop.permute.xlu0 %329
    %331 = vrot.lane.b32.xlu0 %v119, 88
    %v332 = vpop.permute.xlu0 %331
    %v333 = vsel %vm138, %v330, 0
    %v335 = vsel %vm138, %v332, 0
    %337 = vmatpush.xpose.msra.mxu0 0.0
    %338 = vmatpush.xpose.msra.mxu0 0.0
    %339 = vmatpush.xpose.msra.mxu0 0.0
    %340 = vmatpush.xpose.msra.mxu0 0.0
    %341 = vmatpush.xpose.msra.mxu0 0.0
    %342 = vmatpush.xpose.msra.mxu0 0.0
    %343 = vmatpush.xpose.msra.mxu0 0.0
    %344 = vmatpush.xpose.msra.mxu0 0.0
    %345 = vmatpush.xpose.msra.mxu0 0.0
    %346 = vmatpush.xpose.msra.mxu0 0.0
    %347 = vmatpush.xpose.msra.mxu0 0.0
    %348 = vmatpush.xpose.msra.mxu0 0.0
    %349 = vmatpush.xpose.msra.mxu0 0.0
    %350 = vmatpush.xpose.msra.mxu0 0.0
    %351 = vmatpush.xpose.msra.mxu0 0.0
    %352 = vmatpush.xpose.msra.mxu0 %v335
    %353 = vmatmul.f32.gmra.mxu0 %v333
    %v354 = vpop.f32.mrf.mxu0
    %v355 = vadd.f32 0.0, %v354
    %356 = vdwg.mxu0
    %357 = vrot.lane.b32.xlu0 %v122, 120
    %v358 = vpop.permute.xlu0 %357
    %359 = vrot.lane.b32.xlu0 %v122, 88
    %v360 = vpop.permute.xlu0 %359
    %v361 = vsel %vm138, %v358, 0
    %v363 = vsel %vm138, %v360, 0
    %365 = vmatpush.xpose.msra.mxu0 0.0
    %366 = vmatpush.xpose.msra.mxu0 0.0
    %367 = vmatpush.xpose.msra.mxu0 0.0
    %368 = vmatpush.xpose.msra.mxu0 0.0
    %369 = vmatpush.xpose.msra.mxu0 0.0
    %370 = vmatpush.xpose.msra.mxu0 0.0
    %371 = vmatpush.xpose.msra.mxu0 0.0
    %372 = vmatpush.xpose.msra.mxu0 0.0
    %373 = vmatpush.xpose.msra.mxu0 0.0
    %374 = vmatpush.xpose.msra.mxu0 0.0
    %375 = vmatpush.xpose.msra.mxu0 0.0
    %376 = vmatpush.xpose.msra.mxu0 0.0
    %377 = vmatpush.xpose.msra.mxu0 0.0
    %378 = vmatpush.xpose.msra.mxu0 0.0
    %379 = vmatpush.xpose.msra.mxu0 0.0
    %380 = vmatpush.xpose.msra.mxu0 %v363
    %381 = vmatmul.f32.gmra.mxu0 %v361
    %v382 = vpop.f32.mrf.mxu0
    %v383 = vadd.f32 0.0, %v382
    %384 = vdwg.mxu0
    %v385 = vmul.f32 %v355, 0.35355338
    %v386 = vmul.f32 %v383, 0.35355338
    %v387 = vadd.f32 %v385, %v192
    %v388 = vadd.f32 %v386, %v193
    %v389 = vsel %vm138, %v387, -inf
    %390 = vmax.xlane.f32.xlu0 %v389
    %v391 = vpop.xlane.xlu0 %390
    %v392 = vsel %vm138, %v388, -inf
    %393 = vmax.xlane.f32.xlu0 %v392
    %v394 = vpop.xlane.xlu0 %393
    %v395 = vsub.f32 %v387, %v391
    %v396 = vsub.f32 %v388, %v394
    %v397 = vmul.f32 %v395, 1.442695
    %v398 = vpow.pop %v397
    %v399 = vmul.f32 %v396, 1.442695
    %v400 = vpow.pop %v399
    %v401 = vsel %vm138, %v398, 0.0
    %402 = vadd.xlane.f32.xlu0 %v401
    %v403 = vpop.xlane.xlu0 %402
    %v404 = vsel %vm138, %v400, 0.0
    %405 = vadd.xlane.f32.xlu0 %v404
    %v406 = vpop.xlane.xlu0 %405
    %v407 = vrcp.pop %v403
    %v408 = vmul.f32 %v403, %v407
    %v409 = vsub.f32 1.0, %v408
    %v410 = vmul.f32 %v407, %v409
    %v411 = vadd.f32 %v407, %v410
    %vm412 = vweird.f32 %v403
    %vm413 = vweird.f32 %v407
    %vm414 = vmor %vm412, %vm413
    %v415 = vsel %vm414, %v407, %v411
    %v416 = vand.u32 2147483647, %v403
    %vm417 = vcmp.eq.f32.partialorder %v416, 8.507059e+37
    %v418 = vand.u32 %v403, 2147483648
    %v419 = vor.u32 1.1754944e-38, %v418
    %v420 = vsel %vm417, %v419, %v415
    %v421 = vrcp.pop %v406
    %v422 = vmul.f32 %v406, %v421
    %v423 = vsub.f32 1.0, %v422
    %v424 = vmul.f32 %v421, %v423
    %v425 = vadd.f32 %v421, %v424
    %vm426 = vweird.f32 %v406
    %vm427 = vweird.f32 %v421
    %vm428 = vmor %vm426, %vm427
    %v429 = vsel %vm428, %v421, %v425
    %v430 = vand.u32 2147483647, %v406
    %vm431 = vcmp.eq.f32.partialorder %v430, 8.507059e+37
    %v432 = vand.u32 %v406, 2147483648
    %v433 = vor.u32 1.1754944e-38, %v432
    %v434 = vsel %vm431, %v433, %v429
    %v435 = vmul.f32 %v398, %v420
    %v436 = vmul.f32 %v400, %v434
    %437 = vrot.lane.b32.xlu0 %v119, 56
    %v438 = vpop.permute.xlu0 %437
    %v441 = vsel %vm138, %v435, 0
    %443 = vmatpush.msra.mxu0 0.0
    %444 = vmatpush.msra.mxu0 0.0
    %445 = vmatpush.msra.mxu0 0.0
    %446 = vmatpush.msra.mxu0 0.0
    %447 = vmatpush.msra.mxu0 0.0
    %448 = vmatpush.msra.mxu0 0.0
    %449 = vmatpush.msra.mxu0 0.0
    %450 = vmatpush.msra.mxu0 0.0
    %451 = vmatpush.msra.mxu0 0.0
    %452 = vmatpush.msra.mxu0 0.0
    %453 = vmatpush.msra.mxu0 0.0
    %454 = vmatpush.msra.mxu0 0.0
    %455 = vmatpush.msra.mxu0 0.0
    %456 = vmatpush.msra.mxu0 0.0
    %457 = vmatpush.msra.mxu0 0.0
    %458 = vmatpush.msra.mxu0 %v438
    %459 = vmatmul.f32.gmra.mxu0 %v441
    %v460 = vpop.f32.mrf.mxu0
    %v461 = vadd.f32 0.0, %v460
    %462 = vdwg.mxu0
    %463 = vrot.lane.b32.xlu0 %v122, 56
    %v464 = vpop.permute.xlu0 %463
    %v467 = vsel %vm138, %v436, 0
    %469 = vmatpush.msra.mxu0 0.0
    %470 = vmatpush.msra.mxu0 0.0
    %471 = vmatpush.msra.mxu0 0.0
    %472 = vmatpush.msra.mxu0 0.0
    %473 = vmatpush.msra.mxu0 0.0
    %474 = vmatpush.msra.mxu0 0.0
    %475 = vmatpush.msra.mxu0 0.0
    %476 = vmatpush.msra.mxu0 0.0
    %477 = vmatpush.msra.mxu0 0.0
    %478 = vmatpush.msra.mxu0 0.0
    %479 = vmatpush.msra.mxu0 0.0
    %480 = vmatpush.msra.mxu0 0.0
    %481 = vmatpush.msra.mxu0 0.0
    %482 = vmatpush.msra.mxu0 0.0
    %483 = vmatpush.msra.mxu0 0.0
    %484 = vmatpush.msra.mxu0 %v464
    %485 = vmatmul.f32.gmra.mxu0 %v467
    %v486 = vpop.f32.mrf.mxu0
    %v487 = vadd.f32 0.0, %v486
    %488 = vdwg.mxu0
    %v490 = vsel %vm138, %v461, 0
    %v493 = vsel %vm138, %v487, 0
    %495 = vmatpush.msra.mxu0 0.0
    %496 = vmatpush.msra.mxu0 0.0
    %497 = vmatpush.msra.mxu0 0.0
    %498 = vmatpush.msra.mxu0 0.0
    %499 = vmatpush.msra.mxu0 0.0
    %500 = vmatpush.msra.mxu0 0.0
    %501 = vmatpush.msra.mxu0 0.0
    %502 = vmatpush.msra.mxu0 0.0
    %503 = vmatpush.msra.mxu0 0.0
    %504 = vmatpush.msra.mxu0 0.0
    %505 = vmatpush.msra.mxu0 0.0
    %506 = vmatpush.msra.mxu0 0.0
    %507 = vmatpush.msra.mxu0 0.0
    %508 = vmatpush.msra.mxu0 0.0
    %509 = vmatpush.msra.mxu0 0.0
    %510 = vmatpush.msra.mxu0 %v125
    %511 = vmatmul.f32.gmra.mxu0 %v490
    %v512 = vpop.f32.mrf.mxu0
    %v513 = vadd.f32 0.0, %v512
    %514 = vmatmul.f32.gmra.mxu0 %v493
    %v515 = vpop.f32.mrf.mxu0
    %v516 = vadd.f32 0.0, %v515
    %517 = vdwg.mxu0
    %v518 = vadd.f32 %v327, %v513
    %v519 = vadd.f32 %v328, %v516
    %520 = vrot.lane.b32.xlu0 %v119, 112
    %v521 = vpop.permute.xlu0 %520
    %522 = vrot.lane.b32.xlu0 %v119, 80
    %v523 = vpop.permute.xlu0 %522
    %v524 = vsel %vm138, %v521, 0
    %v526 = vsel %vm138, %v523, 0
    %528 = vmatpush.xpose.msra.mxu0 0.0
    %529 = vmatpush.xpose.msra.mxu0 0.0
    %530 = vmatpush.xpose.msra.mxu0 0.0
    %531 = vmatpush.xpose.msra.mxu0 0.0
    %532 = vmatpush.xpose.msra.mxu0 0.0
    %533 = vmatpush.xpose.msra.mxu0 0.0
    %534 = vmatpush.xpose.msra.mxu0 0.0
    %535 = vmatpush.xpose.msra.mxu0 0.0
    %536 = vmatpush.xpose.msra.mxu0 0.0
    %537 = vmatpush.xpose.msra.mxu0 0.0
    %538 = vmatpush.xpose.msra.mxu0 0.0
    %539 = vmatpush.xpose.msra.mxu0 0.0
    %540 = vmatpush.xpose.msra.mxu0 0.0
    %541 = vmatpush.xpose.msra.mxu0 0.0
    %542 = vmatpush.xpose.msra.mxu0 0.0
    %543 = vmatpush.xpose.msra.mxu0 %v526
    %544 = vmatmul.f32.gmra.mxu0 %v524
    %v545 = vpop.f32.mrf.mxu0
    %v546 = vadd.f32 0.0, %v545
    %547 = vdwg.mxu0
    %548 = vrot.lane.b32.xlu0 %v122, 112
    %v549 = vpop.permute.xlu0 %548
    %550 = vrot.lane.b32.xlu0 %v122, 80
    %v551 = vpop.permute.xlu0 %550
    %v552 = vsel %vm138, %v549, 0
    %v554 = vsel %vm138, %v551, 0
    %556 = vmatpush.xpose.msra.mxu0 0.0
    %557 = vmatpush.xpose.msra.mxu0 0.0
    %558 = vmatpush.xpose.msra.mxu0 0.0
    %559 = vmatpush.xpose.msra.mxu0 0.0
    %560 = vmatpush.xpose.msra.mxu0 0.0
    %561 = vmatpush.xpose.msra.mxu0 0.0
    %562 = vmatpush.xpose.msra.mxu0 0.0
    %563 = vmatpush.xpose.msra.mxu0 0.0
    %564 = vmatpush.xpose.msra.mxu0 0.0
    %565 = vmatpush.xpose.msra.mxu0 0.0
    %566 = vmatpush.xpose.msra.mxu0 0.0
    %567 = vmatpush.xpose.msra.mxu0 0.0
    %568 = vmatpush.xpose.msra.mxu0 0.0
    %569 = vmatpush.xpose.msra.mxu0 0.0
    %570 = vmatpush.xpose.msra.mxu0 0.0
    %571 = vmatpush.xpose.msra.mxu0 %v554
    %572 = vmatmul.f32.gmra.mxu0 %v552
    %v573 = vpop.f32.mrf.mxu0
    %v574 = vadd.f32 0.0, %v573
    %575 = vdwg.mxu0
    %v576 = vmul.f32 %v546, 0.35355338
    %v577 = vmul.f32 %v574, 0.35355338
    %v578 = vadd.f32 %v576, %v192
    %v579 = vadd.f32 %v577, %v193
    %v580 = vsel %vm138, %v578, -inf
    %581 = vmax.xlane.f32.xlu0 %v580
    %v582 = vpop.xlane.xlu0 %581
    %v583 = vsel %vm138, %v579, -inf
    %584 = vmax.xlane.f32.xlu0 %v583
    %v585 = vpop.xlane.xlu0 %584
    %v586 = vsub.f32 %v578, %v582
    %v587 = vsub.f32 %v579, %v585
    %v588 = vmul.f32 %v586, 1.442695
    %v589 = vpow.pop %v588
    %v590 = vmul.f32 %v587, 1.442695
    %v591 = vpow.pop %v590
    %v592 = vsel %vm138, %v589, 0.0
    %593 = vadd.xlane.f32.xlu0 %v592
    %v594 = vpop.xlane.xlu0 %593
    %v595 = vsel %vm138, %v591, 0.0
    %596 = vadd.xlane.f32.xlu0 %v595
    %v597 = vpop.xlane.xlu0 %596
    %v598 = vrcp.pop %v594
    %v599 = vmul.f32 %v594, %v598
    %v600 = vsub.f32 1.0, %v599
    %v601 = vmul.f32 %v598, %v600
    %v602 = vadd.f32 %v598, %v601
    %vm603 = vweird.f32 %v594
    %vm604 = vweird.f32 %v598
    %vm605 = vmor %vm603, %vm604
    %v606 = vsel %vm605, %v598, %v602
    %v607 = vand.u32 2147483647, %v594
    %vm608 = vcmp.eq.f32.partialorder %v607, 8.507059e+37
    %v609 = vand.u32 %v594, 2147483648
    %v610 = vor.u32 1.1754944e-38, %v609
    %v611 = vsel %vm608, %v610, %v606
    %v612 = vrcp.pop %v597
    %v613 = vmul.f32 %v597, %v612
    %v614 = vsub.f32 1.0, %v613
    %v615 = vmul.f32 %v612, %v614
    %v616 = vadd.f32 %v612, %v615
    %vm617 = vweird.f32 %v597
    %vm618 = vweird.f32 %v612
    %vm619 = vmor %vm617, %vm618
    %v620 = vsel %vm619, %v612, %v616
    %v621 = vand.u32 2147483647, %v597
    %vm622 = vcmp.eq.f32.partialorder %v621, 8.507059e+37
    %v623 = vand.u32 %v597, 2147483648
    %v624 = vor.u32 1.1754944e-38, %v623
    %v625 = vsel %vm622, %v624, %v620
    %v626 = vmul.f32 %v589, %v611
    %v627 = vmul.f32 %v591, %v625
    %628 = vrot.lane.b32.xlu0 %v119, 48
    %v629 = vpop.permute.xlu0 %628
    %v632 = vsel %vm138, %v626, 0
    %634 = vmatpush.msra.mxu0 0.0
    %635 = vmatpush.msra.mxu0 0.0
    %636 = vmatpush.msra.mxu0 0.0
    %637 = vmatpush.msra.mxu0 0.0
    %638 = vmatpush.msra.mxu0 0.0
    %639 = vmatpush.msra.mxu0 0.0
    %640 = vmatpush.msra.mxu0 0.0
    %641 = vmatpush.msra.mxu0 0.0
    %642 = vmatpush.msra.mxu0 0.0
    %643 = vmatpush.msra.mxu0 0.0
    %644 = vmatpush.msra.mxu0 0.0
    %645 = vmatpush.msra.mxu0 0.0
    %646 = vmatpush.msra.mxu0 0.0
    %647 = vmatpush.msra.mxu0 0.0
    %648 = vmatpush.msra.mxu0 0.0
    %649 = vmatpush.msra.mxu0 %v629
    %650 = vmatmul.f32.gmra.mxu0 %v632
    %v651 = vpop.f32.mrf.mxu0
    %v652 = vadd.f32 0.0, %v651
    %653 = vdwg.mxu0
    %654 = vrot.lane.b32.xlu0 %v122, 48
    %v655 = vpop.permute.xlu0 %654
    %v658 = vsel %vm138, %v627, 0
    %660 = vmatpush.msra.mxu0 0.0
    %661 = vmatpush.msra.mxu0 0.0
    %662 = vmatpush.msra.mxu0 0.0
    %663 = vmatpush.msra.mxu0 0.0
    %664 = vmatpush.msra.mxu0 0.0
    %665 = vmatpush.msra.mxu0 0.0
    %666 = vmatpush.msra.mxu0 0.0
    %667 = vmatpush.msra.mxu0 0.0
    %668 = vmatpush.msra.mxu0 0.0
    %669 = vmatpush.msra.mxu0 0.0
    %670 = vmatpush.msra.mxu0 0.0
    %671 = vmatpush.msra.mxu0 0.0
    %672 = vmatpush.msra.mxu0 0.0
    %673 = vmatpush.msra.mxu0 0.0
    %674 = vmatpush.msra.mxu0 0.0
    %675 = vmatpush.msra.mxu0 %v655
    %676 = vmatmul.f32.gmra.mxu0 %v658
    %v677 = vpop.f32.mrf.mxu0
    %v678 = vadd.f32 0.0, %v677
    %679 = vdwg.mxu0
    %v681 = vsel %vm138, %v652, 0
    %v684 = vsel %vm138, %v678, 0
    %686 = vmatpush.msra.mxu0 0.0
    %687 = vmatpush.msra.mxu0 0.0
    %688 = vmatpush.msra.mxu0 0.0
    %689 = vmatpush.msra.mxu0 0.0
    %690 = vmatpush.msra.mxu0 0.0
    %691 = vmatpush.msra.mxu0 0.0
    %692 = vmatpush.msra.mxu0 0.0
    %693 = vmatpush.msra.mxu0 0.0
    %694 = vmatpush.msra.mxu0 0.0
    %695 = vmatpush.msra.mxu0 0.0
    %696 = vmatpush.msra.mxu0 0.0
    %697 = vmatpush.msra.mxu0 0.0
    %698 = vmatpush.msra.mxu0 0.0
    %699 = vmatpush.msra.mxu0 0.0
    %700 = vmatpush.msra.mxu0 0.0
    %701 = vmatpush.msra.mxu0 %v126
    %702 = vmatmul.f32.gmra.mxu0 %v681
    %v703 = vpop.f32.mrf.mxu0
    %v704 = vadd.f32 0.0, %v703
    %705 = vmatmul.f32.gmra.mxu0 %v684
    %v706 = vpop.f32.mrf.mxu0
    %v707 = vadd.f32 0.0, %v706
    %708 = vdwg.mxu0
    %v709 = vadd.f32 %v518, %v704
    %v710 = vadd.f32 %v519, %v707
    %711 = vrot.lane.b32.xlu0 %v119, 104
    %v712 = vpop.permute.xlu0 %711
    %713 = vrot.lane.b32.xlu0 %v119, 72
    %v714 = vpop.permute.xlu0 %713
    %v715 = vsel %vm138, %v712, 0
    %v717 = vsel %vm138, %v714, 0
    %719 = vmatpush.xpose.msra.mxu0 0.0
    %720 = vmatpush.xpose.msra.mxu0 0.0
    %721 = vmatpush.xpose.msra.mxu0 0.0
    %722 = vmatpush.xpose.msra.mxu0 0.0
    %723 = vmatpush.xpose.msra.mxu0 0.0
    %724 = vmatpush.xpose.msra.mxu0 0.0
    %725 = vmatpush.xpose.msra.mxu0 0.0
    %726 = vmatpush.xpose.msra.mxu0 0.0
    %727 = vmatpush.xpose.msra.mxu0 0.0
    %728 = vmatpush.xpose.msra.mxu0 0.0
    %729 = vmatpush.xpose.msra.mxu0 0.0
    %730 = vmatpush.xpose.msra.mxu0 0.0
    %731 = vmatpush.xpose.msra.mxu0 0.0
    %732 = vmatpush.xpose.msra.mxu0 0.0
    %733 = vmatpush.xpose.msra.mxu0 0.0
    %734 = vmatpush.xpose.msra.mxu0 %v717
    %735 = vmatmul.f32.gmra.mxu0 %v715
    %v736 = vpop.f32.mrf.mxu0
    %v737 = vadd.f32 0.0, %v736
    %738 = vdwg.mxu0
    %739 = vrot.lane.b32.xlu0 %v122, 104
    %v740 = vpop.permute.xlu0 %739
    %741 = vrot.lane.b32.xlu0 %v122, 72
    %v742 = vpop.permute.xlu0 %741
    %v743 = vsel %vm138, %v740, 0
    %v745 = vsel %vm138, %v742, 0
    %747 = vmatpush.xpose.msra.mxu0 0.0
    %748 = vmatpush.xpose.msra.mxu0 0.0
    %749 = vmatpush.xpose.msra.mxu0 0.0
    %750 = vmatpush.xpose.msra.mxu0 0.0
    %751 = vmatpush.xpose.msra.mxu0 0.0
    %752 = vmatpush.xpose.msra.mxu0 0.0
    %753 = vmatpush.xpose.msra.mxu0 0.0
    %754 = vmatpush.xpose.msra.mxu0 0.0
    %755 = vmatpush.xpose.msra.mxu0 0.0
    %756 = vmatpush.xpose.msra.mxu0 0.0
    %757 = vmatpush.xpose.msra.mxu0 0.0
    %758 = vmatpush.xpose.msra.mxu0 0.0
    %759 = vmatpush.xpose.msra.mxu0 0.0
    %760 = vmatpush.xpose.msra.mxu0 0.0
    %761 = vmatpush.xpose.msra.mxu0 0.0
    %762 = vmatpush.xpose.msra.mxu0 %v745
    %763 = vmatmul.f32.gmra.mxu0 %v743
    %v764 = vpop.f32.mrf.mxu0
    %v765 = vadd.f32 0.0, %v764
    %766 = vdwg.mxu0
    %v767 = vmul.f32 %v737, 0.35355338
    %v768 = vmul.f32 %v765, 0.35355338
    %v769 = vadd.f32 %v767, %v192
    %v770 = vadd.f32 %v768, %v193
    %v771 = vsel %vm138, %v769, -inf
    %772 = vmax.xlane.f32.xlu0 %v771
    %v773 = vpop.xlane.xlu0 %772
    %v774 = vsel %vm138, %v770, -inf
    %775 = vmax.xlane.f32.xlu0 %v774
    %v776 = vpop.xlane.xlu0 %775
    %v777 = vsub.f32 %v769, %v773
    %v778 = vsub.f32 %v770, %v776
    %v779 = vmul.f32 %v777, 1.442695
    %v780 = vpow.pop %v779
    %v781 = vmul.f32 %v778, 1.442695
    %v782 = vpow.pop %v781
    %v783 = vsel %vm138, %v780, 0.0
    %784 = vadd.xlane.f32.xlu0 %v783
    %v785 = vpop.xlane.xlu0 %784
    %v786 = vsel %vm138, %v782, 0.0
    %787 = vadd.xlane.f32.xlu0 %v786
    %v788 = vpop.xlane.xlu0 %787
    %v789 = vrcp.pop %v785
    %v790 = vmul.f32 %v785, %v789
    %v791 = vsub.f32 1.0, %v790
    %v792 = vmul.f32 %v789, %v791
    %v793 = vadd.f32 %v789, %v792
    %vm794 = vweird.f32 %v785
    %vm795 = vweird.f32 %v789
    %vm796 = vmor %vm794, %vm795
    %v797 = vsel %vm796, %v789, %v793
    %v798 = vand.u32 2147483647, %v785
    %vm799 = vcmp.eq.f32.partialorder %v798, 8.507059e+37
    %v800 = vand.u32 %v785, 2147483648
    %v801 = vor.u32 1.1754944e-38, %v800
    %v802 = vsel %vm799, %v801, %v797
    %v803 = vrcp.pop %v788
    %v804 = vmul.f32 %v788, %v803
    %v805 = vsub.f32 1.0, %v804
    %v806 = vmul.f32 %v803, %v805
    %v807 = vadd.f32 %v803, %v806
    %vm808 = vweird.f32 %v788
    %vm809 = vweird.f32 %v803
    %vm810 = vmor %vm808, %vm809
    %v811 = vsel %vm810, %v803, %v807
    %v812 = vand.u32 2147483647, %v788
    %vm813 = vcmp.eq.f32.partialorder %v812, 8.507059e+37
    %v814 = vand.u32 %v788, 2147483648
    %v815 = vor.u32 1.1754944e-38, %v814
    %v816 = vsel %vm813, %v815, %v811
    %v817 = vmul.f32 %v780, %v802
    %v818 = vmul.f32 %v782, %v816
    %819 = vrot.lane.b32.xlu0 %v119, 40
    %v820 = vpop.permute.xlu0 %819
    %v823 = vsel %vm138, %v817, 0
    %825 = vmatpush.msra.mxu0 0.0
    %826 = vmatpush.msra.mxu0 0.0
    %827 = vmatpush.msra.mxu0 0.0
    %828 = vmatpush.msra.mxu0 0.0
    %829 = vmatpush.msra.mxu0 0.0
    %830 = vmatpush.msra.mxu0 0.0
    %831 = vmatpush.msra.mxu0 0.0
    %832 = vmatpush.msra.mxu0 0.0
    %833 = vmatpush.msra.mxu0 0.0
    %834 = vmatpush.msra.mxu0 0.0
    %835 = vmatpush.msra.mxu0 0.0
    %836 = vmatpush.msra.mxu0 0.0
    %837 = vmatpush.msra.mxu0 0.0
    %838 = vmatpush.msra.mxu0 0.0
    %839 = vmatpush.msra.mxu0 0.0
    %840 = vmatpush.msra.mxu0 %v820
    %841 = vmatmul.f32.gmra.mxu0 %v823
    %v842 = vpop.f32.mrf.mxu0
    %v843 = vadd.f32 0.0, %v842
    %844 = vdwg.mxu0
    %845 = vrot.lane.b32.xlu0 %v122, 40
    %v846 = vpop.permute.xlu0 %845
    %v849 = vsel %vm138, %v818, 0
    %851 = vmatpush.msra.mxu0 0.0
    %852 = vmatpush.msra.mxu0 0.0
    %853 = vmatpush.msra.mxu0 0.0
    %854 = vmatpush.msra.mxu0 0.0
    %855 = vmatpush.msra.mxu0 0.0
    %856 = vmatpush.msra.mxu0 0.0
    %857 = vmatpush.msra.mxu0 0.0
    %858 = vmatpush.msra.mxu0 0.0
    %859 = vmatpush.msra.mxu0 0.0
    %860 = vmatpush.msra.mxu0 0.0
    %861 = vmatpush.msra.mxu0 0.0
    %862 = vmatpush.msra.mxu0 0.0
    %863 = vmatpush.msra.mxu0 0.0
    %864 = vmatpush.msra.mxu0 0.0
    %865 = vmatpush.msra.mxu0 0.0
    %866 = vmatpush.msra.mxu0 %v846
    %867 = vmatmul.f32.gmra.mxu0 %v849
    %v868 = vpop.f32.mrf.mxu0
    %v869 = vadd.f32 0.0, %v868
    %870 = vdwg.mxu0
    %v872 = vsel %vm138, %v843, 0
    %v875 = vsel %vm138, %v869, 0
    %877 = vmatpush.msra.mxu0 0.0
    %878 = vmatpush.msra.mxu0 0.0
    %879 = vmatpush.msra.mxu0 0.0
    %880 = vmatpush.msra.mxu0 0.0
    %881 = vmatpush.msra.mxu0 0.0
    %882 = vmatpush.msra.mxu0 0.0
    %883 = vmatpush.msra.mxu0 0.0
    %884 = vmatpush.msra.mxu0 0.0
    %885 = vmatpush.msra.mxu0 0.0
    %886 = vmatpush.msra.mxu0 0.0
    %887 = vmatpush.msra.mxu0 0.0
    %888 = vmatpush.msra.mxu0 0.0
    %889 = vmatpush.msra.mxu0 0.0
    %890 = vmatpush.msra.mxu0 0.0
    %891 = vmatpush.msra.mxu0 0.0
    %892 = vmatpush.msra.mxu0 %v127
    %893 = vmatmul.f32.gmra.mxu0 %v872
    %v894 = vpop.f32.mrf.mxu0
    %v895 = vadd.f32 0.0, %v894
    %896 = vmatmul.f32.gmra.mxu0 %v875
    %v897 = vpop.f32.mrf.mxu0
    %v898 = vadd.f32 0.0, %v897
    %899 = vdwg.mxu0
    %v900 = vadd.f32 %v709, %v895
    %v901 = vadd.f32 %v710, %v898
    %v902 = vadd.f32 %v78, %v900
    %v903 = vadd.f32 %v79, %v901
    %v904 = vld [vmem:[%s14] sm:$0x1]
    %v905 = vld [vmem:[%s15] sm:$0x1]
    %v906 = vsel %vm94, %v902, 0.0
    %907 = vadd.xlane.f32.xlu0 %v906
    %v908 = vpop.xlane.xlu0 %907
    %v909 = vsel %vm94, %v903, 0.0
    %910 = vadd.xlane.f32.xlu0 %v909
    %v911 = vpop.xlane.xlu0 %910
    %v912 = vrcp.pop 32.0
    %v913 = vmul.f32 32.0, %v912
    %v914 = vsub.f32 1.0, %v913
    %v915 = vmul.f32 %v912, %v914
    %v916 = vadd.f32 %v912, %v915
    %vm917 = vweird.f32 %v912
    %v918 = vsel %vm917, %v912, %v916
    %v919 = vmul.f32 %v908, %v918
    %v920 = vmul.f32 %v911, %v918
    %v921 = vsub.f32 %v902, %v919
    %v922 = vsub.f32 %v903, %v920
    %v923 = vmul.f32 %v921, %v921
    %v924 = vmul.f32 %v922, %v922
    %v925 = vsel %vm94, %v923, 0.0
    %926 = vadd.xlane.f32.xlu0 %v925
    %v927 = vpop.xlane.xlu0 %926
    %v928 = vsel %vm94, %v924, 0.0
    %929 = vadd.xlane.f32.xlu0 %v928
    %v930 = vpop.xlane.xlu0 %929
    %v931 = vmul.f32 %v927, %v918
    %v932 = vmul.f32 %v930, %v918
    %v933 = vadd.f32 %v931, 1e-05
    %v934 = vadd.f32 %v932, 1e-05
    %v935 = vrsqrt.pop %v933
    %v936 = vmul.f32 %v935, %v933
    %v937 = vmul.f32 %v936, %v935
    %v938 = vmul.f32 0.5, %v937
    %v939 = vsub.f32 1.5, %v938
    %v940 = vmul.f32 %v935, %v939
    %vm941 = vweird.f32 %v933
    %vm942 = vweird.f32 %v935
    %vm943 = vmor %vm941, %vm942
    %v944 = vsel %vm943, %v935, %v940
    %v945 = vrsqrt.pop %v934
    %v946 = vmul.f32 %v945, %v934
    %v947 = vmul.f32 %v946, %v945
    %v948 = vmul.f32 0.5, %v947
    %v949 = vsub.f32 1.5, %v948
    %v950 = vmul.f32 %v945, %v949
    %vm951 = vweird.f32 %v934
    %vm952 = vweird.f32 %v945
    %vm953 = vmor %vm951, %vm952
    %v954 = vsel %vm953, %v945, %v950
    %v955 = vmul.f32 %v921, %v944
    %v956 = vmul.f32 %v922, %v954
    %v958 = vperm.slane %v904, 0
    %v960 = vmul.f32 %v955, %v958
    %v961 = vmul.f32 %v956, %v958
    %v963 = vperm.slane %v905, 0
    %v965 = vadd.f32 %v960, %v963
    %v966 = vadd.f32 %v961, %v963
    %v967 = vld [vmem:[%s8] sm:$0xff]
    %v968 = vld [vmem:[%s8 + $0x8] sm:$0xff]
    %v969 = vld [vmem:[%s8 + $0x10] sm:$0xff]
    %v970 = vld [vmem:[%s8 + $0x18] sm:$0xff]
    %v971 = vld [vmem:[%s9] sm:$0x1]
    %v973 = vperm.slane %v971, 0
    %v976 = vsel %vm94, %v965, 0
    %v979 = vsel %vm94, %v966, 0
    %981 = vmatpush.msra.mxu0 0.0
    %982 = vmatpush.msra.mxu0 0.0
    %983 = vmatpush.msra.mxu0 0.0
    %984 = vmatpush.msra.mxu0 0.0
    %985 = vmatpush.msra.mxu0 0.0
    %986 = vmatpush.msra.mxu0 0.0
    %987 = vmatpush.msra.mxu0 0.0
    %988 = vmatpush.msra.mxu0 0.0
    %989 = vmatpush.msra.mxu0 0.0
    %990 = vmatpush.msra.mxu0 0.0
    %991 = vmatpush.msra.mxu0 0.0
    %992 = vmatpush.msra.mxu0 0.0
    %993 = vmatpush.msra.mxu0 %v970
    %994 = vmatpush.msra.mxu0 %v969
    %995 = vmatpush.msra.mxu0 %v968
    %996 = vmatpush.msra.mxu0 %v967
    %997 = vmatmul.f32.gmra.mxu0 %v976
    %v998 = vpop.f32.mrf.mxu0
    %v999 = vadd.f32 %v973, %v998
    %1000 = vmatmul.f32.gmra.mxu0 %v979
    %v1001 = vpop.f32.mrf.mxu0
    %v1002 = vadd.f32 %v973, %v1001
    %1003 = vdwg.mxu0
    %v1004 = vld [vmem:[%s10] sm:$0xff]
    %v1005 = vld [vmem:[%s10 + $0x8] sm:$0xff]
    %v1006 = vld [vmem:[%s10 + $0x10] sm:$0xff]
    %v1007 = vld [vmem:[%s10 + $0x18] sm:$0xff]
    %v1008 = vld [vmem:[%s11] sm:$0x1]
    %v1010 = vperm.slane %v1008, 0
    %v1013 = vsel %vm94, %v80, 0
    %v1016 = vsel %vm94, %v81, 0
    %v1019 = vsel %vm94, %v82, 0
    %v1022 = vsel %vm94, %v83, 0
    %1024 = vmatpush.msra.mxu0 0.0
    %1025 = vmatpush.msra.mxu0 0.0
    %1026 = vmatpush.msra.mxu0 0.0
    %1027 = vmatpush.msra.mxu0 0.0
    %1028 = vmatpush.msra.mxu0 0.0
    %1029 = vmatpush.msra.mxu0 0.0
    %1030 = vmatpush.msra.mxu0 0.0
    %1031 = vmatpush.msra.mxu0 0.0
    %1032 = vmatpush.msra.mxu0 0.0
    %1033 = vmatpush.msra.mxu0 0.0
    %1034 = vmatpush.msra.mxu0 0.0
    %1035 = vmatpush.msra.mxu0 0.0
    %1036 = vmatpush.msra.mxu0 %v1007
    %1037 = vmatpush.msra.mxu0 %v1006
    %1038 = vmatpush.msra.mxu0 %v1005
    %1039 = vmatpush.msra.mxu0 %v1004
    %1040 = vmatmul.f32.gmra.mxu0 %v1013
    %v1041 = vpop.f32.mrf.mxu0
    %v1042 = vadd.f32 %v1010, %v1041
    %1043 = vmatmul.f32.gmra.mxu0 %v1016
    %v1044 = vpop.f32.mrf.mxu0
    %v1045 = vadd.f32 %v1010, %v1044
    %1046 = vmatmul.f32.gmra.mxu0 %v1019
    %v1047 = vpop.f32.mrf.mxu0
    %v1048 = vadd.f32 %v1010, %v1047
    %1049 = vmatmul.f32.gmra.mxu0 %v1022
    %v1050 = vpop.f32.mrf.mxu0
    %v1051 = vadd.f32 %v1010, %v1050
    %1052 = vdwg.mxu0
    %v1053 = vld [vmem:[%s12] sm:$0xff]
    %v1054 = vld [vmem:[%s12 + $0x8] sm:$0xff]
    %v1055 = vld [vmem:[%s12 + $0x10] sm:$0xff]
    %v1056 = vld [vmem:[%s12 + $0x18] sm:$0xff]
    %v1057 = vld [vmem:[%s13] sm:$0x1]
    %v1059 = vrot.slane %v85, 1
    %v1061 = vperm.slane %v1057, 0
    %v1063 = vadd.f32 %v1061, 0.0
    %v1065 = vsel %vm138, %v999, 0
    %v1068 = vsel %vm138, %v1042, 0
    %v1071 = vsel %vm138, %v1045, 0
    %1073 = vmatpush.xpose.msra.mxu0 0.0
    %1074 = vmatpush.xpose.msra.mxu0 0.0
    %1075 = vmatpush.xpose.msra.mxu0 0.0
    %1076 = vmatpush.xpose.msra.mxu0 0.0
    %1077 = vmatpush.xpose.msra.mxu0 0.0
    %1078 = vmatpush.xpose.msra.mxu0 0.0
    %1079 = vmatpush.xpose.msra.mxu0 0.0
    %1080 = vmatpush.xpose.msra.mxu0 0.0
    %1081 = vmatpush.xpose.msra.mxu0 0.0
    %1082 = vmatpush.xpose.msra.mxu0 0.0
    %1083 = vmatpush.xpose.msra.mxu0 0.0
    %1084 = vmatpush.xpose.msra.mxu0 0.0
    %1085 = vmatpush.xpose.msra.mxu0 0.0
    %1086 = vmatpush.xpose.msra.mxu0 0.0
    %1087 = vmatpush.xpose.msra.mxu0 %v1071
    %1088 = vmatpush.xpose.msra.mxu0 %v1068
    %1089 = vmatmul.f32.gmra.mxu0 %v1065
    %v1090 = vpop.f32.mrf.mxu0
    %v1091 = vadd.f32 0.0, %v1090
    %1092 = vdwg.mxu0
    %v1094 = vsel %vm138, %v1002, 0
    %v1097 = vsel %vm138, %v1048, 0
    %v1100 = vsel %vm138, %v1051, 0
    %1102 = vmatpush.xpose.msra.mxu0 0.0
    %1103 = vmatpush.xpose.msra.mxu0 0.0
    %1104 = vmatpush.xpose.msra.mxu0 0.0
    %1105 = vmatpush.xpose.msra.mxu0 0.0
    %1106 = vmatpush.xpose.msra.mxu0 0.0
    %1107 = vmatpush.xpose.msra.mxu0 0.0
    %1108 = vmatpush.xpose.msra.mxu0 0.0
    %1109 = vmatpush.xpose.msra.mxu0 0.0
    %1110 = vmatpush.xpose.msra.mxu0 0.0
    %1111 = vmatpush.xpose.msra.mxu0 0.0
    %1112 = vmatpush.xpose.msra.mxu0 0.0
    %1113 = vmatpush.xpose.msra.mxu0 0.0
    %1114 = vmatpush.xpose.msra.mxu0 0.0
    %1115 = vmatpush.xpose.msra.mxu0 0.0
    %1116 = vmatpush.xpose.msra.mxu0 %v1100
    %1117 = vmatpush.xpose.msra.mxu0 %v1097
    %1118 = vmatmul.f32.gmra.mxu0 %v1094
    %v1119 = vpop.f32.mrf.mxu0
    %v1120 = vadd.f32 0.0, %v1119
    %1121 = vdwg.mxu0
    %v1122 = vmul.f32 %v1091, 0.35355338
    %v1123 = vmul.f32 %v1120, 0.35355338
    %v1124 = vperm.slane %v85, 0
    %v1125 = vperm.slane %v1059, 0
    %v1128 = vadd.f32 %v1122, %v1124
    %v1129 = vadd.f32 %v1123, %v1125
    %vm1130 = vcmask 130048
    %v1131 = vsel %vm1130, %v1128, -inf
    %1132 = vmax.xlane.f32.xlu0 %v1131
    %v1133 = vpop.xlane.xlu0 %1132
    %v1134 = vsel %vm1130, %v1129, -inf
    %1135 = vmax.xlane.f32.xlu0 %v1134
    %v1136 = vpop.xlane.xlu0 %1135
    %v1137 = vsub.f32 %v1128, %v1133
    %v1138 = vsub.f32 %v1129, %v1136
    %v1139 = vmul.f32 %v1137, 1.442695
    %v1140 = vpow.pop %v1139
    %v1141 = vmul.f32 %v1138, 1.442695
    %v1142 = vpow.pop %v1141
    %v1143 = vsel %vm1130, %v1140, 0.0
    %1144 = vadd.xlane.f32.xlu0 %v1143
    %v1145 = vpop.xlane.xlu0 %1144
    %v1146 = vsel %vm1130, %v1142, 0.0
    %1147 = vadd.xlane.f32.xlu0 %v1146
    %v1148 = vpop.xlane.xlu0 %1147
    %v1149 = vrcp.pop %v1145
    %v1150 = vmul.f32 %v1145, %v1149
    %v1151 = vsub.f32 1.0, %v1150
    %v1152 = vmul.f32 %v1149, %v1151
    %v1153 = vadd.f32 %v1149, %v1152
    %vm1154 = vweird.f32 %v1145
    %vm1155 = vweird.f32 %v1149
    %vm1156 = vmor %vm1154, %vm1155
    %v1157 = vsel %vm1156, %v1149, %v1153
    %v1158 = vand.u32 2147483647, %v1145
    %vm1159 = vcmp.eq.f32.partialorder %v1158, 8.507059e+37
    %v1160 = vand.u32 %v1145, 2147483648
    %v1161 = vor.u32 1.1754944e-38, %v1160
    %v1162 = vsel %vm1159, %v1161, %v1157
    %v1163 = vrcp.pop %v1148
    %v1164 = vmul.f32 %v1148, %v1163
    %v1165 = vsub.f32 1.0, %v1164
    %v1166 = vmul.f32 %v1163, %v1165
    %v1167 = vadd.f32 %v1163, %v1166
    %vm1168 = vweird.f32 %v1148
    %vm1169 = vweird.f32 %v1163
    %vm1170 = vmor %vm1168, %vm1169
    %v1171 = vsel %vm1170, %v1163, %v1167
    %v1172 = vand.u32 2147483647, %v1148
    %vm1173 = vcmp.eq.f32.partialorder %v1172, 8.507059e+37
    %v1174 = vand.u32 %v1148, 2147483648
    %v1175 = vor.u32 1.1754944e-38, %v1174
    %v1176 = vsel %vm1173, %v1175, %v1171
    %v1177 = vmul.f32 %v1140, %v1162
    %v1178 = vmul.f32 %v1142, %v1176
    %1179 = vrot.lane.b32.xlu0 %v1042, 96
    %v1180 = vpop.permute.xlu0 %1179
    %1181 = vrot.lane.b32.xlu0 %v1045, 96
    %v1182 = vpop.permute.xlu0 %1181
    %v1186 = vsel %vm1130, %v1177, 0
    %1188 = vmatpush.msra.mxu0 0.0
    %1189 = vmatpush.msra.mxu0 0.0
    %1190 = vmatpush.msra.mxu0 0.0
    %1191 = vmatpush.msra.mxu0 0.0
    %1192 = vmatpush.msra.mxu0 0.0
    %1193 = vmatpush.msra.mxu0 0.0
    %1194 = vmatpush.msra.mxu0 0.0
    %1195 = vmatpush.msra.mxu0 0.0
    %1196 = vmatpush.msra.mxu0 0.0
    %1197 = vmatpush.msra.mxu0 0.0
    %1198 = vmatpush.msra.mxu0 0.0
    %1199 = vmatpush.msra.mxu0 0.0
    %1200 = vmatpush.msra.mxu0 0.0
    %1201 = vmatpush.msra.mxu0 0.0
    %1202 = vmatpush.msra.mxu0 %v1182
    %1203 = vmatpush.msra.mxu0 %v1180
    %1204 = vmatmul.f32.gmra.mxu0 %v1186
    %v1205 = vpop.f32.mrf.mxu0
    %v1206 = vadd.f32 0.0, %v1205
    %1207 = vdwg.mxu0
    %1208 = vrot.lane.b32.xlu0 %v1048, 96
    %v1209 = vpop.permute.xlu0 %1208
    %1210 = vrot.lane.b32.xlu0 %v1051, 96
    %v1211 = vpop.permute.xlu0 %1210
    %v1215 = vsel %vm1130, %v1178, 0
    %1217 = vmatpush.msra.mxu0 0.0
    %1218 = vmatpush.msra.mxu0 0.0
    %1219 = vmatpush.msra.mxu0 0.0
    %1220 = vmatpush.msra.mxu0 0.0
    %1221 = vmatpush.msra.mxu0 0.0
    %1222 = vmatpush.msra.mxu0 0.0
    %1223 = vmatpush.msra.mxu0 0.0
    %1224 = vmatpush.msra.mxu0 0.0
    %1225 = vmatpush.msra.mxu0 0.0
    %1226 = vmatpush.msra.mxu0 0.0
    %1227 = vmatpush.msra.mxu0 0.0
    %1228 = vmatpush.msra.mxu0 0.0
    %1229 = vmatpush.msra.mxu0 0.0
    %1230 = vmatpush.msra.mxu0 0.0
    %1231 = vmatpush.msra.mxu0 %v1211
    %1232 = vmatpush.msra.mxu0 %v1209
    %1233 = vmatmul.f32.gmra.mxu0 %v1215
    %v1234 = vpop.f32.mrf.mxu0
    %v1235 = vadd.f32 0.0, %v1234
    %1236 = vdwg.mxu0
    %v1238 = vsel %vm138, %v1206, 0
    %v1241 = vsel %vm138, %v1235, 0
    %1243 = vmatpush.msra.mxu0 0.0
    %1244 = vmatpush.msra.mxu0 0.0
    %1245 = vmatpush.msra.mxu0 0.0
    %1246 = vmatpush.msra.mxu0 0.0
    %1247 = vmatpush.msra.mxu0 0.0
    %1248 = vmatpush.msra.mxu0 0.0
    %1249 = vmatpush.msra.mxu0 0.0
    %1250 = vmatpush.msra.mxu0 0.0
    %1251 = vmatpush.msra.mxu0 0.0
    %1252 = vmatpush.msra.mxu0 0.0
    %1253 = vmatpush.msra.mxu0 0.0
    %1254 = vmatpush.msra.mxu0 0.0
    %1255 = vmatpush.msra.mxu0 0.0
    %1256 = vmatpush.msra.mxu0 0.0
    %1257 = vmatpush.msra.mxu0 0.0
    %1258 = vmatpush.msra.mxu0 %v1053
    %1259 = vmatmul.f32.gmra.mxu0 %v1238
    %v1260 = vpop.f32.mrf.mxu0
    %v1261 = vadd.f32 0.0, %v1260
    %1262 = vmatmul.f32.gmra.mxu0 %v1241
    %v1263 = vpop.f32.mrf.mxu0
    %v1264 = vadd.f32 0.0, %v1263
    %1265 = vdwg.mxu0
    %v1266 = vadd.f32 %v1063, %v1261
    %v1267 = vadd.f32 %v1063, %v1264
    %1268 = vrot.lane.b32.xlu0 %v999, 120
    %v1269 = vpop.permute.xlu0 %1268
    %1270 = vrot.lane.b32.xlu0 %v1042, 120
    %v1271 = vpop.permute.xlu0 %1270
    %1272 = vrot.lane.b32.xlu0 %v1045, 120
    %v1273 = vpop.permute.xlu0 %1272
    %v1274 = vsel %vm138, %v1269, 0
    %v1276 = vsel %vm138, %v1271, 0
    %v1278 = vsel %vm138, %v1273, 0
    %1280 = vmatpush.xpose.msra.mxu0 0.0
    %1281 = vmatpush.xpose.msra.mxu0 0.0
    %1282 = vmatpush.xpose.msra.mxu0 0.0
    %1283 = vmatpush.xpose.msra.mxu0 0.0
    %1284 = vmatpush.xpose.msra.mxu0 0.0
    %1285 = vmatpush.xpose.msra.mxu0 0.0
    %1286 = vmatpush.xpose.msra.mxu0 0.0
    %1287 = vmatpush.xpose.msra.mxu0 0.0
    %1288 = vmatpush.xpose.msra.mxu0 0.0
    %1289 = vmatpush.xpose.msra.mxu0 0.0
    %1290 = vmatpush.xpose.msra.mxu0 0.0
    %1291 = vmatpush.xpose.msra.mxu0 0.0
    %1292 = vmatpush.xpose.msra.mxu0 0.0
    %1293 = vmatpush.xpose.msra.mxu0 0.0
    %1294 = vmatpush.xpose.msra.mxu0 %v1278
    %1295 = vmatpush.xpose.msra.mxu0 %v1276
    %1296 = vmatmul.f32.gmra.mxu0 %v1274
    %v1297 = vpop.f32.mrf.mxu0
    %v1298 = vadd.f32 0.0, %v1297
    %1299 = vdwg.mxu0
    %1300 = vrot.lane.b32.xlu0 %v1002, 120
    %v1301 = vpop.permute.xlu0 %1300
    %1302 = vrot.lane.b32.xlu0 %v1048, 120
    %v1303 = vpop.permute.xlu0 %1302
    %1304 = vrot.lane.b32.xlu0 %v1051, 120
    %v1305 = vpop.permute.xlu0 %1304
    %v1306 = vsel %vm138, %v1301, 0
    %v1308 = vsel %vm138, %v1303, 0
    %v1310 = vsel %vm138, %v1305, 0
    %1312 = vmatpush.xpose.msra.mxu0 0.0
    %1313 = vmatpush.xpose.msra.mxu0 0.0
    %1314 = vmatpush.xpose.msra.mxu0 0.0
    %1315 = vmatpush.xpose.msra.mxu0 0.0
    %1316 = vmatpush.xpose.msra.mxu0 0.0
    %1317 = vmatpush.xpose.msra.mxu0 0.0
    %1318 = vmatpush.xpose.msra.mxu0 0.0
    %1319 = vmatpush.xpose.msra.mxu0 0.0
    %1320 = vmatpush.xpose.msra.mxu0 0.0
    %1321 = vmatpush.xpose.msra.mxu0 0.0
    %1322 = vmatpush.xpose.msra.mxu0 0.0
    %1323 = vmatpush.xpose.msra.mxu0 0.0
    %1324 = vmatpush.xpose.msra.mxu0 0.0
    %1325 = vmatpush.xpose.msra.mxu0 0.0
    %1326 = vmatpush.xpose.msra.mxu0 %v1310
    %1327 = vmatpush.xpose.msra.mxu0 %v1308
    %1328 = vmatmul.f32.gmra.mxu0 %v1306
    %v1329 = vpop.f32.mrf.mxu0
    %v1330 = vadd.f32 0.0, %v1329
    %1331 = vdwg.mxu0
    %v1332 = vmul.f32 %v1298, 0.35355338
    %v1333 = vmul.f32 %v1330, 0.35355338
    %v1334 = vadd.f32 %v1332, %v1124
    %v1335 = vadd.f32 %v1333, %v1125
    %v1336 = vsel %vm1130, %v1334, -inf
    %1337 = vmax.xlane.f32.xlu0 %v1336
    %v1338 = vpop.xlane.xlu0 %1337
    %v1339 = vsel %vm1130, %v1335, -inf
    %1340 = vmax.xlane.f32.xlu0 %v1339
    %v1341 = vpop.xlane.xlu0 %1340
    %v1342 = vsub.f32 %v1334, %v1338
    %v1343 = vsub.f32 %v1335, %v1341
    %v1344 = vmul.f32 %v1342, 1.442695
    %v1345 = vpow.pop %v1344
    %v1346 = vmul.f32 %v1343, 1.442695
    %v1347 = vpow.pop %v1346
    %v1348 = vsel %vm1130, %v1345, 0.0
    %1349 = vadd.xlane.f32.xlu0 %v1348
    %v1350 = vpop.xlane.xlu0 %1349
    %v1351 = vsel %vm1130, %v1347, 0.0
    %1352 = vadd.xlane.f32.xlu0 %v1351
    %v1353 = vpop.xlane.xlu0 %1352
    %v1354 = vrcp.pop %v1350
    %v1355 = vmul.f32 %v1350, %v1354
    %v1356 = vsub.f32 1.0, %v1355
    %v1357 = vmul.f32 %v1354, %v1356
    %v1358 = vadd.f32 %v1354, %v1357
    %vm1359 = vweird.f32 %v1350
    %vm1360 = vweird.f32 %v1354
    %vm1361 = vmor %vm1359, %vm1360
    %v1362 = vsel %vm1361, %v1354, %v1358
    %v1363 = vand.u32 2147483647, %v1350
    %vm1364 = vcmp.eq.f32.partialorder %v1363, 8.507059e+37
    %v1365 = vand.u32 %v1350, 2147483648
    %v1366 = vor.u32 1.1754944e-38, %v1365
    %v1367 = vsel %vm1364, %v1366, %v1362
    %v1368 = vrcp.pop %v1353
    %v1369 = vmul.f32 %v1353, %v1368
    %v1370 = vsub.f32 1.0, %v1369
    %v1371 = vmul.f32 %v1368, %v1370
    %v1372 = vadd.f32 %v1368, %v1371
    %vm1373 = vweird.f32 %v1353
    %vm1374 = vweird.f32 %v1368
    %vm1375 = vmor %vm1373, %vm1374
    %v1376 = vsel %vm1375, %v1368, %v1372
    %v1377 = vand.u32 2147483647, %v1353
    %vm1378 = vcmp.eq.f32.partialorder %v1377, 8.507059e+37
    %v1379 = vand.u32 %v1353, 2147483648
    %v1380 = vor.u32 1.1754944e-38, %v1379
    %v1381 = vsel %vm1378, %v1380, %v1376
    %v1382 = vmul.f32 %v1345, %v1367
    %v1383 = vmul.f32 %v1347, %v1381
    %1384 = vrot.lane.b32.xlu0 %v1042, 88
    %v1385 = vpop.permute.xlu0 %1384
    %1386 = vrot.lane.b32.xlu0 %v1045, 88
    %v1387 = vpop.permute.xlu0 %1386
    %v1391 = vsel %vm1130, %v1382, 0
    %1393 = vmatpush.msra.mxu0 0.0
    %1394 = vmatpush.msra.mxu0 0.0
    %1395 = vmatpush.msra.mxu0 0.0
    %1396 = vmatpush.msra.mxu0 0.0
    %1397 = vmatpush.msra.mxu0 0.0
    %1398 = vmatpush.msra.mxu0 0.0
    %1399 = vmatpush.msra.mxu0 0.0
    %1400 = vmatpush.msra.mxu0 0.0
    %1401 = vmatpush.msra.mxu0 0.0
    %1402 = vmatpush.msra.mxu0 0.0
    %1403 = vmatpush.msra.mxu0 0.0
    %1404 = vmatpush.msra.mxu0 0.0
    %1405 = vmatpush.msra.mxu0 0.0
    %1406 = vmatpush.msra.mxu0 0.0
    %1407 = vmatpush.msra.mxu0 %v1387
    %1408 = vmatpush.msra.mxu0 %v1385
    %1409 = vmatmul.f32.gmra.mxu0 %v1391
    %v1410 = vpop.f32.mrf.mxu0
    %v1411 = vadd.f32 0.0, %v1410
    %1412 = vdwg.mxu0
    %1413 = vrot.lane.b32.xlu0 %v1048, 88
    %v1414 = vpop.permute.xlu0 %1413
    %1415 = vrot.lane.b32.xlu0 %v1051, 88
    %v1416 = vpop.permute.xlu0 %1415
    %v1420 = vsel %vm1130, %v1383, 0
    %1422 = vmatpush.msra.mxu0 0.0
    %1423 = vmatpush.msra.mxu0 0.0
    %1424 = vmatpush.msra.mxu0 0.0
    %1425 = vmatpush.msra.mxu0 0.0
    %1426 = vmatpush.msra.mxu0 0.0
    %1427 = vmatpush.msra.mxu0 0.0
    %1428 = vmatpush.msra.mxu0 0.0
    %1429 = vmatpush.msra.mxu0 0.0
    %1430 = vmatpush.msra.mxu0 0.0
    %1431 = vmatpush.msra.mxu0 0.0
    %1432 = vmatpush.msra.mxu0 0.0
    %1433 = vmatpush.msra.mxu0 0.0
    %1434 = vmatpush.msra.mxu0 0.0
    %1435 = vmatpush.msra.mxu0 0.0
    %1436 = vmatpush.msra.mxu0 %v1416
    %1437 = vmatpush.msra.mxu0 %v1414
    %1438 = vmatmul.f32.gmra.mxu0 %v1420
    %v1439 = vpop.f32.mrf.mxu0
    %v1440 = vadd.f32 0.0, %v1439
    %1441 = vdwg.mxu0
    %v1443 = vsel %vm138, %v1411, 0
    %v1446 = vsel %vm138, %v1440, 0
    %1448 = vmatpush.msra.mxu0 0.0
    %1449 = vmatpush.msra.mxu0 0.0
    %1450 = vmatpush.msra.mxu0 0.0
    %1451 = vmatpush.msra.mxu0 0.0
    %1452 = vmatpush.msra.mxu0 0.0
    %1453 = vmatpush.msra.mxu0 0.0
    %1454 = vmatpush.msra.mxu0 0.0
    %1455 = vmatpush.msra.mxu0 0.0
    %1456 = vmatpush.msra.mxu0 0.0
    %1457 = vmatpush.msra.mxu0 0.0
    %1458 = vmatpush.msra.mxu0 0.0
    %1459 = vmatpush.msra.mxu0 0.0
    %1460 = vmatpush.msra.mxu0 0.0
    %1461 = vmatpush.msra.mxu0 0.0
    %1462 = vmatpush.msra.mxu0 0.0
    %1463 = vmatpush.msra.mxu0 %v1054
    %1464 = vmatmul.f32.gmra.mxu0 %v1443
    %v1465 = vpop.f32.mrf.mxu0
    %v1466 = vadd.f32 0.0, %v1465
    %1467 = vmatmul.f32.gmra.mxu0 %v1446
    %v1468 = vpop.f32.mrf.mxu0
    %v1469 = vadd.f32 0.0, %v1468
    %1470 = vdwg.mxu0
    %v1471 = vadd.f32 %v1266, %v1466
    %v1472 = vadd.f32 %v1267, %v1469
    %1473 = vrot.lane.b32.xlu0 %v999, 112
    %v1474 = vpop.permute.xlu0 %1473
    %1475 = vrot.lane.b32.xlu0 %v1042, 112
    %v1476 = vpop.permute.xlu0 %1475
    %1477 = vrot.lane.b32.xlu0 %v1045, 112
    %v1478 = vpop.permute.xlu0 %1477
    %v1479 = vsel %vm138, %v1474, 0
    %v1481 = vsel %vm138, %v1476, 0
    %v1483 = vsel %vm138, %v1478, 0
    %1485 = vmatpush.xpose.msra.mxu0 0.0
    %1486 = vmatpush.xpose.msra.mxu0 0.0
    %1487 = vmatpush.xpose.msra.mxu0 0.0
    %1488 = vmatpush.xpose.msra.mxu0 0.0
    %1489 = vmatpush.xpose.msra.mxu0 0.0
    %1490 = vmatpush.xpose.msra.mxu0 0.0
    %1491 = vmatpush.xpose.msra.mxu0 0.0
    %1492 = vmatpush.xpose.msra.mxu0 0.0
    %1493 = vmatpush.xpose.msra.mxu0 0.0
    %1494 = vmatpush.xpose.msra.mxu0 0.0
    %1495 = vmatpush.xpose.msra.mxu0 0.0
    %1496 = vmatpush.xpose.msra.mxu0 0.0
    %1497 = vmatpush.xpose.msra.mxu0 0.0
    %1498 = vmatpush.xpose.msra.mxu0 0.0
    %1499 = vmatpush.xpose.msra.mxu0 %v1483
    %1500 = vmatpush.xpose.msra.mxu0 %v1481
    %1501 = vmatmul.f32.gmra.mxu0 %v1479
    %v1502 = vpop.f32.mrf.mxu0
    %v1503 = vadd.f32 0.0, %v1502
    %1504 = vdwg.mxu0
    %1505 = vrot.lane.b32.xlu0 %v1002, 112
    %v1506 = vpop.permute.xlu0 %1505
    %1507 = vrot.lane.b32.xlu0 %v1048, 112
    %v1508 = vpop.permute.xlu0 %1507
    %1509 = vrot.lane.b32.xlu0 %v1051, 112
    %v1510 = vpop.permute.xlu0 %1509
    %v1511 = vsel %vm138, %v1506, 0
    %v1513 = vsel %vm138, %v1508, 0
    %v1515 = vsel %vm138, %v1510, 0
    %1517 = vmatpush.xpose.msra.mxu0 0.0
    %1518 = vmatpush.xpose.msra.mxu0 0.0
    %1519 = vmatpush.xpose.msra.mxu0 0.0
    %1520 = vmatpush.xpose.msra.mxu0 0.0
    %1521 = vmatpush.xpose.msra.mxu0 0.0
    %1522 = vmatpush.xpose.msra.mxu0 0.0
    %1523 = vmatpush.xpose.msra.mxu0 0.0
    %1524 = vmatpush.xpose.msra.mxu0 0.0
    %1525 = vmatpush.xpose.msra.mxu0 0.0
    %1526 = vmatpush.xpose.msra.mxu0 0.0
    %1527 = vmatpush.xpose.msra.mxu0 0.0
    %1528 = vmatpush.xpose.msra.mxu0 0.0
    %1529 = vmatpush.xpose.msra.mxu0 0.0
    %1530 = vmatpush.xpose.msra.mxu0 0.0
    %1531 = vmatpush.xpose.msra.mxu0 %v1515
    %1532 = vmatpush.xpose.msra.mxu0 %v1513
    %1533 = vmatmul.f32.gmra.mxu0 %v1511
    %v1534 = vpop.f32.mrf.mxu0
    %v1535 = vadd.f32 0.0, %v1534
    %1536 = vdwg.mxu0
    %v1537 = vmul.f32 %v1503, 0.35355338
    %v1538 = vmul.f32 %v1535, 0.35355338
    %v1539 = vadd.f32 %v1537, %v1124
    %v1540 = vadd.f32 %v1538, %v1125
    %v1541 = vsel %vm1130, %v1539, -inf
    %1542 = vmax.xlane.f32.xlu0 %v1541
    %v1543 = vpop.xlane.xlu0 %1542
    %v1544 = vsel %vm1130, %v1540, -inf
    %1545 = vmax.xlane.f32.xlu0 %v1544
    %v1546 = vpop.xlane.xlu0 %1545
    %v1547 = vsub.f32 %v1539, %v1543
    %v1548 = vsub.f32 %v1540, %v1546
    %v1549 = vmul.f32 %v1547, 1.442695
    %v1550 = vpow.pop %v1549
    %v1551 = vmul.f32 %v1548, 1.442695
    %v1552 = vpow.pop %v1551
    %v1553 = vsel %vm1130, %v1550, 0.0
    %1554 = vadd.xlane.f32.xlu0 %v1553
    %v1555 = vpop.xlane.xlu0 %1554
    %v1556 = vsel %vm1130, %v1552, 0.0
    %1557 = vadd.xlane.f32.xlu0 %v1556
    %v1558 = vpop.xlane.xlu0 %1557
    %v1559 = vrcp.pop %v1555
    %v1560 = vmul.f32 %v1555, %v1559
    %v1561 = vsub.f32 1.0, %v1560
    %v1562 = vmul.f32 %v1559, %v1561
    %v1563 = vadd.f32 %v1559, %v1562
    %vm1564 = vweird.f32 %v1555
    %vm1565 = vweird.f32 %v1559
    %vm1566 = vmor %vm1564, %vm1565
    %v1567 = vsel %vm1566, %v1559, %v1563
    %v1568 = vand.u32 2147483647, %v1555
    %vm1569 = vcmp.eq.f32.partialorder %v1568, 8.507059e+37
    %v1570 = vand.u32 %v1555, 2147483648
    %v1571 = vor.u32 1.1754944e-38, %v1570
    %v1572 = vsel %vm1569, %v1571, %v1567
    %v1573 = vrcp.pop %v1558
    %v1574 = vmul.f32 %v1558, %v1573
    %v1575 = vsub.f32 1.0, %v1574
    %v1576 = vmul.f32 %v1573, %v1575
    %v1577 = vadd.f32 %v1573, %v1576
    %vm1578 = vweird.f32 %v1558
    %vm1579 = vweird.f32 %v1573
    %vm1580 = vmor %vm1578, %vm1579
    %v1581 = vsel %vm1580, %v1573, %v1577
    %v1582 = vand.u32 2147483647, %v1558
    %vm1583 = vcmp.eq.f32.partialorder %v1582, 8.507059e+37
    %v1584 = vand.u32 %v1558, 2147483648
    %v1585 = vor.u32 1.1754944e-38, %v1584
    %v1586 = vsel %vm1583, %v1585, %v1581
    %v1587 = vmul.f32 %v1550, %v1572
    %v1588 = vmul.f32 %v1552, %v1586
    %1589 = vrot.lane.b32.xlu0 %v1042, 80
    %v1590 = vpop.permute.xlu0 %1589
    %1591 = vrot.lane.b32.xlu0 %v1045, 80
    %v1592 = vpop.permute.xlu0 %1591
    %v1596 = vsel %vm1130, %v1587, 0
    %1598 = vmatpush.msra.mxu0 0.0
    %1599 = vmatpush.msra.mxu0 0.0
    %1600 = vmatpush.msra.mxu0 0.0
    %1601 = vmatpush.msra.mxu0 0.0
    %1602 = vmatpush.msra.mxu0 0.0
    %1603 = vmatpush.msra.mxu0 0.0
    %1604 = vmatpush.msra.mxu0 0.0
    %1605 = vmatpush.msra.mxu0 0.0
    %1606 = vmatpush.msra.mxu0 0.0
    %1607 = vmatpush.msra.mxu0 0.0
    %1608 = vmatpush.msra.mxu0 0.0
    %1609 = vmatpush.msra.mxu0 0.0
    %1610 = vmatpush.msra.mxu0 0.0
    %1611 = vmatpush.msra.mxu0 0.0
    %1612 = vmatpush.msra.mxu0 %v1592
    %1613 = vmatpush.msra.mxu0 %v1590
    %1614 = vmatmul.f32.gmra.mxu0 %v1596
    %v1615 = vpop.f32.mrf.mxu0
    %v1616 = vadd.f32 0.0, %v1615
    %1617 = vdwg.mxu0
    %1618 = vrot.lane.b32.xlu0 %v1048, 80
    %v1619 = vpop.permute.xlu0 %1618
    %1620 = vrot.lane.b32.xlu0 %v1051, 80
    %v1621 = vpop.permute.xlu0 %1620
    %v1625 = vsel %vm1130, %v1588, 0
    %1627 = vmatpush.msra.mxu0 0.0
    %1628 = vmatpush.msra.mxu0 0.0
    %1629 = vmatpush.msra.mxu0 0.0
    %1630 = vmatpush.msra.mxu0 0.0
    %1631 = vmatpush.msra.mxu0 0.0
    %1632 = vmatpush.msra.mxu0 0.0
    %1633 = vmatpush.msra.mxu0 0.0
    %1634 = vmatpush.msra.mxu0 0.0
    %1635 = vmatpush.msra.mxu0 0.0
    %1636 = vmatpush.msra.mxu0 0.0
    %1637 = vmatpush.msra.mxu0 0.0
    %1638 = vmatpush.msra.mxu0 0.0
    %1639 = vmatpush.msra.mxu0 0.0
    %1640 = vmatpush.msra.mxu0 0.0
    %1641 = vmatpush.msra.mxu0 %v1621
    %1642 = vmatpush.msra.mxu0 %v1619
    %1643 = vmatmul.f32.gmra.mxu0 %v1625
    %v1644 = vpop.f32.mrf.mxu0
    %v1645 = vadd.f32 0.0, %v1644
    %1646 = vdwg.mxu0
    %v1648 = vsel %vm138, %v1616, 0
    %v1651 = vsel %vm138, %v1645, 0
    %1653 = vmatpush.msra.mxu0 0.0
    %1654 = vmatpush.msra.mxu0 0.0
    %1655 = vmatpush.msra.mxu0 0.0
    %1656 = vmatpush.msra.mxu0 0.0
    %1657 = vmatpush.msra.mxu0 0.0
    %1658 = vmatpush.msra.mxu0 0.0
    %1659 = vmatpush.msra.mxu0 0.0
    %1660 = vmatpush.msra.mxu0 0.0
    %1661 = vmatpush.msra.mxu0 0.0
    %1662 = vmatpush.msra.mxu0 0.0
    %1663 = vmatpush.msra.mxu0 0.0
    %1664 = vmatpush.msra.mxu0 0.0
    %1665 = vmatpush.msra.mxu0 0.0
    %1666 = vmatpush.msra.mxu0 0.0
    %1667 = vmatpush.msra.mxu0 0.0
    %1668 = vmatpush.msra.mxu0 %v1055
    %1669 = vmatmul.f32.gmra.mxu0 %v1648
    %v1670 = vpop.f32.mrf.mxu0
    %v1671 = vadd.f32 0.0, %v1670
    %1672 = vmatmul.f32.gmra.mxu0 %v1651
    %v1673 = vpop.f32.mrf.mxu0
    %v1674 = vadd.f32 0.0, %v1673
    %1675 = vdwg.mxu0
    %v1676 = vadd.f32 %v1471, %v1671
    %v1677 = vadd.f32 %v1472, %v1674
    %1678 = vrot.lane.b32.xlu0 %v999, 104
    %v1679 = vpop.permute.xlu0 %1678
    %1680 = vrot.lane.b32.xlu0 %v1042, 104
    %v1681 = vpop.permute.xlu0 %1680
    %1682 = vrot.lane.b32.xlu0 %v1045, 104
    %v1683 = vpop.permute.xlu0 %1682
    %v1684 = vsel %vm138, %v1679, 0
    %v1686 = vsel %vm138, %v1681, 0
    %v1688 = vsel %vm138, %v1683, 0
    %1690 = vmatpush.xpose.msra.mxu0 0.0
    %1691 = vmatpush.xpose.msra.mxu0 0.0
    %1692 = vmatpush.xpose.msra.mxu0 0.0
    %1693 = vmatpush.xpose.msra.mxu0 0.0
    %1694 = vmatpush.xpose.msra.mxu0 0.0
    %1695 = vmatpush.xpose.msra.mxu0 0.0
    %1696 = vmatpush.xpose.msra.mxu0 0.0
    %1697 = vmatpush.xpose.msra.mxu0 0.0
    %1698 = vmatpush.xpose.msra.mxu0 0.0
    %1699 = vmatpush.xpose.msra.mxu0 0.0
    %1700 = vmatpush.xpose.msra.mxu0 0.0
    %1701 = vmatpush.xpose.msra.mxu0 0.0
    %1702 = vmatpush.xpose.msra.mxu0 0.0
    %1703 = vmatpush.xpose.msra.mxu0 0.0
    %1704 = vmatpush.xpose.msra.mxu0 %v1688
    %1705 = vmatpush.xpose.msra.mxu0 %v1686
    %1706 = vmatmul.f32.gmra.mxu0 %v1684
    %v1707 = vpop.f32.mrf.mxu0
    %v1708 = vadd.f32 0.0, %v1707
    %1709 = vdwg.mxu0
    %1710 = vrot.lane.b32.xlu0 %v1002, 104
    %v1711 = vpop.permute.xlu0 %1710
    %1712 = vrot.lane.b32.xlu0 %v1048, 104
    %v1713 = vpop.permute.xlu0 %1712
    %1714 = vrot.lane.b32.xlu0 %v1051, 104
    %v1715 = vpop.permute.xlu0 %1714
    %v1716 = vsel %vm138, %v1711, 0
    %v1718 = vsel %vm138, %v1713, 0
    %v1720 = vsel %vm138, %v1715, 0
    %1722 = vmatpush.xpose.msra.mxu0 0.0
    %1723 = vmatpush.xpose.msra.mxu0 0.0
    %1724 = vmatpush.xpose.msra.mxu0 0.0
    %1725 = vmatpush.xpose.msra.mxu0 0.0
    %1726 = vmatpush.xpose.msra.mxu0 0.0
    %1727 = vmatpush.xpose.msra.mxu0 0.0
    %1728 = vmatpush.xpose.msra.mxu0 0.0
    %1729 = vmatpush.xpose.msra.mxu0 0.0
    %1730 = vmatpush.xpose.msra.mxu0 0.0
    %1731 = vmatpush.xpose.msra.mxu0 0.0
    %1732 = vmatpush.xpose.msra.mxu0 0.0
    %1733 = vmatpush.xpose.msra.mxu0 0.0
    %1734 = vmatpush.xpose.msra.mxu0 0.0
    %1735 = vmatpush.xpose.msra.mxu0 0.0
    %1736 = vmatpush.xpose.msra.mxu0 %v1720
    %1737 = vmatpush.xpose.msra.mxu0 %v1718
    %1738 = vmatmul.f32.gmra.mxu0 %v1716
    %v1739 = vpop.f32.mrf.mxu0
    %v1740 = vadd.f32 0.0, %v1739
    %1741 = vdwg.mxu0
    %v1742 = vmul.f32 %v1708, 0.35355338
    %v1743 = vmul.f32 %v1740, 0.35355338
    %v1744 = vadd.f32 %v1742, %v1124
    %v1745 = vadd.f32 %v1743, %v1125
    %v1746 = vsel %vm1130, %v1744, -inf
    %1747 = vmax.xlane.f32.xlu0 %v1746
    %v1748 = vpop.xlane.xlu0 %1747
    %v1749 = vsel %vm1130, %v1745, -inf
    %1750 = vmax.xlane.f32.xlu0 %v1749
    %v1751 = vpop.xlane.xlu0 %1750
    %v1752 = vsub.f32 %v1744, %v1748
    %v1753 = vsub.f32 %v1745, %v1751
    %v1754 = vmul.f32 %v1752, 1.442695
    %v1755 = vpow.pop %v1754
    %v1756 = vmul.f32 %v1753, 1.442695
    %v1757 = vpow.pop %v1756
    %v1758 = vsel %vm1130, %v1755, 0.0
    %1759 = vadd.xlane.f32.xlu0 %v1758
    %v1760 = vpop.xlane.xlu0 %1759
    %v1761 = vsel %vm1130, %v1757, 0.0
    %1762 = vadd.xlane.f32.xlu0 %v1761
    %v1763 = vpop.xlane.xlu0 %1762
    %v1764 = vrcp.pop %v1760
    %v1765 = vmul.f32 %v1760, %v1764
    %v1766 = vsub.f32 1.0, %v1765
    %v1767 = vmul.f32 %v1764, %v1766
    %v1768 = vadd.f32 %v1764, %v1767
    %vm1769 = vweird.f32 %v1760
    %vm1770 = vweird.f32 %v1764
    %vm1771 = vmor %vm1769, %vm1770
    %v1772 = vsel %vm1771, %v1764, %v1768
    %v1773 = vand.u32 2147483647, %v1760
    %vm1774 = vcmp.eq.f32.partialorder %v1773, 8.507059e+37
    %v1775 = vand.u32 %v1760, 2147483648
    %v1776 = vor.u32 1.1754944e-38, %v1775
    %v1777 = vsel %vm1774, %v1776, %v1772
    %v1778 = vrcp.pop %v1763
    %v1779 = vmul.f32 %v1763, %v1778
    %v1780 = vsub.f32 1.0, %v1779
    %v1781 = vmul.f32 %v1778, %v1780
    %v1782 = vadd.f32 %v1778, %v1781
    %vm1783 = vweird.f32 %v1763
    %vm1784 = vweird.f32 %v1778
    %vm1785 = vmor %vm1783, %vm1784
    %v1786 = vsel %vm1785, %v1778, %v1782
    %v1787 = vand.u32 2147483647, %v1763
    %vm1788 = vcmp.eq.f32.partialorder %v1787, 8.507059e+37
    %v1789 = vand.u32 %v1763, 2147483648
    %v1790 = vor.u32 1.1754944e-38, %v1789
    %v1791 = vsel %vm1788, %v1790, %v1786
    %v1792 = vmul.f32 %v1755, %v1777
    %v1793 = vmul.f32 %v1757, %v1791
    %1794 = vrot.lane.b32.xlu0 %v1042, 72
    %v1795 = vpop.permute.xlu0 %1794
    %1796 = vrot.lane.b32.xlu0 %v1045, 72
    %v1797 = vpop.permute.xlu0 %1796
    %v1801 = vsel %vm1130, %v1792, 0
    %1803 = vmatpush.msra.mxu0 0.0
    %1804 = vmatpush.msra.mxu0 0.0
    %1805 = vmatpush.msra.mxu0 0.0
    %1806 = vmatpush.msra.mxu0 0.0
    %1807 = vmatpush.msra.mxu0 0.0
    %1808 = vmatpush.msra.mxu0 0.0
    %1809 = vmatpush.msra.mxu0 0.0
    %1810 = vmatpush.msra.mxu0 0.0
    %1811 = vmatpush.msra.mxu0 0.0
    %1812 = vmatpush.msra.mxu0 0.0
    %1813 = vmatpush.msra.mxu0 0.0
    %1814 = vmatpush.msra.mxu0 0.0
    %1815 = vmatpush.msra.mxu0 0.0
    %1816 = vmatpush.msra.mxu0 0.0
    %1817 = vmatpush.msra.mxu0 %v1797
    %1818 = vmatpush.msra.mxu0 %v1795
    %1819 = vmatmul.f32.gmra.mxu0 %v1801
    %v1820 = vpop.f32.mrf.mxu0
    %v1821 = vadd.f32 0.0, %v1820
    %1822 = vdwg.mxu0
    %1823 = vrot.lane.b32.xlu0 %v1048, 72
    %v1824 = vpop.permute.xlu0 %1823
    %1825 = vrot.lane.b32.xlu0 %v1051, 72
    %v1826 = vpop.permute.xlu0 %1825
    %v1830 = vsel %vm1130, %v1793, 0
    %1832 = vmatpush.msra.mxu0 0.0
    %1833 = vmatpush.msra.mxu0 0.0
    %1834 = vmatpush.msra.mxu0 0.0
    %1835 = vmatpush.msra.mxu0 0.0
    %1836 = vmatpush.msra.mxu0 0.0
    %1837 = vmatpush.msra.mxu0 0.0
    %1838 = vmatpush.msra.mxu0 0.0
    %1839 = vmatpush.msra.mxu0 0.0
    %1840 = vmatpush.msra.mxu0 0.0
    %1841 = vmatpush.msra.mxu0 0.0
    %1842 = vmatpush.msra.mxu0 0.0
    %1843 = vmatpush.msra.mxu0 0.0
    %1844 = vmatpush.msra.mxu0 0.0
    %1845 = vmatpush.msra.mxu0 0.0
    %1846 = vmatpush.msra.mxu0 %v1826
    %1847 = vmatpush.msra.mxu0 %v1824
    %1848 = vmatmul.f32.gmra.mxu0 %v1830
    %v1849 = vpop.f32.mrf.mxu0
    %v1850 = vadd.f32 0.0, %v1849
    %1851 = vdwg.mxu0
    %v1853 = vsel %vm138, %v1821, 0
    %v1856 = vsel %vm138, %v1850, 0
    %1858 = vmatpush.msra.mxu0 0.0
    %1859 = vmatpush.msra.mxu0 0.0
    %1860 = vmatpush.msra.mxu0 0.0
    %1861 = vmatpush.msra.mxu0 0.0
    %1862 = vmatpush.msra.mxu0 0.0
    %1863 = vmatpush.msra.mxu0 0.0
    %1864 = vmatpush.msra.mxu0 0.0
    %1865 = vmatpush.msra.mxu0 0.0
    %1866 = vmatpush.msra.mxu0 0.0
    %1867 = vmatpush.msra.mxu0 0.0
    %1868 = vmatpush.msra.mxu0 0.0
    %1869 = vmatpush.msra.mxu0 0.0
    %1870 = vmatpush.msra.mxu0 0.0
    %1871 = vmatpush.msra.mxu0 0.0
    %1872 = vmatpush.msra.mxu0 0.0
    %1873 = vmatpush.msra.mxu0 %v1056
    %1874 = vmatmul.f32.gmra.mxu0 %v1853
    %v1875 = vpop.f32.mrf.mxu0
    %v1876 = vadd.f32 0.0, %v1875
    %1877 = vmatmul.f32.gmra.mxu0 %v1856
    %v1878 = vpop.f32.mrf.mxu0
    %v1879 = vadd.f32 0.0, %v1878
    %1880 = vdwg.mxu0
    %v1881 = vadd.f32 %v1676, %v1876
    %v1882 = vadd.f32 %v1677, %v1879
    %v1883 = vadd.f32 %v965, %v1881
    %v1884 = vadd.f32 %v966, %v1882
    %v1885 = vld [vmem:[%s16] sm:$0x1]
    %v1886 = vld [vmem:[%s17] sm:$0x1]
    %v1887 = vsel %vm94, %v1883, 0.0
    %1888 = vadd.xlane.f32.xlu0 %v1887
    %v1889 = vpop.xlane.xlu0 %1888
    %v1890 = vsel %vm94, %v1884, 0.0
    %1891 = vadd.xlane.f32.xlu0 %v1890
    %v1892 = vpop.xlane.xlu0 %1891
    %v1893 = vmul.f32 %v1889, %v918
    %v1894 = vmul.f32 %v1892, %v918
    %v1895 = vsub.f32 %v1883, %v1893
    %v1896 = vsub.f32 %v1884, %v1894
    %v1897 = vmul.f32 %v1895, %v1895
    %v1898 = vmul.f32 %v1896, %v1896
    %v1899 = vsel %vm94, %v1897, 0.0
    %1900 = vadd.xlane.f32.xlu0 %v1899
    %v1901 = vpop.xlane.xlu0 %1900
    %v1902 = vsel %vm94, %v1898, 0.0
    %1903 = vadd.xlane.f32.xlu0 %v1902
    %v1904 = vpop.xlane.xlu0 %1903
    %v1905 = vmul.f32 %v1901, %v918
    %v1906 = vmul.f32 %v1904, %v918
    %v1907 = vadd.f32 %v1905, 1e-05
    %v1908 = vadd.f32 %v1906, 1e-05
    %v1909 = vrsqrt.pop %v1907
    %v1910 = vmul.f32 %v1909, %v1907
    %v1911 = vmul.f32 %v1910, %v1909
    %v1912 = vmul.f32 0.5, %v1911
    %v1913 = vsub.f32 1.5, %v1912
    %v1914 = vmul.f32 %v1909, %v1913
    %vm1915 = vweird.f32 %v1907
    %vm1916 = vweird.f32 %v1909
    %vm1917 = vmor %vm1915, %vm1916
    %v1918 = vsel %vm1917, %v1909, %v1914
    %v1919 = vrsqrt.pop %v1908
    %v1920 = vmul.f32 %v1919, %v1908
    %v1921 = vmul.f32 %v1920, %v1919
    %v1922 = vmul.f32 0.5, %v1921
    %v1923 = vsub.f32 1.5, %v1922
    %v1924 = vmul.f32 %v1919, %v1923
    %vm1925 = vweird.f32 %v1908
    %vm1926 = vweird.f32 %v1919
    %vm1927 = vmor %vm1925, %vm1926
    %v1928 = vsel %vm1927, %v1919, %v1924
    %v1929 = vmul.f32 %v1895, %v1918
    %v1930 = vmul.f32 %v1896, %v1928
    %v1932 = vperm.slane %v1885, 0
    %v1934 = vmul.f32 %v1929, %v1932
    %v1935 = vmul.f32 %v1930, %v1932
    %v1937 = vperm.slane %v1886, 0
    %v1939 = vadd.f32 %v1934, %v1937
    %v1940 = vadd.f32 %v1935, %v1937
    %v1941 = vld [vmem:[%s20] sm:$0xff]
    %v1942 = vld [vmem:[%s20 + $0x8] sm:$0xff]
    %v1943 = vld [vmem:[%s20 + $0x10] sm:$0xff]
    %v1944 = vld [vmem:[%s20 + $0x18] sm:$0xff]
    %v1945 = vld [vmem:[%s21] sm:$0x1]
    %v1947 = vperm.slane %v1945, 0
    %v1950 = vsel %vm94, %v1939, 0
    %v1953 = vsel %vm94, %v1940, 0
    %1955 = vmatpush.msra.mxu0 0.0
    %1956 = vmatpush.msra.mxu0 0.0
    %1957 = vmatpush.msra.mxu0 0.0
    %1958 = vmatpush.msra.mxu0 0.0
    %1959 = vmatpush.msra.mxu0 0.0
    %1960 = vmatpush.msra.mxu0 0.0
    %1961 = vmatpush.msra.mxu0 0.0
    %1962 = vmatpush.msra.mxu0 0.0
    %1963 = vmatpush.msra.mxu0 0.0
    %1964 = vmatpush.msra.mxu0 0.0
    %1965 = vmatpush.msra.mxu0 0.0
    %1966 = vmatpush.msra.mxu0 0.0
    %1967 = vmatpush.msra.mxu0 %v1944
    %1968 = vmatpush.msra.mxu0 %v1943
    %1969 = vmatpush.msra.mxu0 %v1942
    %1970 = vmatpush.msra.mxu0 %v1941
    %1971 = vmatmul.f32.gmra.mxu0 %v1950
    %v1972 = vpop.f32.mrf.mxu0
    %v1973 = vadd.f32 %v1947, %v1972
    %1974 = vmatmul.f32.gmra.mxu0 %v1953
    %v1975 = vpop.f32.mrf.mxu0
    %v1976 = vadd.f32 %v1947, %v1975
    %1977 = vdwg.mxu0
    %v1978 = vmax.f32 %v1973, 0.0
    %v1979 = vmax.f32 %v1976, 0.0
    %v1980 = vld [vmem:[%s22] sm:$0xff]
    %v1981 = vld [vmem:[%s22 + $0x8] sm:$0xff]
    %v1982 = vld [vmem:[%s22 + $0x10] sm:$0xff]
    %v1983 = vld [vmem:[%s22 + $0x18] sm:$0xff]
    %v1984 = vld [vmem:[%s22 + $0x20] sm:$0xff]
    %v1985 = vld [vmem:[%s22 + $0x28] sm:$0xff]
    %v1986 = vld [vmem:[%s22 + $0x30] sm:$0xff]
    %v1987 = vld [vmem:[%s22 + $0x38] sm:$0xff]
    %v1988 = vld [vmem:[%s23] sm:$0x1]
    %v1990 = vperm.slane %v1988, 0
    %vm1992 = vcmask 523264
    %v1994 = vsel %vm1992, %v1978, 0
    %v1997 = vsel %vm1992, %v1979, 0
    %1999 = vmatpush.msra.mxu0 0.0
    %2000 = vmatpush.msra.mxu0 0.0
    %2001 = vmatpush.msra.mxu0 0.0
    %2002 = vmatpush.msra.mxu0 0.0
    %2003 = vmatpush.msra.mxu0 0.0
    %2004 = vmatpush.msra.mxu0 0.0
    %2005 = vmatpush.msra.mxu0 0.0
    %2006 = vmatpush.msra.mxu0 0.0
    %2007 = vmatpush.msra.mxu0 %v1987
    %2008 = vmatpush.msra.mxu0 %v1986
    %2009 = vmatpush.msra.mxu0 %v1985
    %2010 = vmatpush.msra.mxu0 %v1984
    %2011 = vmatpush.msra.mxu0 %v1983
    %2012 = vmatpush.msra.mxu0 %v1982
    %2013 = vmatpush.msra.mxu0 %v1981
    %2014 = vmatpush.msra.mxu0 %v1980
    %2015 = vmatmul.f32.gmra.mxu0 %v1994
    %v2016 = vpop.f32.mrf.mxu0
    %v2017 = vadd.f32 %v1990, %v2016
    %2018 = vmatmul.f32.gmra.mxu0 %v1997
    %v2019 = vpop.f32.mrf.mxu0
    %v2020 = vadd.f32 %v1990, %v2019
    %2021 = vdwg.mxu0
    %v2022 = vadd.f32 %v1939, %v2017
    %v2023 = vadd.f32 %v1940, %v2020
    %v2024 = vld [vmem:[%s18] sm:$0x1]
    %v2025 = vld [vmem:[%s19] sm:$0x1]
    %v2026 = vsel %vm94, %v2022, 0.0
    %2027 = vadd.xlane.f32.xlu0 %v2026
    %v2028 = vpop.xlane.xlu0 %2027
    %v2029 = vsel %vm94, %v2023, 0.0
    %2030 = vadd.xlane.f32.xlu0 %v2029
    %v2031 = vpop.xlane.xlu0 %2030
    %v2032 = vmul.f32 %v2028, %v918
    %v2033 = vmul.f32 %v2031, %v918
    %v2034 = vsub.f32 %v2022, %v2032
    %v2035 = vsub.f32 %v2023, %v2033
    %v2036 = vmul.f32 %v2034, %v2034
    %v2037 = vmul.f32 %v2035, %v2035
    %v2038 = vsel %vm94, %v2036, 0.0
    %2039 = vadd.xlane.f32.xlu0 %v2038
    %v2040 = vpop.xlane.xlu0 %2039
    %v2041 = vsel %vm94, %v2037, 0.0
    %2042 = vadd.xlane.f32.xlu0 %v2041
    %v2043 = vpop.xlane.xlu0 %2042
    %v2044 = vmul.f32 %v2040, %v918
    %v2045 = vmul.f32 %v2043, %v918
    %v2046 = vadd.f32 %v2044, 1e-05
    %v2047 = vadd.f32 %v2045, 1e-05
    %v2048 = vrsqrt.pop %v2046
    %v2049 = vmul.f32 %v2048, %v2046
    %v2050 = vmul.f32 %v2049, %v2048
    %v2051 = vmul.f32 0.5, %v2050
    %v2052 = vsub.f32 1.5, %v2051
    %v2053 = vmul.f32 %v2048, %v2052
    %vm2054 = vweird.f32 %v2046
    %vm2055 = vweird.f32 %v2048
    %vm2056 = vmor %vm2054, %vm2055
    %v2057 = vsel %vm2056, %v2048, %v2053
    %v2058 = vrsqrt.pop %v2047
    %v2059 = vmul.f32 %v2058, %v2047
    %v2060 = vmul.f32 %v2059, %v2058
    %v2061 = vmul.f32 0.5, %v2060
    %v2062 = vsub.f32 1.5, %v2061
    %v2063 = vmul.f32 %v2058, %v2062
    %vm2064 = vweird.f32 %v2047
    %vm2065 = vweird.f32 %v2058
    %vm2066 = vmor %vm2064, %vm2065
    %v2067 = vsel %vm2066, %v2058, %v2063
    %v2068 = vmul.f32 %v2034, %v2057
    %v2069 = vmul.f32 %v2035, %v2067
    %v2071 = vperm.slane %v2024, 0
    %v2073 = vmul.f32 %v2068, %v2071
    %v2074 = vmul.f32 %v2069, %v2071
    %v2076 = vperm.slane %v2025, 0
    %v2078 = vadd.f32 %v2073, %v2076
    %v2079 = vadd.f32 %v2074, %v2076
    %s2080 = scalar_lea.vmem %s4, 32
    %v2081 = vld [vmem:[%s2080] sm:$0xff]
    %v2082 = vld [vmem:[%s2080 + $0x8] sm:$0xff]
    %v2083 = vld [vmem:[%s2080 + $0x10] sm:$0xff]
    %v2084 = vld [vmem:[%s2080 + $0x18] sm:$0xff]
    %s2085 = scalar_lea.vmem %s5, 1
    %v2086 = vld [vmem:[%s2085] sm:$0x1]
    %v2088 = vperm.slane %v2086, 0
    %v2091 = vsel %vm94, %v2078, 0
    %v2094 = vsel %vm94, %v2079, 0
    %2096 = vmatpush.msra.mxu0 0.0
    %2097 = vmatpush.msra.mxu0 0.0
    %2098 = vmatpush.msra.mxu0 0.0
    %2099 = vmatpush.msra.mxu0 0.0
    %2100 = vmatpush.msra.mxu0 0.0
    %2101 = vmatpush.msra.mxu0 0.0
    %2102 = vmatpush.msra.mxu0 0.0
    %2103 = vmatpush.msra.mxu0 0.0
    %2104 = vmatpush.msra.mxu0 0.0
    %2105 = vmatpush.msra.mxu0 0.0
    %2106 = vmatpush.msra.mxu0 0.0
    %2107 = vmatpush.msra.mxu0 0.0
    %2108 = vmatpush.msra.mxu0 %v2084
    %2109 = vmatpush.msra.mxu0 %v2083
    %2110 = vmatpush.msra.mxu0 %v2082
    %2111 = vmatpush.msra.mxu0 %v2081
    %2112 = vmatmul.f32.gmra.mxu0 %v2091
    %v2113 = vpop.f32.mrf.mxu0
    %v2114 = vadd.f32 %v2088, %v2113
    %2115 = vmatmul.f32.gmra.mxu0 %v2094
    %v2116 = vpop.f32.mrf.mxu0
    %v2117 = vadd.f32 %v2088, %v2116
    %2118 = vdwg.mxu0
    %s2119 = scalar_lea.vmem %s6, 32
    %v2120 = vld [vmem:[%s2119] sm:$0xff]
    %v2121 = vld [vmem:[%s2119 + $0x8] sm:$0xff]
    %v2122 = vld [vmem:[%s2119 + $0x10] sm:$0xff]
    %v2123 = vld [vmem:[%s2119 + $0x18] sm:$0xff]
    %s2124 = scalar_lea.vmem %s7, 1
    %v2125 = vld [vmem:[%s2124] sm:$0x1]
    %v2127 = vperm.slane %v2125, 0
    %v2129 = vadd.f32 %v2127, 0.0
    %2131 = vrot.lane.b32.xlu0 %v2114, 96
    %v2132 = vpop.permute.xlu0 %2131
    %v2133 = vsel %vm138, %v2114, 0
    %v2135 = vsel %vm138, %v2132, 0
    %2137 = vmatpush.xpose.msra.mxu0 0.0
    %2138 = vmatpush.xpose.msra.mxu0 0.0
    %2139 = vmatpush.xpose.msra.mxu0 0.0
    %2140 = vmatpush.xpose.msra.mxu0 0.0
    %2141 = vmatpush.xpose.msra.mxu0 0.0
    %2142 = vmatpush.xpose.msra.mxu0 0.0
    %2143 = vmatpush.xpose.msra.mxu0 0.0
    %2144 = vmatpush.xpose.msra.mxu0 0.0
    %2145 = vmatpush.xpose.msra.mxu0 0.0
    %2146 = vmatpush.xpose.msra.mxu0 0.0
    %2147 = vmatpush.xpose.msra.mxu0 0.0
    %2148 = vmatpush.xpose.msra.mxu0 0.0
    %2149 = vmatpush.xpose.msra.mxu0 0.0
    %2150 = vmatpush.xpose.msra.mxu0 0.0
    %2151 = vmatpush.xpose.msra.mxu0 0.0
    %2152 = vmatpush.xpose.msra.mxu0 %v2135
    %2153 = vmatmul.f32.gmra.mxu0 %v2133
    %v2154 = vpop.f32.mrf.mxu0
    %v2155 = vadd.f32 0.0, %v2154
    %2156 = vdwg.mxu0
    %2158 = vrot.lane.b32.xlu0 %v2117, 96
    %v2159 = vpop.permute.xlu0 %2158
    %v2160 = vsel %vm138, %v2117, 0
    %v2162 = vsel %vm138, %v2159, 0
    %2164 = vmatpush.xpose.msra.mxu0 0.0
    %2165 = vmatpush.xpose.msra.mxu0 0.0
    %2166 = vmatpush.xpose.msra.mxu0 0.0
    %2167 = vmatpush.xpose.msra.mxu0 0.0
    %2168 = vmatpush.xpose.msra.mxu0 0.0
    %2169 = vmatpush.xpose.msra.mxu0 0.0
    %2170 = vmatpush.xpose.msra.mxu0 0.0
    %2171 = vmatpush.xpose.msra.mxu0 0.0
    %2172 = vmatpush.xpose.msra.mxu0 0.0
    %2173 = vmatpush.xpose.msra.mxu0 0.0
    %2174 = vmatpush.xpose.msra.mxu0 0.0
    %2175 = vmatpush.xpose.msra.mxu0 0.0
    %2176 = vmatpush.xpose.msra.mxu0 0.0
    %2177 = vmatpush.xpose.msra.mxu0 0.0
    %2178 = vmatpush.xpose.msra.mxu0 0.0
    %2179 = vmatpush.xpose.msra.mxu0 %v2162
    %2180 = vmatmul.f32.gmra.mxu0 %v2160
    %v2181 = vpop.f32.mrf.mxu0
    %v2182 = vadd.f32 0.0, %v2181
    %2183 = vdwg.mxu0
    %v2184 = vmul.f32 %v2155, 0.35355338
    %v2185 = vmul.f32 %v2182, 0.35355338
    %v2186 = vadd.f32 %v2184, %v192
    %v2187 = vadd.f32 %v2185, %v193
    %v2188 = vsel %vm138, %v2186, -inf
    %2189 = vmax.xlane.f32.xlu0 %v2188
    %v2190 = vpop.xlane.xlu0 %2189
    %v2191 = vsel %vm138, %v2187, -inf
    %2192 = vmax.xlane.f32.xlu0 %v2191
    %v2193 = vpop.xlane.xlu0 %2192
    %v2194 = vsub.f32 %v2186, %v2190
    %v2195 = vsub.f32 %v2187, %v2193
    %v2196 = vmul.f32 %v2194, 1.442695
    %v2197 = vpow.pop %v2196
    %v2198 = vmul.f32 %v2195, 1.442695
    %v2199 = vpow.pop %v2198
    %v2200 = vsel %vm138, %v2197, 0.0
    %2201 = vadd.xlane.f32.xlu0 %v2200
    %v2202 = vpop.xlane.xlu0 %2201
    %v2203 = vsel %vm138, %v2199, 0.0
    %2204 = vadd.xlane.f32.xlu0 %v2203
    %v2205 = vpop.xlane.xlu0 %2204
    %v2206 = vrcp.pop %v2202
    %v2207 = vmul.f32 %v2202, %v2206
    %v2208 = vsub.f32 1.0, %v2207
    %v2209 = vmul.f32 %v2206, %v2208
    %v2210 = vadd.f32 %v2206, %v2209
    %vm2211 = vweird.f32 %v2202
    %vm2212 = vweird.f32 %v2206
    %vm2213 = vmor %vm2211, %vm2212
    %v2214 = vsel %vm2213, %v2206, %v2210
    %v2215 = vand.u32 2147483647, %v2202
    %vm2216 = vcmp.eq.f32.partialorder %v2215, 8.507059e+37
    %v2217 = vand.u32 %v2202, 2147483648
    %v2218 = vor.u32 1.1754944e-38, %v2217
    %v2219 = vsel %vm2216, %v2218, %v2214
    %v2220 = vrcp.pop %v2205
    %v2221 = vmul.f32 %v2205, %v2220
    %v2222 = vsub.f32 1.0, %v2221
    %v2223 = vmul.f32 %v2220, %v2222
    %v2224 = vadd.f32 %v2220, %v2223
    %vm2225 = vweird.f32 %v2205
    %vm2226 = vweird.f32 %v2220
    %vm2227 = vmor %vm2225, %vm2226
    %v2228 = vsel %vm2227, %v2220, %v2224
    %v2229 = vand.u32 2147483647, %v2205
    %vm2230 = vcmp.eq.f32.partialorder %v2229, 8.507059e+37
    %v2231 = vand.u32 %v2205, 2147483648
    %v2232 = vor.u32 1.1754944e-38, %v2231
    %v2233 = vsel %vm2230, %v2232, %v2228
    %v2234 = vmul.f32 %v2197, %v2219
    %v2235 = vmul.f32 %v2199, %v2233
    %2236 = vrot.lane.b32.xlu0 %v2114, 64
    %v2237 = vpop.permute.xlu0 %2236
    %v2240 = vsel %vm138, %v2234, 0
    %2242 = vmatpush.msra.mxu0 0.0
    %2243 = vmatpush.msra.mxu0 0.0
    %2244 = vmatpush.msra.mxu0 0.0
    %2245 = vmatpush.msra.mxu0 0.0
    %2246 = vmatpush.msra.mxu0 0.0
    %2247 = vmatpush.msra.mxu0 0.0
    %2248 = vmatpush.msra.mxu0 0.0
    %2249 = vmatpush.msra.mxu0 0.0
    %2250 = vmatpush.msra.mxu0 0.0
    %2251 = vmatpush.msra.mxu0 0.0
    %2252 = vmatpush.msra.mxu0 0.0
    %2253 = vmatpush.msra.mxu0 0.0
    %2254 = vmatpush.msra.mxu0 0.0
    %2255 = vmatpush.msra.mxu0 0.0
    %2256 = vmatpush.msra.mxu0 0.0
    %2257 = vmatpush.msra.mxu0 %v2237
    %2258 = vmatmul.f32.gmra.mxu0 %v2240
    %v2259 = vpop.f32.mrf.mxu0
    %v2260 = vadd.f32 0.0, %v2259
    %2261 = vdwg.mxu0
    %2262 = vrot.lane.b32.xlu0 %v2117, 64
    %v2263 = vpop.permute.xlu0 %2262
    %v2266 = vsel %vm138, %v2235, 0
    %2268 = vmatpush.msra.mxu0 0.0
    %2269 = vmatpush.msra.mxu0 0.0
    %2270 = vmatpush.msra.mxu0 0.0
    %2271 = vmatpush.msra.mxu0 0.0
    %2272 = vmatpush.msra.mxu0 0.0
    %2273 = vmatpush.msra.mxu0 0.0
    %2274 = vmatpush.msra.mxu0 0.0
    %2275 = vmatpush.msra.mxu0 0.0
    %2276 = vmatpush.msra.mxu0 0.0
    %2277 = vmatpush.msra.mxu0 0.0
    %2278 = vmatpush.msra.mxu0 0.0
    %2279 = vmatpush.msra.mxu0 0.0
    %2280 = vmatpush.msra.mxu0 0.0
    %2281 = vmatpush.msra.mxu0 0.0
    %2282 = vmatpush.msra.mxu0 0.0
    %2283 = vmatpush.msra.mxu0 %v2263
    %2284 = vmatmul.f32.gmra.mxu0 %v2266
    %v2285 = vpop.f32.mrf.mxu0
    %v2286 = vadd.f32 0.0, %v2285
    %2287 = vdwg.mxu0
    %v2289 = vsel %vm138, %v2260, 0
    %v2292 = vsel %vm138, %v2286, 0
    %2294 = vmatpush.msra.mxu0 0.0
    %2295 = vmatpush.msra.mxu0 0.0
    %2296 = vmatpush.msra.mxu0 0.0
    %2297 = vmatpush.msra.mxu0 0.0
    %2298 = vmatpush.msra.mxu0 0.0
    %2299 = vmatpush.msra.mxu0 0.0
    %2300 = vmatpush.msra.mxu0 0.0
    %2301 = vmatpush.msra.mxu0 0.0
    %2302 = vmatpush.msra.mxu0 0.0
    %2303 = vmatpush.msra.mxu0 0.0
    %2304 = vmatpush.msra.mxu0 0.0
    %2305 = vmatpush.msra.mxu0 0.0
    %2306 = vmatpush.msra.mxu0 0.0
    %2307 = vmatpush.msra.mxu0 0.0
    %2308 = vmatpush.msra.mxu0 0.0
    %2309 = vmatpush.msra.mxu0 %v2120
    %2310 = vmatmul.f32.gmra.mxu0 %v2289
    %v2311 = vpop.f32.mrf.mxu0
    %v2312 = vadd.f32 0.0, %v2311
    %2313 = vmatmul.f32.gmra.mxu0 %v2292
    %v2314 = vpop.f32.mrf.mxu0
    %v2315 = vadd.f32 0.0, %v2314
    %2316 = vdwg.mxu0
    %v2317 = vadd.f32 %v2129, %v2312
    %v2318 = vadd.f32 %v2129, %v2315
    %2319 = vrot.lane.b32.xlu0 %v2114, 120
    %v2320 = vpop.permute.xlu0 %2319
    %2321 = vrot.lane.b32.xlu0 %v2114, 88
    %v2322 = vpop.permute.xlu0 %2321
    %v2323 = vsel %vm138, %v2320, 0
    %v2325 = vsel %vm138, %v2322, 0
    %2327 = vmatpush.xpose.msra.mxu0 0.0
    %2328 = vmatpush.xpose.msra.mxu0 0.0
    %2329 = vmatpush.xpose.msra.mxu0 0.0
    %2330 = vmatpush.xpose.msra.mxu0 0.0
    %2331 = vmatpush.xpose.msra.mxu0 0.0
    %2332 = vmatpush.xpose.msra.mxu0 0.0
    %2333 = vmatpush.xpose.msra.mxu0 0.0
    %2334 = vmatpush.xpose.msra.mxu0 0.0
    %2335 = vmatpush.xpose.msra.mxu0 0.0
    %2336 = vmatpush.xpose.msra.mxu0 0.0
    %2337 = vmatpush.xpose.msra.mxu0 0.0
    %2338 = vmatpush.xpose.msra.mxu0 0.0
    %2339 = vmatpush.xpose.msra.mxu0 0.0
    %2340 = vmatpush.xpose.msra.mxu0 0.0
    %2341 = vmatpush.xpose.msra.mxu0 0.0
    %2342 = vmatpush.xpose.msra.mxu0 %v2325
    %2343 = vmatmul.f32.gmra.mxu0 %v2323
    %v2344 = vpop.f32.mrf.mxu0
    %v2345 = vadd.f32 0.0, %v2344
    %2346 = vdwg.mxu0
    %2347 = vrot.lane.b32.xlu0 %v2117, 120
    %v2348 = vpop.permute.xlu0 %2347
    %2349 = vrot.lane.b32.xlu0 %v2117, 88
    %v2350 = vpop.permute.xlu0 %2349
    %v2351 = vsel %vm138, %v2348, 0
    %v2353 = vsel %vm138, %v2350, 0
    %2355 = vmatpush.xpose.msra.mxu0 0.0
    %2356 = vmatpush.xpose.msra.mxu0 0.0
    %2357 = vmatpush.xpose.msra.mxu0 0.0
    %2358 = vmatpush.xpose.msra.mxu0 0.0
    %2359 = vmatpush.xpose.msra.mxu0 0.0
    %2360 = vmatpush.xpose.msra.mxu0 0.0
    %2361 = vmatpush.xpose.msra.mxu0 0.0
    %2362 = vmatpush.xpose.msra.mxu0 0.0
    %2363 = vmatpush.xpose.msra.mxu0 0.0
    %2364 = vmatpush.xpose.msra.mxu0 0.0
    %2365 = vmatpush.xpose.msra.mxu0 0.0
    %2366 = vmatpush.xpose.msra.mxu0 0.0
    %2367 = vmatpush.xpose.msra.mxu0 0.0
    %2368 = vmatpush.xpose.msra.mxu0 0.0
    %2369 = vmatpush.xpose.msra.mxu0 0.0
    %2370 = vmatpush.xpose.msra.mxu0 %v2353
    %2371 = vmatmul.f32.gmra.mxu0 %v2351
    %v2372 = vpop.f32.mrf.mxu0
    %v2373 = vadd.f32 0.0, %v2372
    %2374 = vdwg.mxu0
    %v2375 = vmul.f32 %v2345, 0.35355338
    %v2376 = vmul.f32 %v2373, 0.35355338
    %v2377 = vadd.f32 %v2375, %v192
    %v2378 = vadd.f32 %v2376, %v193
    %v2379 = vsel %vm138, %v2377, -inf
    %2380 = vmax.xlane.f32.xlu0 %v2379
    %v2381 = vpop.xlane.xlu0 %2380
    %v2382 = vsel %vm138, %v2378, -inf
    %2383 = vmax.xlane.f32.xlu0 %v2382
    %v2384 = vpop.xlane.xlu0 %2383
    %v2385 = vsub.f32 %v2377, %v2381
    %v2386 = vsub.f32 %v2378, %v2384
    %v2387 = vmul.f32 %v2385, 1.442695
    %v2388 = vpow.pop %v2387
    %v2389 = vmul.f32 %v2386, 1.442695
    %v2390 = vpow.pop %v2389
    %v2391 = vsel %vm138, %v2388, 0.0
    %2392 = vadd.xlane.f32.xlu0 %v2391
    %v2393 = vpop.xlane.xlu0 %2392
    %v2394 = vsel %vm138, %v2390, 0.0
    %2395 = vadd.xlane.f32.xlu0 %v2394
    %v2396 = vpop.xlane.xlu0 %2395
    %v2397 = vrcp.pop %v2393
    %v2398 = vmul.f32 %v2393, %v2397
    %v2399 = vsub.f32 1.0, %v2398
    %v2400 = vmul.f32 %v2397, %v2399
    %v2401 = vadd.f32 %v2397, %v2400
    %vm2402 = vweird.f32 %v2393
    %vm2403 = vweird.f32 %v2397
    %vm2404 = vmor %vm2402, %vm2403
    %v2405 = vsel %vm2404, %v2397, %v2401
    %v2406 = vand.u32 2147483647, %v2393
    %vm2407 = vcmp.eq.f32.partialorder %v2406, 8.507059e+37
    %v2408 = vand.u32 %v2393, 2147483648
    %v2409 = vor.u32 1.1754944e-38, %v2408
    %v2410 = vsel %vm2407, %v2409, %v2405
    %v2411 = vrcp.pop %v2396
    %v2412 = vmul.f32 %v2396, %v2411
    %v2413 = vsub.f32 1.0, %v2412
    %v2414 = vmul.f32 %v2411, %v2413
    %v2415 = vadd.f32 %v2411, %v2414
    %vm2416 = vweird.f32 %v2396
    %vm2417 = vweird.f32 %v2411
    %vm2418 = vmor %vm2416, %vm2417
    %v2419 = vsel %vm2418, %v2411, %v2415
    %v2420 = vand.u32 2147483647, %v2396
    %vm2421 = vcmp.eq.f32.partialorder %v2420, 8.507059e+37
    %v2422 = vand.u32 %v2396, 2147483648
    %v2423 = vor.u32 1.1754944e-38, %v2422
    %v2424 = vsel %vm2421, %v2423, %v2419
    %v2425 = vmul.f32 %v2388, %v2410
    %v2426 = vmul.f32 %v2390, %v2424
    %2427 = vrot.lane.b32.xlu0 %v2114, 56
    %v2428 = vpop.permute.xlu0 %2427
    %v2431 = vsel %vm138, %v2425, 0
    %2433 = vmatpush.msra.mxu0 0.0
    %2434 = vmatpush.msra.mxu0 0.0
    %2435 = vmatpush.msra.mxu0 0.0
    %2436 = vmatpush.msra.mxu0 0.0
    %2437 = vmatpush.msra.mxu0 0.0
    %2438 = vmatpush.msra.mxu0 0.0
    %2439 = vmatpush.msra.mxu0 0.0
    %2440 = vmatpush.msra.mxu0 0.0
    %2441 = vmatpush.msra.mxu0 0.0
    %2442 = vmatpush.msra.mxu0 0.0
    %2443 = vmatpush.msra.mxu0 0.0
    %2444 = vmatpush.msra.mxu0 0.0
    %2445 = vmatpush.msra.mxu0 0.0
    %2446 = vmatpush.msra.mxu0 0.0
    %2447 = vmatpush.msra.mxu0 0.0
    %2448 = vmatpush.msra.mxu0 %v2428
    %2449 = vmatmul.f32.gmra.mxu0 %v2431
    %v2450 = vpop.f32.mrf.mxu0
    %v2451 = vadd.f32 0.0, %v2450
    %2452 = vdwg.mxu0
    %2453 = vrot.lane.b32.xlu0 %v2117, 56
    %v2454 = vpop.permute.xlu0 %2453
    %v2457 = vsel %vm138, %v2426, 0
    %2459 = vmatpush.msra.mxu0 0.0
    %2460 = vmatpush.msra.mxu0 0.0
    %2461 = vmatpush.msra.mxu0 0.0
    %2462 = vmatpush.msra.mxu0 0.0
    %2463 = vmatpush.msra.mxu0 0.0
    %2464 = vmatpush.msra.mxu0 0.0
    %2465 = vmatpush.msra.mxu0 0.0
    %2466 = vmatpush.msra.mxu0 0.0
    %2467 = vmatpush.msra.mxu0 0.0
    %2468 = vmatpush.msra.mxu0 0.0
    %2469 = vmatpush.msra.mxu0 0.0
    %2470 = vmatpush.msra.mxu0 0.0
    %2471 = vmatpush.msra.mxu0 0.0
    %2472 = vmatpush.msra.mxu0 0.0
    %2473 = vmatpush.msra.mxu0 0.0
    %2474 = vmatpush.msra.mxu0 %v2454
    %2475 = vmatmul.f32.gmra.mxu0 %v2457
    %v2476 = vpop.f32.mrf.mxu0
    %v2477 = vadd.f32 0.0, %v2476
    %2478 = vdwg.mxu0
    %v2480 = vsel %vm138, %v2451, 0
    %v2483 = vsel %vm138, %v2477, 0
    %2485 = vmatpush.msra.mxu0 0.0
    %2486 = vmatpush.msra.mxu0 0.0
    %2487 = vmatpush.msra.mxu0 0.0
    %2488 = vmatpush.msra.mxu0 0.0
    %2489 = vmatpush.msra.mxu0 0.0
    %2490 = vmatpush.msra.mxu0 0.0
    %2491 = vmatpush.msra.mxu0 0.0
    %2492 = vmatpush.msra.mxu0 0.0
    %2493 = vmatpush.msra.mxu0 0.0
    %2494 = vmatpush.msra.mxu0 0.0
    %2495 = vmatpush.msra.mxu0 0.0
    %2496 = vmatpush.msra.mxu0 0.0
    %2497 = vmatpush.msra.mxu0 0.0
    %2498 = vmatpush.msra.mxu0 0.0
    %2499 = vmatpush.msra.mxu0 0.0
    %2500 = vmatpush.msra.mxu0 %v2121
    %2501 = vmatmul.f32.gmra.mxu0 %v2480
    %v2502 = vpop.f32.mrf.mxu0
    %v2503 = vadd.f32 0.0, %v2502
    %2504 = vmatmul.f32.gmra.mxu0 %v2483
    %v2505 = vpop.f32.mrf.mxu0
    %v2506 = vadd.f32 0.0, %v2505
    %2507 = vdwg.mxu0
    %v2508 = vadd.f32 %v2317, %v2503
    %v2509 = vadd.f32 %v2318, %v2506
    %2510 = vrot.lane.b32.xlu0 %v2114, 112
    %v2511 = vpop.permute.xlu0 %2510
    %2512 = vrot.lane.b32.xlu0 %v2114, 80
    %v2513 = vpop.permute.xlu0 %2512
    %v2514 = vsel %vm138, %v2511, 0
    %v2516 = vsel %vm138, %v2513, 0
    %2518 = vmatpush.xpose.msra.mxu0 0.0
    %2519 = vmatpush.xpose.msra.mxu0 0.0
    %2520 = vmatpush.xpose.msra.mxu0 0.0
    %2521 = vmatpush.xpose.msra.mxu0 0.0
    %2522 = vmatpush.xpose.msra.mxu0 0.0
    %2523 = vmatpush.xpose.msra.mxu0 0.0
    %2524 = vmatpush.xpose.msra.mxu0 0.0
    %2525 = vmatpush.xpose.msra.mxu0 0.0
    %2526 = vmatpush.xpose.msra.mxu0 0.0
    %2527 = vmatpush.xpose.msra.mxu0 0.0
    %2528 = vmatpush.xpose.msra.mxu0 0.0
    %2529 = vmatpush.xpose.msra.mxu0 0.0
    %2530 = vmatpush.xpose.msra.mxu0 0.0
    %2531 = vmatpush.xpose.msra.mxu0 0.0
    %2532 = vmatpush.xpose.msra.mxu0 0.0
    %2533 = vmatpush.xpose.msra.mxu0 %v2516
    %2534 = vmatmul.f32.gmra.mxu0 %v2514
    %v2535 = vpop.f32.mrf.mxu0
    %v2536 = vadd.f32 0.0, %v2535
    %2537 = vdwg.mxu0
    %2538 = vrot.lane.b32.xlu0 %v2117, 112
    %v2539 = vpop.permute.xlu0 %2538
    %2540 = vrot.lane.b32.xlu0 %v2117, 80
    %v2541 = vpop.permute.xlu0 %2540
    %v2542 = vsel %vm138, %v2539, 0
    %v2544 = vsel %vm138, %v2541, 0
    %2546 = vmatpush.xpose.msra.mxu0 0.0
    %2547 = vmatpush.xpose.msra.mxu0 0.0
    %2548 = vmatpush.xpose.msra.mxu0 0.0
    %2549 = vmatpush.xpose.msra.mxu0 0.0
    %2550 = vmatpush.xpose.msra.mxu0 0.0
    %2551 = vmatpush.xpose.msra.mxu0 0.0
    %2552 = vmatpush.xpose.msra.mxu0 0.0
    %2553 = vmatpush.xpose.msra.mxu0 0.0
    %2554 = vmatpush.xpose.msra.mxu0 0.0
    %2555 = vmatpush.xpose.msra.mxu0 0.0
    %2556 = vmatpush.xpose.msra.mxu0 0.0
    %2557 = vmatpush.xpose.msra.mxu0 0.0
    %2558 = vmatpush.xpose.msra.mxu0 0.0
    %2559 = vmatpush.xpose.msra.mxu0 0.0
    %2560 = vmatpush.xpose.msra.mxu0 0.0
    %2561 = vmatpush.xpose.msra.mxu0 %v2544
    %2562 = vmatmul.f32.gmra.mxu0 %v2542
    %v2563 = vpop.f32.mrf.mxu0
    %v2564 = vadd.f32 0.0, %v2563
    %2565 = vdwg.mxu0
    %v2566 = vmul.f32 %v2536, 0.35355338
    %v2567 = vmul.f32 %v2564, 0.35355338
    %v2568 = vadd.f32 %v2566, %v192
    %v2569 = vadd.f32 %v2567, %v193
    %v2570 = vsel %vm138, %v2568, -inf
    %2571 = vmax.xlane.f32.xlu0 %v2570
    %v2572 = vpop.xlane.xlu0 %2571
    %v2573 = vsel %vm138, %v2569, -inf
    %2574 = vmax.xlane.f32.xlu0 %v2573
    %v2575 = vpop.xlane.xlu0 %2574
    %v2576 = vsub.f32 %v2568, %v2572
    %v2577 = vsub.f32 %v2569, %v2575
    %v2578 = vmul.f32 %v2576, 1.442695
    %v2579 = vpow.pop %v2578
    %v2580 = vmul.f32 %v2577, 1.442695
    %v2581 = vpow.pop %v2580
    %v2582 = vsel %vm138, %v2579, 0.0
    %2583 = vadd.xlane.f32.xlu0 %v2582
    %v2584 = vpop.xlane.xlu0 %2583
    %v2585 = vsel %vm138, %v2581, 0.0
    %2586 = vadd.xlane.f32.xlu0 %v2585
    %v2587 = vpop.xlane.xlu0 %2586
    %v2588 = vrcp.pop %v2584
    %v2589 = vmul.f32 %v2584, %v2588
    %v2590 = vsub.f32 1.0, %v2589
    %v2591 = vmul.f32 %v2588, %v2590
    %v2592 = vadd.f32 %v2588, %v2591
    %vm2593 = vweird.f32 %v2584
    %vm2594 = vweird.f32 %v2588
    %vm2595 = vmor %vm2593, %vm2594
    %v2596 = vsel %vm2595, %v2588, %v2592
    %v2597 = vand.u32 2147483647, %v2584
    %vm2598 = vcmp.eq.f32.partialorder %v2597, 8.507059e+37
    %v2599 = vand.u32 %v2584, 2147483648
    %v2600 = vor.u32 1.1754944e-38, %v2599
    %v2601 = vsel %vm2598, %v2600, %v2596
    %v2602 = vrcp.pop %v2587
    %v2603 = vmul.f32 %v2587, %v2602
    %v2604 = vsub.f32 1.0, %v2603
    %v2605 = vmul.f32 %v2602, %v2604
    %v2606 = vadd.f32 %v2602, %v2605
    %vm2607 = vweird.f32 %v2587
    %vm2608 = vweird.f32 %v2602
    %vm2609 = vmor %vm2607, %vm2608
    %v2610 = vsel %vm2609, %v2602, %v2606
    %v2611 = vand.u32 2147483647, %v2587
    %vm2612 = vcmp.eq.f32.partialorder %v2611, 8.507059e+37
    %v2613 = vand.u32 %v2587, 2147483648
    %v2614 = vor.u32 1.1754944e-38, %v2613
    %v2615 = vsel %vm2612, %v2614, %v2610
    %v2616 = vmul.f32 %v2579, %v2601
    %v2617 = vmul.f32 %v2581, %v2615
    %2618 = vrot.lane.b32.xlu0 %v2114, 48
    %v2619 = vpop.permute.xlu0 %2618
    %v2622 = vsel %vm138, %v2616, 0
    %2624 = vmatpush.msra.mxu0 0.0
    %2625 = vmatpush.msra.mxu0 0.0
    %2626 = vmatpush.msra.mxu0 0.0
    %2627 = vmatpush.msra.mxu0 0.0
    %2628 = vmatpush.msra.mxu0 0.0
    %2629 = vmatpush.msra.mxu0 0.0
    %2630 = vmatpush.msra.mxu0 0.0
    %2631 = vmatpush.msra.mxu0 0.0
    %2632 = vmatpush.msra.mxu0 0.0
    %2633 = vmatpush.msra.mxu0 0.0
    %2634 = vmatpush.msra.mxu0 0.0
    %2635 = vmatpush.msra.mxu0 0.0
    %2636 = vmatpush.msra.mxu0 0.0
    %2637 = vmatpush.msra.mxu0 0.0
    %2638 = vmatpush.msra.mxu0 0.0
    %2639 = vmatpush.msra.mxu0 %v2619
    %2640 = vmatmul.f32.gmra.mxu0 %v2622
    %v2641 = vpop.f32.mrf.mxu0
    %v2642 = vadd.f32 0.0, %v2641
    %2643 = vdwg.mxu0
    %2644 = vrot.lane.b32.xlu0 %v2117, 48
    %v2645 = vpop.permute.xlu0 %2644
    %v2648 = vsel %vm138, %v2617, 0
    %2650 = vmatpush.msra.mxu0 0.0
    %2651 = vmatpush.msra.mxu0 0.0
    %2652 = vmatpush.msra.mxu0 0.0
    %2653 = vmatpush.msra.mxu0 0.0
    %2654 = vmatpush.msra.mxu0 0.0
    %2655 = vmatpush.msra.mxu0 0.0
    %2656 = vmatpush.msra.mxu0 0.0
    %2657 = vmatpush.msra.mxu0 0.0
    %2658 = vmatpush.msra.mxu0 0.0
    %2659 = vmatpush.msra.mxu0 0.0
    %2660 = vmatpush.msra.mxu0 0.0
    %2661 = vmatpush.msra.mxu0 0.0
    %2662 = vmatpush.msra.mxu0 0.0
    %2663 = vmatpush.msra.mxu0 0.0
    %2664 = vmatpush.msra.mxu0 0.0
    %2665 = vmatpush.msra.mxu0 %v2645
    %2666 = vmatmul.f32.gmra.mxu0 %v2648
    %v2667 = vpop.f32.mrf.mxu0
    %v2668 = vadd.f32 0.0, %v2667
    %2669 = vdwg.mxu0
    %v2671 = vsel %vm138, %v2642, 0
    %v2674 = vsel %vm138, %v2668, 0
    %2676 = vmatpush.msra.mxu0 0.0
    %2677 = vmatpush.msra.mxu0 0.0
    %2678 = vmatpush.msra.mxu0 0.0
    %2679 = vmatpush.msra.mxu0 0.0
    %2680 = vmatpush.msra.mxu0 0.0
    %2681 = vmatpush.msra.mxu0 0.0
    %2682 = vmatpush.msra.mxu0 0.0
    %2683 = vmatpush.msra.mxu0 0.0
    %2684 = vmatpush.msra.mxu0 0.0
    %2685 = vmatpush.msra.mxu0 0.0
    %2686 = vmatpush.msra.mxu0 0.0
    %2687 = vmatpush.msra.mxu0 0.0
    %2688 = vmatpush.msra.mxu0 0.0
    %2689 = vmatpush.msra.mxu0 0.0
    %2690 = vmatpush.msra.mxu0 0.0
    %2691 = vmatpush.msra.mxu0 %v2122
    %2692 = vmatmul.f32.gmra.mxu0 %v2671
    %v2693 = vpop.f32.mrf.mxu0
    %v2694 = vadd.f32 0.0, %v2693
    %2695 = vmatmul.f32.gmra.mxu0 %v2674
    %v2696 = vpop.f32.mrf.mxu0
    %v2697 = vadd.f32 0.0, %v2696
    %2698 = vdwg.mxu0
    %v2699 = vadd.f32 %v2508, %v2694
    %v2700 = vadd.f32 %v2509, %v2697
    %2701 = vrot.lane.b32.xlu0 %v2114, 104
    %v2702 = vpop.permute.xlu0 %2701
    %2703 = vrot.lane.b32.xlu0 %v2114, 72
    %v2704 = vpop.permute.xlu0 %2703
    %v2705 = vsel %vm138, %v2702, 0
    %v2707 = vsel %vm138, %v2704, 0
    %2709 = vmatpush.xpose.msra.mxu0 0.0
    %2710 = vmatpush.xpose.msra.mxu0 0.0
    %2711 = vmatpush.xpose.msra.mxu0 0.0
    %2712 = vmatpush.xpose.msra.mxu0 0.0
    %2713 = vmatpush.xpose.msra.mxu0 0.0
    %2714 = vmatpush.xpose.msra.mxu0 0.0
    %2715 = vmatpush.xpose.msra.mxu0 0.0
    %2716 = vmatpush.xpose.msra.mxu0 0.0
    %2717 = vmatpush.xpose.msra.mxu0 0.0
    %2718 = vmatpush.xpose.msra.mxu0 0.0
    %2719 = vmatpush.xpose.msra.mxu0 0.0
    %2720 = vmatpush.xpose.msra.mxu0 0.0
    %2721 = vmatpush.xpose.msra.mxu0 0.0
    %2722 = vmatpush.xpose.msra.mxu0 0.0
    %2723 = vmatpush.xpose.msra.mxu0 0.0
    %2724 = vmatpush.xpose.msra.mxu0 %v2707
    %2725 = vmatmul.f32.gmra.mxu0 %v2705
    %v2726 = vpop.f32.mrf.mxu0
    %v2727 = vadd.f32 0.0, %v2726
    %2728 = vdwg.mxu0
    %2729 = vrot.lane.b32.xlu0 %v2117, 104
    %v2730 = vpop.permute.xlu0 %2729
    %2731 = vrot.lane.b32.xlu0 %v2117, 72
    %v2732 = vpop.permute.xlu0 %2731
    %v2733 = vsel %vm138, %v2730, 0
    %v2735 = vsel %vm138, %v2732, 0
    %2737 = vmatpush.xpose.msra.mxu0 0.0
    %2738 = vmatpush.xpose.msra.mxu0 0.0
    %2739 = vmatpush.xpose.msra.mxu0 0.0
    %2740 = vmatpush.xpose.msra.mxu0 0.0
    %2741 = vmatpush.xpose.msra.mxu0 0.0
    %2742 = vmatpush.xpose.msra.mxu0 0.0
    %2743 = vmatpush.xpose.msra.mxu0 0.0
    %2744 = vmatpush.xpose.msra.mxu0 0.0
    %2745 = vmatpush.xpose.msra.mxu0 0.0
    %2746 = vmatpush.xpose.msra.mxu0 0.0
    %2747 = vmatpush.xpose.msra.mxu0 0.0
    %2748 = vmatpush.xpose.msra.mxu0 0.0
    %2749 = vmatpush.xpose.msra.mxu0 0.0
    %2750 = vmatpush.xpose.msra.mxu0 0.0
    %2751 = vmatpush.xpose.msra.mxu0 0.0
    %2752 = vmatpush.xpose.msra.mxu0 %v2735
    %2753 = vmatmul.f32.gmra.mxu0 %v2733
    %v2754 = vpop.f32.mrf.mxu0
    %v2755 = vadd.f32 0.0, %v2754
    %2756 = vdwg.mxu0
    %v2757 = vmul.f32 %v2727, 0.35355338
    %v2758 = vmul.f32 %v2755, 0.35355338
    %v2759 = vadd.f32 %v2757, %v192
    %v2760 = vadd.f32 %v2758, %v193
    %v2761 = vsel %vm138, %v2759, -inf
    %2762 = vmax.xlane.f32.xlu0 %v2761
    %v2763 = vpop.xlane.xlu0 %2762
    %v2764 = vsel %vm138, %v2760, -inf
    %2765 = vmax.xlane.f32.xlu0 %v2764
    %v2766 = vpop.xlane.xlu0 %2765
    %v2767 = vsub.f32 %v2759, %v2763
    %v2768 = vsub.f32 %v2760, %v2766
    %v2769 = vmul.f32 %v2767, 1.442695
    %v2770 = vpow.pop %v2769
    %v2771 = vmul.f32 %v2768, 1.442695
    %v2772 = vpow.pop %v2771
    %v2773 = vsel %vm138, %v2770, 0.0
    %2774 = vadd.xlane.f32.xlu0 %v2773
    %v2775 = vpop.xlane.xlu0 %2774
    %v2776 = vsel %vm138, %v2772, 0.0
    %2777 = vadd.xlane.f32.xlu0 %v2776
    %v2778 = vpop.xlane.xlu0 %2777
    %v2779 = vrcp.pop %v2775
    %v2780 = vmul.f32 %v2775, %v2779
    %v2781 = vsub.f32 1.0, %v2780
    %v2782 = vmul.f32 %v2779, %v2781
    %v2783 = vadd.f32 %v2779, %v2782
    %vm2784 = vweird.f32 %v2775
    %vm2785 = vweird.f32 %v2779
    %vm2786 = vmor %vm2784, %vm2785
    %v2787 = vsel %vm2786, %v2779, %v2783
    %v2788 = vand.u32 2147483647, %v2775
    %vm2789 = vcmp.eq.f32.partialorder %v2788, 8.507059e+37
    %v2790 = vand.u32 %v2775, 2147483648
    %v2791 = vor.u32 1.1754944e-38, %v2790
    %v2792 = vsel %vm2789, %v2791, %v2787
    %v2793 = vrcp.pop %v2778
    %v2794 = vmul.f32 %v2778, %v2793
    %v2795 = vsub.f32 1.0, %v2794
    %v2796 = vmul.f32 %v2793, %v2795
    %v2797 = vadd.f32 %v2793, %v2796
    %vm2798 = vweird.f32 %v2778
    %vm2799 = vweird.f32 %v2793
    %vm2800 = vmor %vm2798, %vm2799
    %v2801 = vsel %vm2800, %v2793, %v2797
    %v2802 = vand.u32 2147483647, %v2778
    %vm2803 = vcmp.eq.f32.partialorder %v2802, 8.507059e+37
    %v2804 = vand.u32 %v2778, 2147483648
    %v2805 = vor.u32 1.1754944e-38, %v2804
    %v2806 = vsel %vm2803, %v2805, %v2801
    %v2807 = vmul.f32 %v2770, %v2792
    %v2808 = vmul.f32 %v2772, %v2806
    %2809 = vrot.lane.b32.xlu0 %v2114, 40
    %v2810 = vpop.permute.xlu0 %2809
    %v2813 = vsel %vm138, %v2807, 0
    %2815 = vmatpush.msra.mxu0 0.0
    %2816 = vmatpush.msra.mxu0 0.0
    %2817 = vmatpush.msra.mxu0 0.0
    %2818 = vmatpush.msra.mxu0 0.0
    %2819 = vmatpush.msra.mxu0 0.0
    %2820 = vmatpush.msra.mxu0 0.0
    %2821 = vmatpush.msra.mxu0 0.0
    %2822 = vmatpush.msra.mxu0 0.0
    %2823 = vmatpush.msra.mxu0 0.0
    %2824 = vmatpush.msra.mxu0 0.0
    %2825 = vmatpush.msra.mxu0 0.0
    %2826 = vmatpush.msra.mxu0 0.0
    %2827 = vmatpush.msra.mxu0 0.0
    %2828 = vmatpush.msra.mxu0 0.0
    %2829 = vmatpush.msra.mxu0 0.0
    %2830 = vmatpush.msra.mxu0 %v2810
    %2831 = vmatmul.f32.gmra.mxu0 %v2813
    %v2832 = vpop.f32.mrf.mxu0
    %v2833 = vadd.f32 0.0, %v2832
    %2834 = vdwg.mxu0
    %2835 = vrot.lane.b32.xlu0 %v2117, 40
    %v2836 = vpop.permute.xlu0 %2835
    %v2839 = vsel %vm138, %v2808, 0
    %2841 = vmatpush.msra.mxu0 0.0
    %2842 = vmatpush.msra.mxu0 0.0
    %2843 = vmatpush.msra.mxu0 0.0
    %2844 = vmatpush.msra.mxu0 0.0
    %2845 = vmatpush.msra.mxu0 0.0
    %2846 = vmatpush.msra.mxu0 0.0
    %2847 = vmatpush.msra.mxu0 0.0
    %2848 = vmatpush.msra.mxu0 0.0
    %2849 = vmatpush.msra.mxu0 0.0
    %2850 = vmatpush.msra.mxu0 0.0
    %2851 = vmatpush.msra.mxu0 0.0
    %2852 = vmatpush.msra.mxu0 0.0
    %2853 = vmatpush.msra.mxu0 0.0
    %2854 = vmatpush.msra.mxu0 0.0
    %2855 = vmatpush.msra.mxu0 0.0
    %2856 = vmatpush.msra.mxu0 %v2836
    %2857 = vmatmul.f32.gmra.mxu0 %v2839
    %v2858 = vpop.f32.mrf.mxu0
    %v2859 = vadd.f32 0.0, %v2858
    %2860 = vdwg.mxu0
    %v2862 = vsel %vm138, %v2833, 0
    %v2865 = vsel %vm138, %v2859, 0
    %2867 = vmatpush.msra.mxu0 0.0
    %2868 = vmatpush.msra.mxu0 0.0
    %2869 = vmatpush.msra.mxu0 0.0
    %2870 = vmatpush.msra.mxu0 0.0
    %2871 = vmatpush.msra.mxu0 0.0
    %2872 = vmatpush.msra.mxu0 0.0
    %2873 = vmatpush.msra.mxu0 0.0
    %2874 = vmatpush.msra.mxu0 0.0
    %2875 = vmatpush.msra.mxu0 0.0
    %2876 = vmatpush.msra.mxu0 0.0
    %2877 = vmatpush.msra.mxu0 0.0
    %2878 = vmatpush.msra.mxu0 0.0
    %2879 = vmatpush.msra.mxu0 0.0
    %2880 = vmatpush.msra.mxu0 0.0
    %2881 = vmatpush.msra.mxu0 0.0
    %2882 = vmatpush.msra.mxu0 %v2123
    %2883 = vmatmul.f32.gmra.mxu0 %v2862
    %v2884 = vpop.f32.mrf.mxu0
    %v2885 = vadd.f32 0.0, %v2884
    %2886 = vmatmul.f32.gmra.mxu0 %v2865
    %v2887 = vpop.f32.mrf.mxu0
    %v2888 = vadd.f32 0.0, %v2887
    %2889 = vdwg.mxu0
    %v2890 = vadd.f32 %v2699, %v2885
    %v2891 = vadd.f32 %v2700, %v2888
    %v2892 = vadd.f32 %v2078, %v2890
    %v2893 = vadd.f32 %v2079, %v2891
    %s2894 = scalar_lea.vmem %s14, 1
    %v2895 = vld [vmem:[%s2894] sm:$0x1]
    %s2896 = scalar_lea.vmem %s15, 1
    %v2897 = vld [vmem:[%s2896] sm:$0x1]
    %v2898 = vsel %vm94, %v2892, 0.0
    %2899 = vadd.xlane.f32.xlu0 %v2898
    %v2900 = vpop.xlane.xlu0 %2899
    %v2901 = vsel %vm94, %v2893, 0.0
    %2902 = vadd.xlane.f32.xlu0 %v2901
    %v2903 = vpop.xlane.xlu0 %2902
    %v2904 = vmul.f32 %v2900, %v918
    %v2905 = vmul.f32 %v2903, %v918
    %v2906 = vsub.f32 %v2892, %v2904
    %v2907 = vsub.f32 %v2893, %v2905
    %v2908 = vmul.f32 %v2906, %v2906
    %v2909 = vmul.f32 %v2907, %v2907
    %v2910 = vsel %vm94, %v2908, 0.0
    %2911 = vadd.xlane.f32.xlu0 %v2910
    %v2912 = vpop.xlane.xlu0 %2911
    %v2913 = vsel %vm94, %v2909, 0.0
    %2914 = vadd.xlane.f32.xlu0 %v2913
    %v2915 = vpop.xlane.xlu0 %2914
    %v2916 = vmul.f32 %v2912, %v918
    %v2917 = vmul.f32 %v2915, %v918
    %v2918 = vadd.f32 %v2916, 1e-05
    %v2919 = vadd.f32 %v2917, 1e-05
    %v2920 = vrsqrt.pop %v2918
    %v2921 = vmul.f32 %v2920, %v2918
    %v2922 = vmul.f32 %v2921, %v2920
    %v2923 = vmul.f32 0.5, %v2922
    %v2924 = vsub.f32 1.5, %v2923
    %v2925 = vmul.f32 %v2920, %v2924
    %vm2926 = vweird.f32 %v2918
    %vm2927 = vweird.f32 %v2920
    %vm2928 = vmor %vm2926, %vm2927
    %v2929 = vsel %vm2928, %v2920, %v2925
    %v2930 = vrsqrt.pop %v2919
    %v2931 = vmul.f32 %v2930, %v2919
    %v2932 = vmul.f32 %v2931, %v2930
    %v2933 = vmul.f32 0.5, %v2932
    %v2934 = vsub.f32 1.5, %v2933
    %v2935 = vmul.f32 %v2930, %v2934
    %vm2936 = vweird.f32 %v2919
    %vm2937 = vweird.f32 %v2930
    %vm2938 = vmor %vm2936, %vm2937
    %v2939 = vsel %vm2938, %v2930, %v2935
    %v2940 = vmul.f32 %v2906, %v2929
    %v2941 = vmul.f32 %v2907, %v2939
    %v2943 = vperm.slane %v2895, 0
    %v2945 = vmul.f32 %v2940, %v2943
    %v2946 = vmul.f32 %v2941, %v2943
    %v2948 = vperm.slane %v2897, 0
    %v2950 = vadd.f32 %v2945, %v2948
    %v2951 = vadd.f32 %v2946, %v2948
    %s2952 = scalar_lea.vmem %s8, 32
    %v2953 = vld [vmem:[%s2952] sm:$0xff]
    %v2954 = vld [vmem:[%s2952 + $0x8] sm:$0xff]
    %v2955 = vld [vmem:[%s2952 + $0x10] sm:$0xff]
    %v2956 = vld [vmem:[%s2952 + $0x18] sm:$0xff]
    %s2957 = scalar_lea.vmem %s9, 1
    %v2958 = vld [vmem:[%s2957] sm:$0x1]
    %v2960 = vperm.slane %v2958, 0
    %v2963 = vsel %vm94, %v2950, 0
    %v2966 = vsel %vm94, %v2951, 0
    %2968 = vmatpush.msra.mxu0 0.0
    %2969 = vmatpush.msra.mxu0 0.0
    %2970 = vmatpush.msra.mxu0 0.0
    %2971 = vmatpush.msra.mxu0 0.0
    %2972 = vmatpush.msra.mxu0 0.0
    %2973 = vmatpush.msra.mxu0 0.0
    %2974 = vmatpush.msra.mxu0 0.0
    %2975 = vmatpush.msra.mxu0 0.0
    %2976 = vmatpush.msra.mxu0 0.0
    %2977 = vmatpush.msra.mxu0 0.0
    %2978 = vmatpush.msra.mxu0 0.0
    %2979 = vmatpush.msra.mxu0 0.0
    %2980 = vmatpush.msra.mxu0 %v2956
    %2981 = vmatpush.msra.mxu0 %v2955
    %2982 = vmatpush.msra.mxu0 %v2954
    %2983 = vmatpush.msra.mxu0 %v2953
    %2984 = vmatmul.f32.gmra.mxu0 %v2963
    %v2985 = vpop.f32.mrf.mxu0
    %v2986 = vadd.f32 %v2960, %v2985
    %2987 = vmatmul.f32.gmra.mxu0 %v2966
    %v2988 = vpop.f32.mrf.mxu0
    %v2989 = vadd.f32 %v2960, %v2988
    %2990 = vdwg.mxu0
    %s2991 = scalar_lea.vmem %s10, 32
    %v2992 = vld [vmem:[%s2991] sm:$0xff]
    %v2993 = vld [vmem:[%s2991 + $0x8] sm:$0xff]
    %v2994 = vld [vmem:[%s2991 + $0x10] sm:$0xff]
    %v2995 = vld [vmem:[%s2991 + $0x18] sm:$0xff]
    %s2996 = scalar_lea.vmem %s11, 1
    %v2997 = vld [vmem:[%s2996] sm:$0x1]
    %v2999 = vperm.slane %v2997, 0
    %3001 = vmatpush.msra.mxu0 0.0
    %3002 = vmatpush.msra.mxu0 0.0
    %3003 = vmatpush.msra.mxu0 0.0
    %3004 = vmatpush.msra.mxu0 0.0
    %3005 = vmatpush.msra.mxu0 0.0
    %3006 = vmatpush.msra.mxu0 0.0
    %3007 = vmatpush.msra.mxu0 0.0
    %3008 = vmatpush.msra.mxu0 0.0
    %3009 = vmatpush.msra.mxu0 0.0
    %3010 = vmatpush.msra.mxu0 0.0
    %3011 = vmatpush.msra.mxu0 0.0
    %3012 = vmatpush.msra.mxu0 0.0
    %3013 = vmatpush.msra.mxu0 %v2995
    %3014 = vmatpush.msra.mxu0 %v2994
    %3015 = vmatpush.msra.mxu0 %v2993
    %3016 = vmatpush.msra.mxu0 %v2992
    %3017 = vmatmul.f32.gmra.mxu0 %v1013
    %v3018 = vpop.f32.mrf.mxu0
    %v3019 = vadd.f32 %v2999, %v3018
    %3020 = vmatmul.f32.gmra.mxu0 %v1016
    %v3021 = vpop.f32.mrf.mxu0
    %v3022 = vadd.f32 %v2999, %v3021
    %3023 = vmatmul.f32.gmra.mxu0 %v1019
    %v3024 = vpop.f32.mrf.mxu0
    %v3025 = vadd.f32 %v2999, %v3024
    %3026 = vmatmul.f32.gmra.mxu0 %v1022
    %v3027 = vpop.f32.mrf.mxu0
    %v3028 = vadd.f32 %v2999, %v3027
    %3029 = vdwg.mxu0
    %s3030 = scalar_lea.vmem %s12, 32
    %v3031 = vld [vmem:[%s3030] sm:$0xff]
    %v3032 = vld [vmem:[%s3030 + $0x8] sm:$0xff]
    %v3033 = vld [vmem:[%s3030 + $0x10] sm:$0xff]
    %v3034 = vld [vmem:[%s3030 + $0x18] sm:$0xff]
    %s3035 = scalar_lea.vmem %s13, 1
    %v3036 = vld [vmem:[%s3035] sm:$0x1]
    %v3038 = vperm.slane %v3036, 0
    %v3040 = vadd.f32 %v3038, 0.0
    %v3042 = vsel %vm138, %v2986, 0
    %v3045 = vsel %vm138, %v3019, 0
    %v3048 = vsel %vm138, %v3022, 0
    %3050 = vmatpush.xpose.msra.mxu0 0.0
    %3051 = vmatpush.xpose.msra.mxu0 0.0
    %3052 = vmatpush.xpose.msra.mxu0 0.0
    %3053 = vmatpush.xpose.msra.mxu0 0.0
    %3054 = vmatpush.xpose.msra.mxu0 0.0
    %3055 = vmatpush.xpose.msra.mxu0 0.0
    %3056 = vmatpush.xpose.msra.mxu0 0.0
    %3057 = vmatpush.xpose.msra.mxu0 0.0
    %3058 = vmatpush.xpose.msra.mxu0 0.0
    %3059 = vmatpush.xpose.msra.mxu0 0.0
    %3060 = vmatpush.xpose.msra.mxu0 0.0
    %3061 = vmatpush.xpose.msra.mxu0 0.0
    %3062 = vmatpush.xpose.msra.mxu0 0.0
    %3063 = vmatpush.xpose.msra.mxu0 0.0
    %3064 = vmatpush.xpose.msra.mxu0 %v3048
    %3065 = vmatpush.xpose.msra.mxu0 %v3045
    %3066 = vmatmul.f32.gmra.mxu0 %v3042
    %v3067 = vpop.f32.mrf.mxu0
    %v3068 = vadd.f32 0.0, %v3067
    %3069 = vdwg.mxu0
    %v3071 = vsel %vm138, %v2989, 0
    %v3074 = vsel %vm138, %v3025, 0
    %v3077 = vsel %vm138, %v3028, 0
    %3079 = vmatpush.xpose.msra.mxu0 0.0
    %3080 = vmatpush.xpose.msra.mxu0 0.0
    %3081 = vmatpush.xpose.msra.mxu0 0.0
    %3082 = vmatpush.xpose.msra.mxu0 0.0
    %3083 = vmatpush.xpose.msra.mxu0 0.0
    %3084 = vmatpush.xpose.msra.mxu0 0.0
    %3085 = vmatpush.xpose.msra.mxu0 0.0
    %3086 = vmatpush.xpose.msra.mxu0 0.0
    %3087 = vmatpush.xpose.msra.mxu0 0.0
    %3088 = vmatpush.xpose.msra.mxu0 0.0
    %3089 = vmatpush.xpose.msra.mxu0 0.0
    %3090 = vmatpush.xpose.msra.mxu0 0.0
    %3091 = vmatpush.xpose.msra.mxu0 0.0
    %3092 = vmatpush.xpose.msra.mxu0 0.0
    %3093 = vmatpush.xpose.msra.mxu0 %v3077
    %3094 = vmatpush.xpose.msra.mxu0 %v3074
    %3095 = vmatmul.f32.gmra.mxu0 %v3071
    %v3096 = vpop.f32.mrf.mxu0
    %v3097 = vadd.f32 0.0, %v3096
    %3098 = vdwg.mxu0
    %v3099 = vmul.f32 %v3068, 0.35355338
    %v3100 = vmul.f32 %v3097, 0.35355338
    %v3101 = vadd.f32 %v3099, %v1124
    %v3102 = vadd.f32 %v3100, %v1125
    %v3103 = vsel %vm1130, %v3101, -inf
    %3104 = vmax.xlane.f32.xlu0 %v3103
    %v3105 = vpop.xlane.xlu0 %3104
    %v3106 = vsel %vm1130, %v3102, -inf
    %3107 = vmax.xlane.f32.xlu0 %v3106
    %v3108 = vpop.xlane.xlu0 %3107
    %v3109 = vsub.f32 %v3101, %v3105
    %v3110 = vsub.f32 %v3102, %v3108
    %v3111 = vmul.f32 %v3109, 1.442695
    %v3112 = vpow.pop %v3111
    %v3113 = vmul.f32 %v3110, 1.442695
    %v3114 = vpow.pop %v3113
    %v3115 = vsel %vm1130, %v3112, 0.0
    %3116 = vadd.xlane.f32.xlu0 %v3115
    %v3117 = vpop.xlane.xlu0 %3116
    %v3118 = vsel %vm1130, %v3114, 0.0
    %3119 = vadd.xlane.f32.xlu0 %v3118
    %v3120 = vpop.xlane.xlu0 %3119
    %v3121 = vrcp.pop %v3117
    %v3122 = vmul.f32 %v3117, %v3121
    %v3123 = vsub.f32 1.0, %v3122
    %v3124 = vmul.f32 %v3121, %v3123
    %v3125 = vadd.f32 %v3121, %v3124
    %vm3126 = vweird.f32 %v3117
    %vm3127 = vweird.f32 %v3121
    %vm3128 = vmor %vm3126, %vm3127
    %v3129 = vsel %vm3128, %v3121, %v3125
    %v3130 = vand.u32 2147483647, %v3117
    %vm3131 = vcmp.eq.f32.partialorder %v3130, 8.507059e+37
    %v3132 = vand.u32 %v3117, 2147483648
    %v3133 = vor.u32 1.1754944e-38, %v3132
    %v3134 = vsel %vm3131, %v3133, %v3129
    %v3135 = vrcp.pop %v3120
    %v3136 = vmul.f32 %v3120, %v3135
    %v3137 = vsub.f32 1.0, %v3136
    %v3138 = vmul.f32 %v3135, %v3137
    %v3139 = vadd.f32 %v3135, %v3138
    %vm3140 = vweird.f32 %v3120
    %vm3141 = vweird.f32 %v3135
    %vm3142 = vmor %vm3140, %vm3141
    %v3143 = vsel %vm3142, %v3135, %v3139
    %v3144 = vand.u32 2147483647, %v3120
    %vm3145 = vcmp.eq.f32.partialorder %v3144, 8.507059e+37
    %v3146 = vand.u32 %v3120, 2147483648
    %v3147 = vor.u32 1.1754944e-38, %v3146
    %v3148 = vsel %vm3145, %v3147, %v3143
    %v3149 = vmul.f32 %v3112, %v3134
    %v3150 = vmul.f32 %v3114, %v3148
    %3151 = vrot.lane.b32.xlu0 %v3019, 96
    %v3152 = vpop.permute.xlu0 %3151
    %3153 = vrot.lane.b32.xlu0 %v3022, 96
    %v3154 = vpop.permute.xlu0 %3153
    %v3158 = vsel %vm1130, %v3149, 0
    %3160 = vmatpush.msra.mxu0 0.0
    %3161 = vmatpush.msra.mxu0 0.0
    %3162 = vmatpush.msra.mxu0 0.0
    %3163 = vmatpush.msra.mxu0 0.0
    %3164 = vmatpush.msra.mxu0 0.0
    %3165 = vmatpush.msra.mxu0 0.0
    %3166 = vmatpush.msra.mxu0 0.0
    %3167 = vmatpush.msra.mxu0 0.0
    %3168 = vmatpush.msra.mxu0 0.0
    %3169 = vmatpush.msra.mxu0 0.0
    %3170 = vmatpush.msra.mxu0 0.0
    %3171 = vmatpush.msra.mxu0 0.0
    %3172 = vmatpush.msra.mxu0 0.0
    %3173 = vmatpush.msra.mxu0 0.0
    %3174 = vmatpush.msra.mxu0 %v3154
    %3175 = vmatpush.msra.mxu0 %v3152
    %3176 = vmatmul.f32.gmra.mxu0 %v3158
    %v3177 = vpop.f32.mrf.mxu0
    %v3178 = vadd.f32 0.0, %v3177
    %3179 = vdwg.mxu0
    %3180 = vrot.lane.b32.xlu0 %v3025, 96
    %v3181 = vpop.permute.xlu0 %3180
    %3182 = vrot.lane.b32.xlu0 %v3028, 96
    %v3183 = vpop.permute.xlu0 %3182
    %v3187 = vsel %vm1130, %v3150, 0
    %3189 = vmatpush.msra.mxu0 0.0
    %3190 = vmatpush.msra.mxu0 0.0
    %3191 = vmatpush.msra.mxu0 0.0
    %3192 = vmatpush.msra.mxu0 0.0
    %3193 = vmatpush.msra.mxu0 0.0
    %3194 = vmatpush.msra.mxu0 0.0
    %3195 = vmatpush.msra.mxu0 0.0
    %3196 = vmatpush.msra.mxu0 0.0
    %3197 = vmatpush.msra.mxu0 0.0
    %3198 = vmatpush.msra.mxu0 0.0
    %3199 = vmatpush.msra.mxu0 0.0
    %3200 = vmatpush.msra.mxu0 0.0
    %3201 = vmatpush.msra.mxu0 0.0
    %3202 = vmatpush.msra.mxu0 0.0
    %3203 = vmatpush.msra.mxu0 %v3183
    %3204 = vmatpush.msra.mxu0 %v3181
    %3205 = vmatmul.f32.gmra.mxu0 %v3187
    %v3206 = vpop.f32.mrf.mxu0
    %v3207 = vadd.f32 0.0, %v3206
    %3208 = vdwg.mxu0
    %v3210 = vsel %vm138, %v3178, 0
    %v3213 = vsel %vm138, %v3207, 0
    %3215 = vmatpush.msra.mxu0 0.0
    %3216 = vmatpush.msra.mxu0 0.0
    %3217 = vmatpush.msra.mxu0 0.0
    %3218 = vmatpush.msra.mxu0 0.0
    %3219 = vmatpush.msra.mxu0 0.0
    %3220 = vmatpush.msra.mxu0 0.0
    %3221 = vmatpush.msra.mxu0 0.0
    %3222 = vmatpush.msra.mxu0 0.0
    %3223 = vmatpush.msra.mxu0 0.0
    %3224 = vmatpush.msra.mxu0 0.0
    %3225 = vmatpush.msra.mxu0 0.0
    %3226 = vmatpush.msra.mxu0 0.0
    %3227 = vmatpush.msra.mxu0 0.0
    %3228 = vmatpush.msra.mxu0 0.0
    %3229 = vmatpush.msra.mxu0 0.0
    %3230 = vmatpush.msra.mxu0 %v3031
    %3231 = vmatmul.f32.gmra.mxu0 %v3210
    %v3232 = vpop.f32.mrf.mxu0
    %v3233 = vadd.f32 0.0, %v3232
    %3234 = vmatmul.f32.gmra.mxu0 %v3213
    %v3235 = vpop.f32.mrf.mxu0
    %v3236 = vadd.f32 0.0, %v3235
    %3237 = vdwg.mxu0
    %v3238 = vadd.f32 %v3040, %v3233
    %v3239 = vadd.f32 %v3040, %v3236
    %3240 = vrot.lane.b32.xlu0 %v2986, 120
    %v3241 = vpop.permute.xlu0 %3240
    %3242 = vrot.lane.b32.xlu0 %v3019, 120
    %v3243 = vpop.permute.xlu0 %3242
    %3244 = vrot.lane.b32.xlu0 %v3022, 120
    %v3245 = vpop.permute.xlu0 %3244
    %v3246 = vsel %vm138, %v3241, 0
    %v3248 = vsel %vm138, %v3243, 0
    %v3250 = vsel %vm138, %v3245, 0
    %3252 = vmatpush.xpose.msra.mxu0 0.0
    %3253 = vmatpush.xpose.msra.mxu0 0.0
    %3254 = vmatpush.xpose.msra.mxu0 0.0
    %3255 = vmatpush.xpose.msra.mxu0 0.0
    %3256 = vmatpush.xpose.msra.mxu0 0.0
    %3257 = vmatpush.xpose.msra.mxu0 0.0
    %3258 = vmatpush.xpose.msra.mxu0 0.0
    %3259 = vmatpush.xpose.msra.mxu0 0.0
    %3260 = vmatpush.xpose.msra.mxu0 0.0
    %3261 = vmatpush.xpose.msra.mxu0 0.0
    %3262 = vmatpush.xpose.msra.mxu0 0.0
    %3263 = vmatpush.xpose.msra.mxu0 0.0
    %3264 = vmatpush.xpose.msra.mxu0 0.0
    %3265 = vmatpush.xpose.msra.mxu0 0.0
    %3266 = vmatpush.xpose.msra.mxu0 %v3250
    %3267 = vmatpush.xpose.msra.mxu0 %v3248
    %3268 = vmatmul.f32.gmra.mxu0 %v3246
    %v3269 = vpop.f32.mrf.mxu0
    %v3270 = vadd.f32 0.0, %v3269
    %3271 = vdwg.mxu0
    %3272 = vrot.lane.b32.xlu0 %v2989, 120
    %v3273 = vpop.permute.xlu0 %3272
    %3274 = vrot.lane.b32.xlu0 %v3025, 120
    %v3275 = vpop.permute.xlu0 %3274
    %3276 = vrot.lane.b32.xlu0 %v3028, 120
    %v3277 = vpop.permute.xlu0 %3276
    %v3278 = vsel %vm138, %v3273, 0
    %v3280 = vsel %vm138, %v3275, 0
    %v3282 = vsel %vm138, %v3277, 0
    %3284 = vmatpush.xpose.msra.mxu0 0.0
    %3285 = vmatpush.xpose.msra.mxu0 0.0
    %3286 = vmatpush.xpose.msra.mxu0 0.0
    %3287 = vmatpush.xpose.msra.mxu0 0.0
    %3288 = vmatpush.xpose.msra.mxu0 0.0
    %3289 = vmatpush.xpose.msra.mxu0 0.0
    %3290 = vmatpush.xpose.msra.mxu0 0.0
    %3291 = vmatpush.xpose.msra.mxu0 0.0
    %3292 = vmatpush.xpose.msra.mxu0 0.0
    %3293 = vmatpush.xpose.msra.mxu0 0.0
    %3294 = vmatpush.xpose.msra.mxu0 0.0
    %3295 = vmatpush.xpose.msra.mxu0 0.0
    %3296 = vmatpush.xpose.msra.mxu0 0.0
    %3297 = vmatpush.xpose.msra.mxu0 0.0
    %3298 = vmatpush.xpose.msra.mxu0 %v3282
    %3299 = vmatpush.xpose.msra.mxu0 %v3280
    %3300 = vmatmul.f32.gmra.mxu0 %v3278
    %v3301 = vpop.f32.mrf.mxu0
    %v3302 = vadd.f32 0.0, %v3301
    %3303 = vdwg.mxu0
    %v3304 = vmul.f32 %v3270, 0.35355338
    %v3305 = vmul.f32 %v3302, 0.35355338
    %v3306 = vadd.f32 %v3304, %v1124
    %v3307 = vadd.f32 %v3305, %v1125
    %v3308 = vsel %vm1130, %v3306, -inf
    %3309 = vmax.xlane.f32.xlu0 %v3308
    %v3310 = vpop.xlane.xlu0 %3309
    %v3311 = vsel %vm1130, %v3307, -inf
    %3312 = vmax.xlane.f32.xlu0 %v3311
    %v3313 = vpop.xlane.xlu0 %3312
    %v3314 = vsub.f32 %v3306, %v3310
    %v3315 = vsub.f32 %v3307, %v3313
    %v3316 = vmul.f32 %v3314, 1.442695
    %v3317 = vpow.pop %v3316
    %v3318 = vmul.f32 %v3315, 1.442695
    %v3319 = vpow.pop %v3318
    %v3320 = vsel %vm1130, %v3317, 0.0
    %3321 = vadd.xlane.f32.xlu0 %v3320
    %v3322 = vpop.xlane.xlu0 %3321
    %v3323 = vsel %vm1130, %v3319, 0.0
    %3324 = vadd.xlane.f32.xlu0 %v3323
    %v3325 = vpop.xlane.xlu0 %3324
    %v3326 = vrcp.pop %v3322
    %v3327 = vmul.f32 %v3322, %v3326
    %v3328 = vsub.f32 1.0, %v3327
    %v3329 = vmul.f32 %v3326, %v3328
    %v3330 = vadd.f32 %v3326, %v3329
    %vm3331 = vweird.f32 %v3322
    %vm3332 = vweird.f32 %v3326
    %vm3333 = vmor %vm3331, %vm3332
    %v3334 = vsel %vm3333, %v3326, %v3330
    %v3335 = vand.u32 2147483647, %v3322
    %vm3336 = vcmp.eq.f32.partialorder %v3335, 8.507059e+37
    %v3337 = vand.u32 %v3322, 2147483648
    %v3338 = vor.u32 1.1754944e-38, %v3337
    %v3339 = vsel %vm3336, %v3338, %v3334
    %v3340 = vrcp.pop %v3325
    %v3341 = vmul.f32 %v3325, %v3340
    %v3342 = vsub.f32 1.0, %v3341
    %v3343 = vmul.f32 %v3340, %v3342
    %v3344 = vadd.f32 %v3340, %v3343
    %vm3345 = vweird.f32 %v3325
    %vm3346 = vweird.f32 %v3340
    %vm3347 = vmor %vm3345, %vm3346
    %v3348 = vsel %vm3347, %v3340, %v3344
    %v3349 = vand.u32 2147483647, %v3325
    %vm3350 = vcmp.eq.f32.partialorder %v3349, 8.507059e+37
    %v3351 = vand.u32 %v3325, 2147483648
    %v3352 = vor.u32 1.1754944e-38, %v3351
    %v3353 = vsel %vm3350, %v3352, %v3348
    %v3354 = vmul.f32 %v3317, %v3339
    %v3355 = vmul.f32 %v3319, %v3353
    %3356 = vrot.lane.b32.xlu0 %v3019, 88
    %v3357 = vpop.permute.xlu0 %3356
    %3358 = vrot.lane.b32.xlu0 %v3022, 88
    %v3359 = vpop.permute.xlu0 %3358
    %v3363 = vsel %vm1130, %v3354, 0
    %3365 = vmatpush.msra.mxu0 0.0
    %3366 = vmatpush.msra.mxu0 0.0
    %3367 = vmatpush.msra.mxu0 0.0
    %3368 = vmatpush.msra.mxu0 0.0
    %3369 = vmatpush.msra.mxu0 0.0
    %3370 = vmatpush.msra.mxu0 0.0
    %3371 = vmatpush.msra.mxu0 0.0
    %3372 = vmatpush.msra.mxu0 0.0
    %3373 = vmatpush.msra.mxu0 0.0
    %3374 = vmatpush.msra.mxu0 0.0
    %3375 = vmatpush.msra.mxu0 0.0
    %3376 = vmatpush.msra.mxu0 0.0
    %3377 = vmatpush.msra.mxu0 0.0
    %3378 = vmatpush.msra.mxu0 0.0
    %3379 = vmatpush.msra.mxu0 %v3359
    %3380 = vmatpush.msra.mxu0 %v3357
    %3381 = vmatmul.f32.gmra.mxu0 %v3363
    %v3382 = vpop.f32.mrf.mxu0
    %v3383 = vadd.f32 0.0, %v3382
    %3384 = vdwg.mxu0
    %3385 = vrot.lane.b32.xlu0 %v3025, 88
    %v3386 = vpop.permute.xlu0 %3385
    %3387 = vrot.lane.b32.xlu0 %v3028, 88
    %v3388 = vpop.permute.xlu0 %3387
    %v3392 = vsel %vm1130, %v3355, 0
    %3394 = vmatpush.msra.mxu0 0.0
    %3395 = vmatpush.msra.mxu0 0.0
    %3396 = vmatpush.msra.mxu0 0.0
    %3397 = vmatpush.msra.mxu0 0.0
    %3398 = vmatpush.msra.mxu0 0.0
    %3399 = vmatpush.msra.mxu0 0.0
    %3400 = vmatpush.msra.mxu0 0.0
    %3401 = vmatpush.msra.mxu0 0.0
    %3402 = vmatpush.msra.mxu0 0.0
    %3403 = vmatpush.msra.mxu0 0.0
    %3404 = vmatpush.msra.mxu0 0.0
    %3405 = vmatpush.msra.mxu0 0.0
    %3406 = vmatpush.msra.mxu0 0.0
    %3407 = vmatpush.msra.mxu0 0.0
    %3408 = vmatpush.msra.mxu0 %v3388
    %3409 = vmatpush.msra.mxu0 %v3386
    %3410 = vmatmul.f32.gmra.mxu0 %v3392
    %v3411 = vpop.f32.mrf.mxu0
    %v3412 = vadd.f32 0.0, %v3411
    %3413 = vdwg.mxu0
    %v3415 = vsel %vm138, %v3383, 0
    %v3418 = vsel %vm138, %v3412, 0
    %3420 = vmatpush.msra.mxu0 0.0
    %3421 = vmatpush.msra.mxu0 0.0
    %3422 = vmatpush.msra.mxu0 0.0
    %3423 = vmatpush.msra.mxu0 0.0
    %3424 = vmatpush.msra.mxu0 0.0
    %3425 = vmatpush.msra.mxu0 0.0
    %3426 = vmatpush.msra.mxu0 0.0
    %3427 = vmatpush.msra.mxu0 0.0
    %3428 = vmatpush.msra.mxu0 0.0
    %3429 = vmatpush.msra.mxu0 0.0
    %3430 = vmatpush.msra.mxu0 0.0
    %3431 = vmatpush.msra.mxu0 0.0
    %3432 = vmatpush.msra.mxu0 0.0
    %3433 = vmatpush.msra.mxu0 0.0
    %3434 = vmatpush.msra.mxu0 0.0
    %3435 = vmatpush.msra.mxu0 %v3032
    %3436 = vmatmul.f32.gmra.mxu0 %v3415
    %v3437 = vpop.f32.mrf.mxu0
    %v3438 = vadd.f32 0.0, %v3437
    %3439 = vmatmul.f32.gmra.mxu0 %v3418
    %v3440 = vpop.f32.mrf.mxu0
    %v3441 = vadd.f32 0.0, %v3440
    %3442 = vdwg.mxu0
    %v3443 = vadd.f32 %v3238, %v3438
    %v3444 = vadd.f32 %v3239, %v3441
    %3445 = vrot.lane.b32.xlu0 %v2986, 112
    %v3446 = vpop.permute.xlu0 %3445
    %3447 = vrot.lane.b32.xlu0 %v3019, 112
    %v3448 = vpop.permute.xlu0 %3447
    %3449 = vrot.lane.b32.xlu0 %v3022, 112
    %v3450 = vpop.permute.xlu0 %3449
    %v3451 = vsel %vm138, %v3446, 0
    %v3453 = vsel %vm138, %v3448, 0
    %v3455 = vsel %vm138, %v3450, 0
    %3457 = vmatpush.xpose.msra.mxu0 0.0
    %3458 = vmatpush.xpose.msra.mxu0 0.0
    %3459 = vmatpush.xpose.msra.mxu0 0.0
    %3460 = vmatpush.xpose.msra.mxu0 0.0
    %3461 = vmatpush.xpose.msra.mxu0 0.0
    %3462 = vmatpush.xpose.msra.mxu0 0.0
    %3463 = vmatpush.xpose.msra.mxu0 0.0
    %3464 = vmatpush.xpose.msra.mxu0 0.0
    %3465 = vmatpush.xpose.msra.mxu0 0.0
    %3466 = vmatpush.xpose.msra.mxu0 0.0
    %3467 = vmatpush.xpose.msra.mxu0 0.0
    %3468 = vmatpush.xpose.msra.mxu0 0.0
    %3469 = vmatpush.xpose.msra.mxu0 0.0
    %3470 = vmatpush.xpose.msra.mxu0 0.0
    %3471 = vmatpush.xpose.msra.mxu0 %v3455
    %3472 = vmatpush.xpose.msra.mxu0 %v3453
    %3473 = vmatmul.f32.gmra.mxu0 %v3451
    %v3474 = vpop.f32.mrf.mxu0
    %v3475 = vadd.f32 0.0, %v3474
    %3476 = vdwg.mxu0
    %3477 = vrot.lane.b32.xlu0 %v2989, 112
    %v3478 = vpop.permute.xlu0 %3477
    %3479 = vrot.lane.b32.xlu0 %v3025, 112
    %v3480 = vpop.permute.xlu0 %3479
    %3481 = vrot.lane.b32.xlu0 %v3028, 112
    %v3482 = vpop.permute.xlu0 %3481
    %v3483 = vsel %vm138, %v3478, 0
    %v3485 = vsel %vm138, %v3480, 0
    %v3487 = vsel %vm138, %v3482, 0
    %3489 = vmatpush.xpose.msra.mxu0 0.0
    %3490 = vmatpush.xpose.msra.mxu0 0.0
    %3491 = vmatpush.xpose.msra.mxu0 0.0
    %3492 = vmatpush.xpose.msra.mxu0 0.0
    %3493 = vmatpush.xpose.msra.mxu0 0.0
    %3494 = vmatpush.xpose.msra.mxu0 0.0
    %3495 = vmatpush.xpose.msra.mxu0 0.0
    %3496 = vmatpush.xpose.msra.mxu0 0.0
    %3497 = vmatpush.xpose.msra.mxu0 0.0
    %3498 = vmatpush.xpose.msra.mxu0 0.0
    %3499 = vmatpush.xpose.msra.mxu0 0.0
    %3500 = vmatpush.xpose.msra.mxu0 0.0
    %3501 = vmatpush.xpose.msra.mxu0 0.0
    %3502 = vmatpush.xpose.msra.mxu0 0.0
    %3503 = vmatpush.xpose.msra.mxu0 %v3487
    %3504 = vmatpush.xpose.msra.mxu0 %v3485
    %3505 = vmatmul.f32.gmra.mxu0 %v3483
    %v3506 = vpop.f32.mrf.mxu0
    %v3507 = vadd.f32 0.0, %v3506
    %3508 = vdwg.mxu0
    %v3509 = vmul.f32 %v3475, 0.35355338
    %v3510 = vmul.f32 %v3507, 0.35355338
    %v3511 = vadd.f32 %v3509, %v1124
    %v3512 = vadd.f32 %v3510, %v1125
    %v3513 = vsel %vm1130, %v3511, -inf
    %3514 = vmax.xlane.f32.xlu0 %v3513
    %v3515 = vpop.xlane.xlu0 %3514
    %v3516 = vsel %vm1130, %v3512, -inf
    %3517 = vmax.xlane.f32.xlu0 %v3516
    %v3518 = vpop.xlane.xlu0 %3517
    %v3519 = vsub.f32 %v3511, %v3515
    %v3520 = vsub.f32 %v3512, %v3518
    %v3521 = vmul.f32 %v3519, 1.442695
    %v3522 = vpow.pop %v3521
    %v3523 = vmul.f32 %v3520, 1.442695
    %v3524 = vpow.pop %v3523
    %v3525 = vsel %vm1130, %v3522, 0.0
    %3526 = vadd.xlane.f32.xlu0 %v3525
    %v3527 = vpop.xlane.xlu0 %3526
    %v3528 = vsel %vm1130, %v3524, 0.0
    %3529 = vadd.xlane.f32.xlu0 %v3528
    %v3530 = vpop.xlane.xlu0 %3529
    %v3531 = vrcp.pop %v3527
    %v3532 = vmul.f32 %v3527, %v3531
    %v3533 = vsub.f32 1.0, %v3532
    %v3534 = vmul.f32 %v3531, %v3533
    %v3535 = vadd.f32 %v3531, %v3534
    %vm3536 = vweird.f32 %v3527
    %vm3537 = vweird.f32 %v3531
    %vm3538 = vmor %vm3536, %vm3537
    %v3539 = vsel %vm3538, %v3531, %v3535
    %v3540 = vand.u32 2147483647, %v3527
    %vm3541 = vcmp.eq.f32.partialorder %v3540, 8.507059e+37
    %v3542 = vand.u32 %v3527, 2147483648
    %v3543 = vor.u32 1.1754944e-38, %v3542
    %v3544 = vsel %vm3541, %v3543, %v3539
    %v3545 = vrcp.pop %v3530
    %v3546 = vmul.f32 %v3530, %v3545
    %v3547 = vsub.f32 1.0, %v3546
    %v3548 = vmul.f32 %v3545, %v3547
    %v3549 = vadd.f32 %v3545, %v3548
    %vm3550 = vweird.f32 %v3530
    %vm3551 = vweird.f32 %v3545
    %vm3552 = vmor %vm3550, %vm3551
    %v3553 = vsel %vm3552, %v3545, %v3549
    %v3554 = vand.u32 2147483647, %v3530
    %vm3555 = vcmp.eq.f32.partialorder %v3554, 8.507059e+37
    %v3556 = vand.u32 %v3530, 2147483648
    %v3557 = vor.u32 1.1754944e-38, %v3556
    %v3558 = vsel %vm3555, %v3557, %v3553
    %v3559 = vmul.f32 %v3522, %v3544
    %v3560 = vmul.f32 %v3524, %v3558
    %3561 = vrot.lane.b32.xlu0 %v3019, 80
    %v3562 = vpop.permute.xlu0 %3561
    %3563 = vrot.lane.b32.xlu0 %v3022, 80
    %v3564 = vpop.permute.xlu0 %3563
    %v3568 = vsel %vm1130, %v3559, 0
    %3570 = vmatpush.msra.mxu0 0.0
    %3571 = vmatpush.msra.mxu0 0.0
    %3572 = vmatpush.msra.mxu0 0.0
    %3573 = vmatpush.msra.mxu0 0.0
    %3574 = vmatpush.msra.mxu0 0.0
    %3575 = vmatpush.msra.mxu0 0.0
    %3576 = vmatpush.msra.mxu0 0.0
    %3577 = vmatpush.msra.mxu0 0.0
    %3578 = vmatpush.msra.mxu0 0.0
    %3579 = vmatpush.msra.mxu0 0.0
    %3580 = vmatpush.msra.mxu0 0.0
    %3581 = vmatpush.msra.mxu0 0.0
    %3582 = vmatpush.msra.mxu0 0.0
    %3583 = vmatpush.msra.mxu0 0.0
    %3584 = vmatpush.msra.mxu0 %v3564
    %3585 = vmatpush.msra.mxu0 %v3562
    %3586 = vmatmul.f32.gmra.mxu0 %v3568
    %v3587 = vpop.f32.mrf.mxu0
    %v3588 = vadd.f32 0.0, %v3587
    %3589 = vdwg.mxu0
    %3590 = vrot.lane.b32.xlu0 %v3025, 80
    %v3591 = vpop.permute.xlu0 %3590
    %3592 = vrot.lane.b32.xlu0 %v3028, 80
    %v3593 = vpop.permute.xlu0 %3592
    %v3597 = vsel %vm1130, %v3560, 0
    %3599 = vmatpush.msra.mxu0 0.0
    %3600 = vmatpush.msra.mxu0 0.0
    %3601 = vmatpush.msra.mxu0 0.0
    %3602 = vmatpush.msra.mxu0 0.0
    %3603 = vmatpush.msra.mxu0 0.0
    %3604 = vmatpush.msra.mxu0 0.0
    %3605 = vmatpush.msra.mxu0 0.0
    %3606 = vmatpush.msra.mxu0 0.0
    %3607 = vmatpush.msra.mxu0 0.0
    %3608 = vmatpush.msra.mxu0 0.0
    %3609 = vmatpush.msra.mxu0 0.0
    %3610 = vmatpush.msra.mxu0 0.0
    %3611 = vmatpush.msra.mxu0 0.0
    %3612 = vmatpush.msra.mxu0 0.0
    %3613 = vmatpush.msra.mxu0 %v3593
    %3614 = vmatpush.msra.mxu0 %v3591
    %3615 = vmatmul.f32.gmra.mxu0 %v3597
    %v3616 = vpop.f32.mrf.mxu0
    %v3617 = vadd.f32 0.0, %v3616
    %3618 = vdwg.mxu0
    %v3620 = vsel %vm138, %v3588, 0
    %v3623 = vsel %vm138, %v3617, 0
    %3625 = vmatpush.msra.mxu0 0.0
    %3626 = vmatpush.msra.mxu0 0.0
    %3627 = vmatpush.msra.mxu0 0.0
    %3628 = vmatpush.msra.mxu0 0.0
    %3629 = vmatpush.msra.mxu0 0.0
    %3630 = vmatpush.msra.mxu0 0.0
    %3631 = vmatpush.msra.mxu0 0.0
    %3632 = vmatpush.msra.mxu0 0.0
    %3633 = vmatpush.msra.mxu0 0.0
    %3634 = vmatpush.msra.mxu0 0.0
    %3635 = vmatpush.msra.mxu0 0.0
    %3636 = vmatpush.msra.mxu0 0.0
    %3637 = vmatpush.msra.mxu0 0.0
    %3638 = vmatpush.msra.mxu0 0.0
    %3639 = vmatpush.msra.mxu0 0.0
    %3640 = vmatpush.msra.mxu0 %v3033
    %3641 = vmatmul.f32.gmra.mxu0 %v3620
    %v3642 = vpop.f32.mrf.mxu0
    %v3643 = vadd.f32 0.0, %v3642
    %3644 = vmatmul.f32.gmra.mxu0 %v3623
    %v3645 = vpop.f32.mrf.mxu0
    %v3646 = vadd.f32 0.0, %v3645
    %3647 = vdwg.mxu0
    %v3648 = vadd.f32 %v3443, %v3643
    %v3649 = vadd.f32 %v3444, %v3646
    %3650 = vrot.lane.b32.xlu0 %v2986, 104
    %v3651 = vpop.permute.xlu0 %3650
    %3652 = vrot.lane.b32.xlu0 %v3019, 104
    %v3653 = vpop.permute.xlu0 %3652
    %3654 = vrot.lane.b32.xlu0 %v3022, 104
    %v3655 = vpop.permute.xlu0 %3654
    %v3656 = vsel %vm138, %v3651, 0
    %v3658 = vsel %vm138, %v3653, 0
    %v3660 = vsel %vm138, %v3655, 0
    %3662 = vmatpush.xpose.msra.mxu0 0.0
    %3663 = vmatpush.xpose.msra.mxu0 0.0
    %3664 = vmatpush.xpose.msra.mxu0 0.0
    %3665 = vmatpush.xpose.msra.mxu0 0.0
    %3666 = vmatpush.xpose.msra.mxu0 0.0
    %3667 = vmatpush.xpose.msra.mxu0 0.0
    %3668 = vmatpush.xpose.msra.mxu0 0.0
    %3669 = vmatpush.xpose.msra.mxu0 0.0
    %3670 = vmatpush.xpose.msra.mxu0 0.0
    %3671 = vmatpush.xpose.msra.mxu0 0.0
    %3672 = vmatpush.xpose.msra.mxu0 0.0
    %3673 = vmatpush.xpose.msra.mxu0 0.0
    %3674 = vmatpush.xpose.msra.mxu0 0.0
    %3675 = vmatpush.xpose.msra.mxu0 0.0
    %3676 = vmatpush.xpose.msra.mxu0 %v3660
    %3677 = vmatpush.xpose.msra.mxu0 %v3658
    %3678 = vmatmul.f32.gmra.mxu0 %v3656
    %v3679 = vpop.f32.mrf.mxu0
    %v3680 = vadd.f32 0.0, %v3679
    %3681 = vdwg.mxu0
    %3682 = vrot.lane.b32.xlu0 %v2989, 104
    %v3683 = vpop.permute.xlu0 %3682
    %3684 = vrot.lane.b32.xlu0 %v3025, 104
    %v3685 = vpop.permute.xlu0 %3684
    %3686 = vrot.lane.b32.xlu0 %v3028, 104
    %v3687 = vpop.permute.xlu0 %3686
    %v3688 = vsel %vm138, %v3683, 0
    %v3690 = vsel %vm138, %v3685, 0
    %v3692 = vsel %vm138, %v3687, 0
    %3694 = vmatpush.xpose.msra.mxu0 0.0
    %3695 = vmatpush.xpose.msra.mxu0 0.0
    %3696 = vmatpush.xpose.msra.mxu0 0.0
    %3697 = vmatpush.xpose.msra.mxu0 0.0
    %3698 = vmatpush.xpose.msra.mxu0 0.0
    %3699 = vmatpush.xpose.msra.mxu0 0.0
    %3700 = vmatpush.xpose.msra.mxu0 0.0
    %3701 = vmatpush.xpose.msra.mxu0 0.0
    %3702 = vmatpush.xpose.msra.mxu0 0.0
    %3703 = vmatpush.xpose.msra.mxu0 0.0
    %3704 = vmatpush.xpose.msra.mxu0 0.0
    %3705 = vmatpush.xpose.msra.mxu0 0.0
    %3706 = vmatpush.xpose.msra.mxu0 0.0
    %3707 = vmatpush.xpose.msra.mxu0 0.0
    %3708 = vmatpush.xpose.msra.mxu0 %v3692
    %3709 = vmatpush.xpose.msra.mxu0 %v3690
    %3710 = vmatmul.f32.gmra.mxu0 %v3688
    %v3711 = vpop.f32.mrf.mxu0
    %v3712 = vadd.f32 0.0, %v3711
    %3713 = vdwg.mxu0
    %v3714 = vmul.f32 %v3680, 0.35355338
    %v3715 = vmul.f32 %v3712, 0.35355338
    %v3716 = vadd.f32 %v3714, %v1124
    %v3717 = vadd.f32 %v3715, %v1125
    %v3718 = vsel %vm1130, %v3716, -inf
    %3719 = vmax.xlane.f32.xlu0 %v3718
    %v3720 = vpop.xlane.xlu0 %3719
    %v3721 = vsel %vm1130, %v3717, -inf
    %3722 = vmax.xlane.f32.xlu0 %v3721
    %v3723 = vpop.xlane.xlu0 %3722
    %v3724 = vsub.f32 %v3716, %v3720
    %v3725 = vsub.f32 %v3717, %v3723
    %v3726 = vmul.f32 %v3724, 1.442695
    %v3727 = vpow.pop %v3726
    %v3728 = vmul.f32 %v3725, 1.442695
    %v3729 = vpow.pop %v3728
    %v3730 = vsel %vm1130, %v3727, 0.0
    %3731 = vadd.xlane.f32.xlu0 %v3730
    %v3732 = vpop.xlane.xlu0 %3731
    %v3733 = vsel %vm1130, %v3729, 0.0
    %3734 = vadd.xlane.f32.xlu0 %v3733
    %v3735 = vpop.xlane.xlu0 %3734
    %v3736 = vrcp.pop %v3732
    %v3737 = vmul.f32 %v3732, %v3736
    %v3738 = vsub.f32 1.0, %v3737
    %v3739 = vmul.f32 %v3736, %v3738
    %v3740 = vadd.f32 %v3736, %v3739
    %vm3741 = vweird.f32 %v3732
    %vm3742 = vweird.f32 %v3736
    %vm3743 = vmor %vm3741, %vm3742
    %v3744 = vsel %vm3743, %v3736, %v3740
    %v3745 = vand.u32 2147483647, %v3732
    %vm3746 = vcmp.eq.f32.partialorder %v3745, 8.507059e+37
    %v3747 = vand.u32 %v3732, 2147483648
    %v3748 = vor.u32 1.1754944e-38, %v3747
    %v3749 = vsel %vm3746, %v3748, %v3744
    %v3750 = vrcp.pop %v3735
    %v3751 = vmul.f32 %v3735, %v3750
    %v3752 = vsub.f32 1.0, %v3751
    %v3753 = vmul.f32 %v3750, %v3752
    %v3754 = vadd.f32 %v3750, %v3753
    %vm3755 = vweird.f32 %v3735
    %vm3756 = vweird.f32 %v3750
    %vm3757 = vmor %vm3755, %vm3756
    %v3758 = vsel %vm3757, %v3750, %v3754
    %v3759 = vand.u32 2147483647, %v3735
    %vm3760 = vcmp.eq.f32.partialorder %v3759, 8.507059e+37
    %v3761 = vand.u32 %v3735, 2147483648
    %v3762 = vor.u32 1.1754944e-38, %v3761
    %v3763 = vsel %vm3760, %v3762, %v3758
    %v3764 = vmul.f32 %v3727, %v3749
    %v3765 = vmul.f32 %v3729, %v3763
    %3766 = vrot.lane.b32.xlu0 %v3019, 72
    %v3767 = vpop.permute.xlu0 %3766
    %3768 = vrot.lane.b32.xlu0 %v3022, 72
    %v3769 = vpop.permute.xlu0 %3768
    %v3773 = vsel %vm1130, %v3764, 0
    %3775 = vmatpush.msra.mxu0 0.0
    %3776 = vmatpush.msra.mxu0 0.0
    %3777 = vmatpush.msra.mxu0 0.0
    %3778 = vmatpush.msra.mxu0 0.0
    %3779 = vmatpush.msra.mxu0 0.0
    %3780 = vmatpush.msra.mxu0 0.0
    %3781 = vmatpush.msra.mxu0 0.0
    %3782 = vmatpush.msra.mxu0 0.0
    %3783 = vmatpush.msra.mxu0 0.0
    %3784 = vmatpush.msra.mxu0 0.0
    %3785 = vmatpush.msra.mxu0 0.0
    %3786 = vmatpush.msra.mxu0 0.0
    %3787 = vmatpush.msra.mxu0 0.0
    %3788 = vmatpush.msra.mxu0 0.0
    %3789 = vmatpush.msra.mxu0 %v3769
    %3790 = vmatpush.msra.mxu0 %v3767
    %3791 = vmatmul.f32.gmra.mxu0 %v3773
    %v3792 = vpop.f32.mrf.mxu0
    %v3793 = vadd.f32 0.0, %v3792
    %3794 = vdwg.mxu0
    %3795 = vrot.lane.b32.xlu0 %v3025, 72
    %v3796 = vpop.permute.xlu0 %3795
    %3797 = vrot.lane.b32.xlu0 %v3028, 72
    %v3798 = vpop.permute.xlu0 %3797
    %v3802 = vsel %vm1130, %v3765, 0
    %3804 = vmatpush.msra.mxu0 0.0
    %3805 = vmatpush.msra.mxu0 0.0
    %3806 = vmatpush.msra.mxu0 0.0
    %3807 = vmatpush.msra.mxu0 0.0
    %3808 = vmatpush.msra.mxu0 0.0
    %3809 = vmatpush.msra.mxu0 0.0
    %3810 = vmatpush.msra.mxu0 0.0
    %3811 = vmatpush.msra.mxu0 0.0
    %3812 = vmatpush.msra.mxu0 0.0
    %3813 = vmatpush.msra.mxu0 0.0
    %3814 = vmatpush.msra.mxu0 0.0
    %3815 = vmatpush.msra.mxu0 0.0
    %3816 = vmatpush.msra.mxu0 0.0
    %3817 = vmatpush.msra.mxu0 0.0
    %3818 = vmatpush.msra.mxu0 %v3798
    %3819 = vmatpush.msra.mxu0 %v3796
    %3820 = vmatmul.f32.gmra.mxu0 %v3802
    %v3821 = vpop.f32.mrf.mxu0
    %v3822 = vadd.f32 0.0, %v3821
    %3823 = vdwg.mxu0
    %v3825 = vsel %vm138, %v3793, 0
    %v3828 = vsel %vm138, %v3822, 0
    %3830 = vmatpush.msra.mxu0 0.0
    %3831 = vmatpush.msra.mxu0 0.0
    %3832 = vmatpush.msra.mxu0 0.0
    %3833 = vmatpush.msra.mxu0 0.0
    %3834 = vmatpush.msra.mxu0 0.0
    %3835 = vmatpush.msra.mxu0 0.0
    %3836 = vmatpush.msra.mxu0 0.0
    %3837 = vmatpush.msra.mxu0 0.0
    %3838 = vmatpush.msra.mxu0 0.0
    %3839 = vmatpush.msra.mxu0 0.0
    %3840 = vmatpush.msra.mxu0 0.0
    %3841 = vmatpush.msra.mxu0 0.0
    %3842 = vmatpush.msra.mxu0 0.0
    %3843 = vmatpush.msra.mxu0 0.0
    %3844 = vmatpush.msra.mxu0 0.0
    %3845 = vmatpush.msra.mxu0 %v3034
    %3846 = vmatmul.f32.gmra.mxu0 %v3825
    %v3847 = vpop.f32.mrf.mxu0
    %v3848 = vadd.f32 0.0, %v3847
    %3849 = vmatmul.f32.gmra.mxu0 %v3828
    %v3850 = vpop.f32.mrf.mxu0
    %v3851 = vadd.f32 0.0, %v3850
    %3852 = vdwg.mxu0
    %v3853 = vadd.f32 %v3648, %v3848
    %v3854 = vadd.f32 %v3649, %v3851
    %v3855 = vadd.f32 %v2950, %v3853
    %v3856 = vadd.f32 %v2951, %v3854
    %s3857 = scalar_lea.vmem %s16, 1
    %v3858 = vld [vmem:[%s3857] sm:$0x1]
    %s3859 = scalar_lea.vmem %s17, 1
    %v3860 = vld [vmem:[%s3859] sm:$0x1]
    %v3861 = vsel %vm94, %v3855, 0.0
    %3862 = vadd.xlane.f32.xlu0 %v3861
    %v3863 = vpop.xlane.xlu0 %3862
    %v3864 = vsel %vm94, %v3856, 0.0
    %3865 = vadd.xlane.f32.xlu0 %v3864
    %v3866 = vpop.xlane.xlu0 %3865
    %v3867 = vmul.f32 %v3863, %v918
    %v3868 = vmul.f32 %v3866, %v918
    %v3869 = vsub.f32 %v3855, %v3867
    %v3870 = vsub.f32 %v3856, %v3868
    %v3871 = vmul.f32 %v3869, %v3869
    %v3872 = vmul.f32 %v3870, %v3870
    %v3873 = vsel %vm94, %v3871, 0.0
    %3874 = vadd.xlane.f32.xlu0 %v3873
    %v3875 = vpop.xlane.xlu0 %3874
    %v3876 = vsel %vm94, %v3872, 0.0
    %3877 = vadd.xlane.f32.xlu0 %v3876
    %v3878 = vpop.xlane.xlu0 %3877
    %v3879 = vmul.f32 %v3875, %v918
    %v3880 = vmul.f32 %v3878, %v918
    %v3881 = vadd.f32 %v3879, 1e-05
    %v3882 = vadd.f32 %v3880, 1e-05
    %v3883 = vrsqrt.pop %v3881
    %v3884 = vmul.f32 %v3883, %v3881
    %v3885 = vmul.f32 %v3884, %v3883
    %v3886 = vmul.f32 0.5, %v3885
    %v3887 = vsub.f32 1.5, %v3886
    %v3888 = vmul.f32 %v3883, %v3887
    %vm3889 = vweird.f32 %v3881
    %vm3890 = vweird.f32 %v3883
    %vm3891 = vmor %vm3889, %vm3890
    %v3892 = vsel %vm3891, %v3883, %v3888
    %v3893 = vrsqrt.pop %v3882
    %v3894 = vmul.f32 %v3893, %v3882
    %v3895 = vmul.f32 %v3894, %v3893
    %v3896 = vmul.f32 0.5, %v3895
    %v3897 = vsub.f32 1.5, %v3896
    %v3898 = vmul.f32 %v3893, %v3897
    %vm3899 = vweird.f32 %v3882
    %vm3900 = vweird.f32 %v3893
    %vm3901 = vmor %vm3899, %vm3900
    %v3902 = vsel %vm3901, %v3893, %v3898
    %v3903 = vmul.f32 %v3869, %v3892
    %v3904 = vmul.f32 %v3870, %v3902
    %v3906 = vperm.slane %v3858, 0
    %v3908 = vmul.f32 %v3903, %v3906
    %v3909 = vmul.f32 %v3904, %v3906
    %v3911 = vperm.slane %v3860, 0
    %v3913 = vadd.f32 %v3908, %v3911
    %v3914 = vadd.f32 %v3909, %v3911
    %s3915 = scalar_lea.vmem %s20, 32
    %v3916 = vld [vmem:[%s3915] sm:$0xff]
    %v3917 = vld [vmem:[%s3915 + $0x8] sm:$0xff]
    %v3918 = vld [vmem:[%s3915 + $0x10] sm:$0xff]
    %v3919 = vld [vmem:[%s3915 + $0x18] sm:$0xff]
    %s3920 = scalar_lea.vmem %s21, 1
    %v3921 = vld [vmem:[%s3920] sm:$0x1]
    %v3923 = vperm.slane %v3921, 0
    %v3926 = vsel %vm94, %v3913, 0
    %v3929 = vsel %vm94, %v3914, 0
    %3931 = vmatpush.msra.mxu0 0.0
    %3932 = vmatpush.msra.mxu0 0.0
    %3933 = vmatpush.msra.mxu0 0.0
    %3934 = vmatpush.msra.mxu0 0.0
    %3935 = vmatpush.msra.mxu0 0.0
    %3936 = vmatpush.msra.mxu0 0.0
    %3937 = vmatpush.msra.mxu0 0.0
    %3938 = vmatpush.msra.mxu0 0.0
    %3939 = vmatpush.msra.mxu0 0.0
    %3940 = vmatpush.msra.mxu0 0.0
    %3941 = vmatpush.msra.mxu0 0.0
    %3942 = vmatpush.msra.mxu0 0.0
    %3943 = vmatpush.msra.mxu0 %v3919
    %3944 = vmatpush.msra.mxu0 %v3918
    %3945 = vmatpush.msra.mxu0 %v3917
    %3946 = vmatpush.msra.mxu0 %v3916
    %3947 = vmatmul.f32.gmra.mxu0 %v3926
    %v3948 = vpop.f32.mrf.mxu0
    %v3949 = vadd.f32 %v3923, %v3948
    %3950 = vmatmul.f32.gmra.mxu0 %v3929
    %v3951 = vpop.f32.mrf.mxu0
    %v3952 = vadd.f32 %v3923, %v3951
    %3953 = vdwg.mxu0
    %v3954 = vmax.f32 %v3949, 0.0
    %v3955 = vmax.f32 %v3952, 0.0
    %s3956 = scalar_lea.vmem %s22, 64
    %v3957 = vld [vmem:[%s3956] sm:$0xff]
    %v3958 = vld [vmem:[%s3956 + $0x8] sm:$0xff]
    %v3959 = vld [vmem:[%s3956 + $0x10] sm:$0xff]
    %v3960 = vld [vmem:[%s3956 + $0x18] sm:$0xff]
    %v3961 = vld [vmem:[%s3956 + $0x20] sm:$0xff]
    %v3962 = vld [vmem:[%s3956 + $0x28] sm:$0xff]
    %v3963 = vld [vmem:[%s3956 + $0x30] sm:$0xff]
    %v3964 = vld [vmem:[%s3956 + $0x38] sm:$0xff]
    %s3965 = scalar_lea.vmem %s23, 1
    %v3966 = vld [vmem:[%s3965] sm:$0x1]
    %v3968 = vperm.slane %v3966, 0
    %v3971 = vsel %vm1992, %v3954, 0
    %v3974 = vsel %vm1992, %v3955, 0
    %3976 = vmatpush.msra.mxu0 0.0
    %3977 = vmatpush.msra.mxu0 0.0
    %3978 = vmatpush.msra.mxu0 0.0
    %3979 = vmatpush.msra.mxu0 0.0
    %3980 = vmatpush.msra.mxu0 0.0
    %3981 = vmatpush.msra.mxu0 0.0
    %3982 = vmatpush.msra.mxu0 0.0
    %3983 = vmatpush.msra.mxu0 0.0
    %3984 = vmatpush.msra.mxu0 %v3964
    %3985 = vmatpush.msra.mxu0 %v3963
    %3986 = vmatpush.msra.mxu0 %v3962
    %3987 = vmatpush.msra.mxu0 %v3961
    %3988 = vmatpush.msra.mxu0 %v3960
    %3989 = vmatpush.msra.mxu0 %v3959
    %3990 = vmatpush.msra.mxu0 %v3958
    %3991 = vmatpush.msra.mxu0 %v3957
    %3992 = vmatmul.f32.gmra.mxu0 %v3971
    %v3993 = vpop.f32.mrf.mxu0
    %v3994 = vadd.f32 %v3968, %v3993
    %3995 = vmatmul.f32.gmra.mxu0 %v3974
    %v3996 = vpop.f32.mrf.mxu0
    %v3997 = vadd.f32 %v3968, %v3996
    %3998 = vdwg.mxu0
    %v3999 = vadd.f32 %v3913, %v3994
    %v4000 = vadd.f32 %v3914, %v3997
    %s4001 = scalar_lea.vmem %s18, 1
    %v4002 = vld [vmem:[%s4001] sm:$0x1]
    %s4003 = scalar_lea.vmem %s19, 1
    %v4004 = vld [vmem:[%s4003] sm:$0x1]
    %v4005 = vsel %vm94, %v3999, 0.0
    %4006 = vadd.xlane.f32.xlu0 %v4005
    %v4007 = vpop.xlane.xlu0 %4006
    %v4008 = vsel %vm94, %v4000, 0.0
    %4009 = vadd.xlane.f32.xlu0 %v4008
    %v4010 = vpop.xlane.xlu0 %4009
    %v4011 = vmul.f32 %v4007, %v918
    %v4012 = vmul.f32 %v4010, %v918
    %v4013 = vsub.f32 %v3999, %v4011
    %v4014 = vsub.f32 %v4000, %v4012
    %v4015 = vmul.f32 %v4013, %v4013
    %v4016 = vmul.f32 %v4014, %v4014
    %v4017 = vsel %vm94, %v4015, 0.0
    %4018 = vadd.xlane.f32.xlu0 %v4017
    %v4019 = vpop.xlane.xlu0 %4018
    %v4020 = vsel %vm94, %v4016, 0.0
    %4021 = vadd.xlane.f32.xlu0 %v4020
    %v4022 = vpop.xlane.xlu0 %4021
    %v4023 = vmul.f32 %v4019, %v918
    %v4024 = vmul.f32 %v4022, %v918
    %v4025 = vadd.f32 %v4023, 1e-05
    %v4026 = vadd.f32 %v4024, 1e-05
    %v4027 = vrsqrt.pop %v4025
    %v4028 = vmul.f32 %v4027, %v4025
    %v4029 = vmul.f32 %v4028, %v4027
    %v4030 = vmul.f32 0.5, %v4029
    %v4031 = vsub.f32 1.5, %v4030
    %v4032 = vmul.f32 %v4027, %v4031
    %vm4033 = vweird.f32 %v4025
    %vm4034 = vweird.f32 %v4027
    %vm4035 = vmor %vm4033, %vm4034
    %v4036 = vsel %vm4035, %v4027, %v4032
    %v4037 = vrsqrt.pop %v4026
    %v4038 = vmul.f32 %v4037, %v4026
    %v4039 = vmul.f32 %v4038, %v4037
    %v4040 = vmul.f32 0.5, %v4039
    %v4041 = vsub.f32 1.5, %v4040
    %v4042 = vmul.f32 %v4037, %v4041
    %vm4043 = vweird.f32 %v4026
    %vm4044 = vweird.f32 %v4037
    %vm4045 = vmor %vm4043, %vm4044
    %v4046 = vsel %vm4045, %v4037, %v4042
    %v4047 = vmul.f32 %v4013, %v4036
    %v4048 = vmul.f32 %v4014, %v4046
    %v4050 = vperm.slane %v4002, 0
    %v4052 = vmul.f32 %v4047, %v4050
    %v4053 = vmul.f32 %v4048, %v4050
    %v4055 = vperm.slane %v4004, 0
    %v4057 = vadd.f32 %v4052, %v4055
    %v4058 = vadd.f32 %v4053, %v4055
    %4059 = vst.msk [vmem:[#allocation2] sm:$0xff] %vm94, %v4057
    %4060 = vst.msk [vmem:[#allocation2 + $0x8] sm:$0xff] %vm94, %v4058
    // Predicated region
    $region98: #{utterance_decoder_forward.1} parent=1 // pred_check
      _
    $region99: #{utterance_decoder_forward.1} parent=1 // pred_check_branch
      %4062 = sbr.rel (0) target = $region101
    $region100: #{utterance_decoder_forward.1} parent=1 // pred_region
      %4064 = vsyncadd [#allocation3], 0
      %s4065 = sshll.u32 [#allocation2], 4
      %s4066 = int_to_ptr.vmem [resolvable:$true] %s4065
      %s4067 = sshll.u32 %s24, 4
      %s4068 = int_to_ptr.hbm [resolvable:$true] %s4067
      %4073 = dma.vmem_to_hbm [thread:$0]  %s4066, 256, %s4068, [#allocation3], 128, 128, 8
    $region101: #{utterance_decoder_forward.1} parent=1 // pred_fallthru
      _
    // Predicated region
    $region102: #{utterance_decoder_forward.1} parent=1 // pred_check
      _
    $region103: #{utterance_decoder_forward.1} parent=1 // pred_check_branch
      %4075 = sbr.rel (0) target = $region105
    $region104: #{utterance_decoder_forward.1} parent=1 // pred_region
      %4077 = dma.done [#allocation3], 256
    $region105: #{utterance_decoder_forward.1} parent=1 // pred_fallthru
      _
    %4078 = vsyncpa [#allocation3], 1

</llo_original>
